<compile_context>
chip_gen: v7x
topology: tpu7x:2x2x1
jax: 0.10.0
libtpu: 0.0.40
codegen_flags: <defaults>
</compile_context>

<pallas_src>
import math

import jax
import jax.numpy as jnp
from jax.experimental import pallas as pl
from jax.experimental.pallas import tpu as pltpu

# ----------------------------- configuration (small) -----------------------------
BATCH = 2
SEQ = 8
HIDDEN = 32
NUM_HEADS = 4
HEAD_DIM = HIDDEN // NUM_HEADS
NUM_LAYERS = 2
INTERMEDIATE = 64
VOCAB = 50
MAX_POS = 16
TYPE_VOCAB = 2
CODE_LENGTH = 16
LN_EPS = 1e-12

QKV_N = ((3 * HIDDEN + 127) // 128) * 128  # fused Q|K|V width padded to 128 lanes


# ----------------------------- in-kernel helpers -----------------------------
def _ln(x, g, b):
    mean = jnp.mean(x, axis=-1, keepdims=True)
    var = jnp.mean((x - mean) ** 2, axis=-1, keepdims=True)
    return (x - mean) * jax.lax.rsqrt(var + LN_EPS) * g + b


def _gelu(x):
    # BERT gelu (tanh approximation).
    # TODO(synk): HF BertModel default is the exact erf GELU; tanh approximation kept for
    # guaranteed Mosaic lowering (difference is tiny for these magnitudes).
    return 0.5 * x * (1.0 + jnp.tanh(0.7978845608028654 * (x + 0.044715 * x * x * x)))


# ----------------------------- fused Pallas kernel -----------------------------
def _fused_bert_kernel(x_ref, mask_ref, eg_ref, eb_ref,
                       wqkv_ref, bqkv_ref, wo_ref, bo_ref, ln1g_ref, ln1b_ref,
                       wi_ref, bi_ref, wo2_ref, bo2_ref, ln2g_ref, ln2b_ref,
                       fcw_ref, fcb_ref, out_ref, ctx_ref):
    """Whole BertTextNet forward on a [B*S, H] activation slab, all in VMEM."""
    scale = 1.0 / math.sqrt(HEAD_DIM)
    mask = mask_ref[...]                               # [B*S, B*S] additive attention mask
    x = _ln(x_ref[...], eg_ref[...], eb_ref[...])      # embedding LayerNorm, [B*S, H]

    for l in range(NUM_LAYERS):                        # static unroll; weights stay resident
        # ---- fused Q|K|V projection (lane-padded output width = 128) ----
        qkv = jnp.dot(x, wqkv_ref[l], preferred_element_type=jnp.float32) + bqkv_ref[l]

        # ---- multi-head self-attention: all heads in-kernel ----
        for h in range(NUM_HEADS):
            q = qkv[:, h * HEAD_DIM:(h + 1) * HEAD_DIM]                            # [B*S, Dh]
            k = qkv[:, HIDDEN + h * HEAD_DIM:HIDDEN + (h + 1) * HEAD_DIM]          # [B*S, Dh]
            v = qkv[:, 2 * HIDDEN + h * HEAD_DIM:2 * HIDDEN + (h + 1) * HEAD_DIM]  # [B*S, Dh]
            # scores over all B*S keys; block-diagonal mask removes cross-batch attention
            s = jax.lax.dot_general(q, k, (((1,), (1,)), ((), ())),
                                    preferred_element_type=jnp.float32) * scale + mask
            s = s - jnp.max(s, axis=-1, keepdims=True)
            p = jnp.exp(s)
            p = p * pl.reciprocal(jnp.sum(p, axis=-1, keepdims=True), approx=True)
            ctx_ref[:, h * HEAD_DIM:(h + 1) * HEAD_DIM] = jnp.dot(
                p, v, preferred_element_type=jnp.float32)

        # ---- attention output projection + residual + LayerNorm (fused epilogue) ----
        attn = jnp.dot(ctx_ref[...], wo_ref[l], preferred_element_type=jnp.float32) + bo_ref[l]
        x = _ln(attn + x, ln1g_ref[l], ln1b_ref[l])

        # ---- feed-forward (gelu) + residual + LayerNorm (fused epilogue) ----
        inter = _gelu(jnp.dot(x, wi_ref[l], preferred_element_type=jnp.float32) + bi_ref[l])
        ffn = jnp.dot(inter, wo2_ref[l], preferred_element_type=jnp.float32) + bo2_ref[l]
        x = _ln(ffn + x, ln2g_ref[l], ln2b_ref[l])

    # ---- final fc + tanh; compute on the full slab (one full-width dot), keep CLS rows ----
    feats = jnp.tanh(jnp.dot(x, fcw_ref[...], preferred_element_type=jnp.float32) + fcb_ref[...])
    for b in range(BATCH):
        out_ref[b:b + 1, :] = feats[b * SEQ:b * SEQ + 1, :]


# ----------------------------- parameter init / packing -----------------------------
def init_params(key):
    keys = list(jax.random.split(key, 16 * NUM_LAYERS + 8))
    it = iter(keys)

    def nrm(shape):
        return 0.02 * jax.random.normal(next(it), shape, dtype=jnp.float32)

    params = {
        "word_emb": nrm((VOCAB, HIDDEN)),
        "pos_emb": nrm((MAX_POS, HIDDEN)),
        "type_emb": nrm((TYPE_VOCAB, HIDDEN)),
        "emb_ln_g": jnp.ones((HIDDEN,), jnp.float32),
        "emb_ln_b": jnp.zeros((HIDDEN,), jnp.float32),
        "layers": [],
        "fc_w": nrm((HIDDEN, CODE_LENGTH)),
        "fc_b": jnp.zeros((CODE_LENGTH,), jnp.float32),
    }
    for _ in range(NUM_LAYERS):
        layer = {
            "wq": nrm((HIDDEN, HIDDEN)), "bq": jnp.zeros((HIDDEN,), jnp.float32),
            "wk": nrm((HIDDEN, HIDDEN)), "bk": jnp.zeros((HIDDEN,), jnp.float32),
            "wv": nrm((HIDDEN, HIDDEN)), "bv": jnp.zeros((HIDDEN,), jnp.float32),
            "wo": nrm((HIDDEN, HIDDEN)), "bo": jnp.zeros((HIDDEN,), jnp.float32),
            "ln1_g": jnp.ones((HIDDEN,), jnp.float32),
            "ln1_b": jnp.zeros((HIDDEN,), jnp.float32),
            "wi": nrm((HIDDEN, INTERMEDIATE)), "bi": jnp.zeros((INTERMEDIATE,), jnp.float32),
            "wo2": nrm((INTERMEDIATE, HIDDEN)), "bo2": jnp.zeros((HIDDEN,), jnp.float32),
            "ln2_g": jnp.ones((HIDDEN,), jnp.float32),
            "ln2_b": jnp.zeros((HIDDEN,), jnp.float32),
        }
        params["layers"].append(layer)
    return params


def pack_params(params):
    """One-time packing: fuse Q|K|V weights (pad 3H=96 -> 128 lanes) and stack per-layer."""
    def pad_cols(a, n):
        return jnp.pad(a, ((0, 0), (0, n - a.shape[1])))

    layers = params["layers"]
    return {
        "word_emb": params["word_emb"],
        "pos_emb": params["pos_emb"],
        "type_emb": params["type_emb"],
        "emb_ln_g": params["emb_ln_g"].reshape(1, HIDDEN),
        "emb_ln_b": params["emb_ln_b"].reshape(1, HIDDEN),
        "wqkv": jnp.stack([pad_cols(jnp.concatenate([lp["wq"], lp["wk"], lp["wv"]], axis=1),
                                    QKV_N) for lp in layers]),
        "bqkv": jnp.stack([pad_cols(jnp.concatenate([lp["bq"], lp["bk"], lp["bv"]])[None, :],
                                    QKV_N) for lp in layers]),
        "wo": jnp.stack([lp["wo"] for lp in layers]),
        "bo": jnp.stack([lp["bo"][None, :] for lp in layers]),
        "ln1_g": jnp.stack([lp["ln1_g"][None, :] for lp in layers]),
        "ln1_b": jnp.stack([lp["ln1_b"][None, :] for lp in layers]),
        "wi": jnp.stack([lp["wi"] for lp in layers]),
        "bi": jnp.stack([lp["bi"][None, :] for lp in layers]),
        "wo2": jnp.stack([lp["wo2"] for lp in layers]),
        "bo2": jnp.stack([lp["bo2"][None, :] for lp in layers]),
        "ln2_g": jnp.stack([lp["ln2_g"][None, :] for lp in layers]),
        "ln2_b": jnp.stack([lp["ln2_b"][None, :] for lp in layers]),
        "fc_w": params["fc_w"],
        "fc_b": params["fc_b"].reshape(1, CODE_LENGTH),
    }


# ----------------------------- forward (single pallas_call) -----------------------------
def bert_text_net(tokens, segments, input_masks, packed):
    """Forward of BertTextNet: BERT encoder -> [CLS] embedding -> fc -> tanh."""
    B, S = tokens.shape

    # Embedding gathers (pure index lookups) stay in the wrapper; all compute is fused.
    pos = jnp.arange(S, dtype=jnp.int32)
    emb = (jnp.take(packed["word_emb"], tokens, axis=0)
           + jnp.take(packed["pos_emb"], pos, axis=0)[None, :, :]
           + jnp.take(packed["type_emb"], segments, axis=0))
    x2 = emb.reshape(B * S, HIDDEN).astype(jnp.float32)

    # Additive attention mask [B*S, B*S]:
    #  - HF-style padding mask (1-mask)*-10000 on padded KEY positions (within a batch),
    #  - large negative across batches so all batches/heads run in one fused attention.
    key_add = ((1.0 - input_masks.astype(jnp.float32)) * -10000.0).reshape(B * S)
    batch_ids = jnp.repeat(jnp.arange(B, dtype=jnp.int32), S)
    same_batch = batch_ids[:, None] == batch_ids[None, :]
    mask_full = jnp.where(same_batch,
                          jnp.broadcast_to(key_add[None, :], (B * S, B * S)),
                          jnp.float32(-1e9))

    inputs = [x2, mask_full,
              packed["emb_ln_g"], packed["emb_ln_b"],
              packed["wqkv"], packed["bqkv"], packed["wo"], packed["bo"],
              packed["ln1_g"], packed["ln1_b"],
              packed["wi"], packed["bi"], packed["wo2"], packed["bo2"],
              packed["ln2_g"], packed["ln2_b"],
              packed["fc_w"], packed["fc_b"]]

    def full_spec(a):
        nd = a.ndim
        return pl.BlockSpec(a.shape, lambda i: (0,) * nd)

    return pl.pallas_call(
        _fused_bert_kernel,
        grid=(1,),
        out_shape=jax.ShapeDtypeStruct((B, CODE_LENGTH), jnp.float32),
        in_specs=[full_spec(a) for a in inputs],
        out_specs=pl.BlockSpec((B, CODE_LENGTH), lambda i: (0, 0)),
        scratch_shapes=[pltpu.VMEM((B * S, HIDDEN), jnp.float32)],  # per-head context assembly
        compiler_params=pltpu.CompilerParams(
            dimension_semantics=("arbitrary",)),
    )(*inputs)


# ----------------------------- main -----------------------------
if __name__ == "__main__":
    key = jax.random.PRNGKey(0)
    kp, kt, ks, km = jax.random.split(key, 4)

    params = init_params(kp)
    packed = pack_params(params)

    tokens = jax.random.randint(kt, (BATCH, SEQ), 0, VOCAB, dtype=jnp.int32)
    segments = jnp.zeros((BATCH, SEQ), dtype=jnp.int32)
    # last two positions of batch element 1 are padding
    input_masks = jnp.ones((BATCH, SEQ), dtype=jnp.int32).at[1, -2:].set(0)

    fwd = jax.jit(bert_text_net)
    out = fwd(tokens, segments, input_masks, packed)
    out = jax.block_until_ready(out)
    assert out.shape == (BATCH, CODE_LENGTH)
    assert bool(jnp.all(jnp.isfinite(out)))
    print("KERNEL_OK")
</pallas_src>

<mosaic_0001>
module attributes {stable_mosaic.version = 11 : i64} {
  func.func @_fused_bert_kernel(%arg0: i32, %arg1: memref<16x32xf32, #tpu.memory_space<vmem>>, %arg2: memref<16x16xf32, #tpu.memory_space<vmem>>, %arg3: memref<1x32xf32, #tpu.memory_space<vmem>>, %arg4: memref<1x32xf32, #tpu.memory_space<vmem>>, %arg5: memref<2x32x128xf32, #tpu.memory_space<vmem>>, %arg6: memref<2x1x128xf32, #tpu.memory_space<vmem>>, %arg7: memref<2x32x32xf32, #tpu.memory_space<vmem>>, %arg8: memref<2x1x32xf32, #tpu.memory_space<vmem>>, %arg9: memref<2x1x32xf32, #tpu.memory_space<vmem>>, %arg10: memref<2x1x32xf32, #tpu.memory_space<vmem>>, %arg11: memref<2x32x64xf32, #tpu.memory_space<vmem>>, %arg12: memref<2x1x64xf32, #tpu.memory_space<vmem>>, %arg13: memref<2x64x32xf32, #tpu.memory_space<vmem>>, %arg14: memref<2x1x32xf32, #tpu.memory_space<vmem>>, %arg15: memref<2x1x32xf32, #tpu.memory_space<vmem>>, %arg16: memref<2x1x32xf32, #tpu.memory_space<vmem>>, %arg17: memref<32x16xf32, #tpu.memory_space<vmem>>, %arg18: memref<1x16xf32, #tpu.memory_space<vmem>>, %arg19: memref<2x16xf32, #tpu.memory_space<vmem>>, %arg20: memref<16x32xf32, #tpu.memory_space<vmem>>) attributes {dimension_semantics = [#tpu.dimension_semantics<arbitrary>], iteration_bounds = array<i64: 1>, scalar_prefetch = 0 : i64, scratch_operands = 1 : i64, tpu.core_type = #tpu.core_type<tc>, window_params = [{pipeline_mode = #tpu.pipeline_mode<synchronous>, transform_indices = @transform_0, window_bounds = array<i64: 16, 32>}, {pipeline_mode = #tpu.pipeline_mode<synchronous>, transform_indices = @transform_1, window_bounds = array<i64: 16, 16>}, {pipeline_mode = #tpu.pipeline_mode<synchronous>, transform_indices = @transform_2, window_bounds = array<i64: 1, 32>}, {pipeline_mode = #tpu.pipeline_mode<synchronous>, transform_indices = @transform_3, window_bounds = array<i64: 1, 32>}, {pipeline_mode = #tpu.pipeline_mode<synchronous>, transform_indices = @transform_4, window_bounds = array<i64: 2, 32, 128>}, {pipeline_mode = #tpu.pipeline_mode<synchronous>, transform_indices = @transform_5, window_bounds = array<i64: 2, 1, 128>}, {pipeline_mode = #tpu.pipeline_mode<synchronous>, transform_indices = @transform_6, window_bounds = array<i64: 2, 32, 32>}, {pipeline_mode = #tpu.pipeline_mode<synchronous>, transform_indices = @transform_7, window_bounds = array<i64: 2, 1, 32>}, {pipeline_mode = #tpu.pipeline_mode<synchronous>, transform_indices = @transform_8, window_bounds = array<i64: 2, 1, 32>}, {pipeline_mode = #tpu.pipeline_mode<synchronous>, transform_indices = @transform_9, window_bounds = array<i64: 2, 1, 32>}, {pipeline_mode = #tpu.pipeline_mode<synchronous>, transform_indices = @transform_10, window_bounds = array<i64: 2, 32, 64>}, {pipeline_mode = #tpu.pipeline_mode<synchronous>, transform_indices = @transform_11, window_bounds = array<i64: 2, 1, 64>}, {pipeline_mode = #tpu.pipeline_mode<synchronous>, transform_indices = @transform_12, window_bounds = array<i64: 2, 64, 32>}, {pipeline_mode = #tpu.pipeline_mode<synchronous>, transform_indices = @transform_13, window_bounds = array<i64: 2, 1, 32>}, {pipeline_mode = #tpu.pipeline_mode<synchronous>, transform_indices = @transform_14, window_bounds = array<i64: 2, 1, 32>}, {pipeline_mode = #tpu.pipeline_mode<synchronous>, transform_indices = @transform_15, window_bounds = array<i64: 2, 1, 32>}, {pipeline_mode = #tpu.pipeline_mode<synchronous>, transform_indices = @transform_16, window_bounds = array<i64: 32, 16>}, {pipeline_mode = #tpu.pipeline_mode<synchronous>, transform_indices = @transform_17, window_bounds = array<i64: 1, 16>}, {pipeline_mode = #tpu.pipeline_mode<synchronous>, transform_indices = @transform_18, window_bounds = array<i64: 2, 16>}]} {
    %c0 = arith.constant 0 : index
    %c0_0 = arith.constant 0 : index
    %0 = vector.load %arg2[%c0, %c0_0] : memref<16x16xf32, #tpu.memory_space<vmem>>, vector<16x16xf32>
    %c0_1 = arith.constant 0 : index
    %c0_2 = arith.constant 0 : index
    %1 = vector.load %arg1[%c0_1, %c0_2] : memref<16x32xf32, #tpu.memory_space<vmem>>, vector<16x32xf32>
    %c0_3 = arith.constant 0 : index
    %c0_4 = arith.constant 0 : index
    %2 = vector.load %arg3[%c0_3, %c0_4] : memref<1x32xf32, #tpu.memory_space<vmem>>, vector<1x32xf32>
    %c0_5 = arith.constant 0 : index
    %c0_6 = arith.constant 0 : index
    %3 = vector.load %arg4[%c0_5, %c0_6] : memref<1x32xf32, #tpu.memory_space<vmem>>, vector<1x32xf32>
    %cst = arith.constant dense<0.000000e+00> : vector<16xf32>
    %4 = vector.multi_reduction <add>, %1, %cst [1] : vector<16x32xf32> to vector<16xf32>
    %5 = vector.shape_cast %4 : vector<16xf32> to vector<16x1xf32>
    %cst_7 = arith.constant 3.200000e+01 : f32
    %6 = vector.broadcast %cst_7 : f32 to vector<16x1xf32>
    %7 = arith.divf %5, %6 : vector<16x1xf32>
    %8 = vector.broadcast %7 : vector<16x1xf32> to vector<16x32xf32>
    %9 = arith.subf %1, %8 : vector<16x32xf32>
    %10 = arith.mulf %9, %9 : vector<16x32xf32>
    %cst_8 = arith.constant dense<0.000000e+00> : vector<16xf32>
    %11 = vector.multi_reduction <add>, %10, %cst_8 [1] : vector<16x32xf32> to vector<16xf32>
    %12 = vector.shape_cast %11 : vector<16xf32> to vector<16x1xf32>
    %cst_9 = arith.constant 3.200000e+01 : f32
    %13 = vector.broadcast %cst_9 : f32 to vector<16x1xf32>
    %14 = arith.divf %12, %13 : vector<16x1xf32>
    %15 = vector.broadcast %7 : vector<16x1xf32> to vector<16x32xf32>
    %16 = arith.subf %1, %15 : vector<16x32xf32>
    %cst_10 = arith.constant 9.99999996E-13 : f32
    %17 = vector.broadcast %cst_10 : f32 to vector<16x1xf32>
    %18 = arith.addf %14, %17 : vector<16x1xf32>
    %19 = math.rsqrt %18 : vector<16x1xf32>
    %20 = vector.broadcast %19 : vector<16x1xf32> to vector<16x32xf32>
    %21 = arith.mulf %16, %20 : vector<16x32xf32>
    %22 = vector.broadcast %2 : vector<1x32xf32> to vector<16x32xf32>
    %23 = arith.mulf %21, %22 : vector<16x32xf32>
    %24 = vector.broadcast %3 : vector<1x32xf32> to vector<16x32xf32>
    %25 = arith.addf %23, %24 : vector<16x32xf32>
    %c0_11 = arith.constant 0 : index
    %c0_12 = arith.constant 0 : index
    %c0_13 = arith.constant 0 : index
    %26 = vector.load %arg5[%c0_11, %c0_12, %c0_13] : memref<2x32x128xf32, #tpu.memory_space<vmem>>, vector<1x32x128xf32>
    %27 = vector.shape_cast %26 : vector<1x32x128xf32> to vector<32x128xf32>
    %cst_14 = arith.constant dense<0.000000e+00> : vector<16x128xf32>
    %28 = tpu.matmul %25, %27, %cst_14 {dimension_numbers = #tpu.dot_dimension_numbers<[1], [0], [0], [1], [0, 0, 1, 1], [], []>} : vector<16x32xf32>, vector<32x128xf32>, vector<16x128xf32> -> vector<16x128xf32>
    %c0_15 = arith.constant 0 : index
    %c0_16 = arith.constant 0 : index
    %c0_17 = arith.constant 0 : index
    %29 = vector.load %arg6[%c0_15, %c0_16, %c0_17] : memref<2x1x128xf32, #tpu.memory_space<vmem>>, vector<1x1x128xf32>
    %30 = vector.shape_cast %29 : vector<1x1x128xf32> to vector<1x128xf32>
    %31 = vector.broadcast %30 : vector<1x128xf32> to vector<16x128xf32>
    %32 = arith.addf %28, %31 : vector<16x128xf32>
    %33 = vector.extract_strided_slice %32 {offsets = [0, 0], sizes = [16, 8], strides = [1, 1]} : vector<16x128xf32> to vector<16x8xf32>
    %34 = vector.extract_strided_slice %32 {offsets = [0, 32], sizes = [16, 8], strides = [1, 1]} : vector<16x128xf32> to vector<16x8xf32>
    %35 = vector.extract_strided_slice %32 {offsets = [0, 64], sizes = [16, 8], strides = [1, 1]} : vector<16x128xf32> to vector<16x8xf32>
    %cst_18 = arith.constant dense<0.000000e+00> : vector<16x16xf32>
    %36 = tpu.matmul %33, %34, %cst_18 {dimension_numbers = #tpu.dot_dimension_numbers<[1], [1], [0], [0], [0, 0, 1, 0], [], []>} : vector<16x8xf32>, vector<16x8xf32>, vector<16x16xf32> -> vector<16x16xf32>
    %cst_19 = arith.constant 0.353553385 : f32
    %37 = vector.broadcast %cst_19 : f32 to vector<16x16xf32>
    %38 = arith.mulf %36, %37 : vector<16x16xf32>
    %39 = arith.addf %38, %0 : vector<16x16xf32>
    %cst_20 = arith.constant dense<0xFF800000> : vector<16xf32>
    %40 = vector.multi_reduction <maximumf>, %39, %cst_20 [1] : vector<16x16xf32> to vector<16xf32>
    %41 = vector.shape_cast %40 : vector<16xf32> to vector<16x1xf32>
    %42 = vector.broadcast %41 : vector<16x1xf32> to vector<16x16xf32>
    %43 = arith.subf %39, %42 : vector<16x16xf32>
    %44 = math.exp %43 : vector<16x16xf32>
    %cst_21 = arith.constant dense<0.000000e+00> : vector<16xf32>
    %45 = vector.multi_reduction <add>, %44, %cst_21 [1] : vector<16x16xf32> to vector<16xf32>
    %46 = vector.shape_cast %45 : vector<16xf32> to vector<16x1xf32>
    %47 = tpu.reciprocal %46 {approx = true} : vector<16x1xf32> -> vector<16x1xf32>
    %48 = vector.broadcast %47 : vector<16x1xf32> to vector<16x16xf32>
    %49 = arith.mulf %44, %48 : vector<16x16xf32>
    %cst_22 = arith.constant dense<0.000000e+00> : vector<16x8xf32>
    %50 = tpu.matmul %49, %35, %cst_22 {dimension_numbers = #tpu.dot_dimension_numbers<[1], [0], [0], [1], [0, 0, 1, 1], [], []>} : vector<16x16xf32>, vector<16x8xf32>, vector<16x8xf32> -> vector<16x8xf32>
    %c0_23 = arith.constant 0 : index
    %c0_24 = arith.constant 0 : index
    %51 = vector.load %arg20[%c0_23, %c0_24] : memref<16x32xf32, #tpu.memory_space<vmem>>, vector<16x8xf32>
    tpu.vector_store %arg20[%c0_23, %c0_24], %50 {strides = array<i32>} : memref<16x32xf32, #tpu.memory_space<vmem>>, vector<16x8xf32>,
    %52 = vector.extract_strided_slice %32 {offsets = [0, 8], sizes = [16, 8], strides = [1, 1]} : vector<16x128xf32> to vector<16x8xf32>
    %53 = vector.extract_strided_slice %32 {offsets = [0, 40], sizes = [16, 8], strides = [1, 1]} : vector<16x128xf32> to vector<16x8xf32>
    %54 = vector.extract_strided_slice %32 {offsets = [0, 72], sizes = [16, 8], strides = [1, 1]} : vector<16x128xf32> to vector<16x8xf32>
    %cst_25 = arith.constant dense<0.000000e+00> : vector<16x16xf32>
    %55 = tpu.matmul %52, %53, %cst_25 {dimension_numbers = #tpu.dot_dimension_numbers<[1], [1], [0], [0], [0, 0, 1, 0], [], []>} : vector<16x8xf32>, vector<16x8xf32>, vector<16x16xf32> -> vector<16x16xf32>
    %cst_26 = arith.constant 0.353553385 : f32
    %56 = vector.broadcast %cst_26 : f32 to vector<16x16xf32>
    %57 = arith.mulf %55, %56 : vector<16x16xf32>
    %58 = arith.addf %57, %0 : vector<16x16xf32>
    %cst_27 = arith.constant dense<0xFF800000> : vector<16xf32>
    %59 = vector.multi_reduction <maximumf>, %58, %cst_27 [1] : vector<16x16xf32> to vector<16xf32>
    %60 = vector.shape_cast %59 : vector<16xf32> to vector<16x1xf32>
    %61 = vector.broadcast %60 : vector<16x1xf32> to vector<16x16xf32>
    %62 = arith.subf %58, %61 : vector<16x16xf32>
    %63 = math.exp %62 : vector<16x16xf32>
    %cst_28 = arith.constant dense<0.000000e+00> : vector<16xf32>
    %64 = vector.multi_reduction <add>, %63, %cst_28 [1] : vector<16x16xf32> to vector<16xf32>
    %65 = vector.shape_cast %64 : vector<16xf32> to vector<16x1xf32>
    %66 = tpu.reciprocal %65 {approx = true} : vector<16x1xf32> -> vector<16x1xf32>
    %67 = vector.broadcast %66 : vector<16x1xf32> to vector<16x16xf32>
    %68 = arith.mulf %63, %67 : vector<16x16xf32>
    %cst_29 = arith.constant dense<0.000000e+00> : vector<16x8xf32>
    %69 = tpu.matmul %68, %54, %cst_29 {dimension_numbers = #tpu.dot_dimension_numbers<[1], [0], [0], [1], [0, 0, 1, 1], [], []>} : vector<16x16xf32>, vector<16x8xf32>, vector<16x8xf32> -> vector<16x8xf32>
    %c0_30 = arith.constant 0 : index
    %c8 = arith.constant 8 : index
    %70 = vector.load %arg20[%c0_30, %c8] : memref<16x32xf32, #tpu.memory_space<vmem>>, vector<16x8xf32>
    tpu.vector_store %arg20[%c0_30, %c8], %69 {strides = array<i32>} : memref<16x32xf32, #tpu.memory_space<vmem>>, vector<16x8xf32>,
    %71 = vector.extract_strided_slice %32 {offsets = [0, 16], sizes = [16, 8], strides = [1, 1]} : vector<16x128xf32> to vector<16x8xf32>
    %72 = vector.extract_strided_slice %32 {offsets = [0, 48], sizes = [16, 8], strides = [1, 1]} : vector<16x128xf32> to vector<16x8xf32>
    %73 = vector.extract_strided_slice %32 {offsets = [0, 80], sizes = [16, 8], strides = [1, 1]} : vector<16x128xf32> to vector<16x8xf32>
    %cst_31 = arith.constant dense<0.000000e+00> : vector<16x16xf32>
    %74 = tpu.matmul %71, %72, %cst_31 {dimension_numbers = #tpu.dot_dimension_numbers<[1], [1], [0], [0], [0, 0, 1, 0], [], []>} : vector<16x8xf32>, vector<16x8xf32>, vector<16x16xf32> -> vector<16x16xf32>
    %cst_32 = arith.constant 0.353553385 : f32
    %75 = vector.broadcast %cst_32 : f32 to vector<16x16xf32>
    %76 = arith.mulf %74, %75 : vector<16x16xf32>
    %77 = arith.addf %76, %0 : vector<16x16xf32>
    %cst_33 = arith.constant dense<0xFF800000> : vector<16xf32>
    %78 = vector.multi_reduction <maximumf>, %77, %cst_33 [1] : vector<16x16xf32> to vector<16xf32>
    %79 = vector.shape_cast %78 : vector<16xf32> to vector<16x1xf32>
    %80 = vector.broadcast %79 : vector<16x1xf32> to vector<16x16xf32>
    %81 = arith.subf %77, %80 : vector<16x16xf32>
    %82 = math.exp %81 : vector<16x16xf32>
    %cst_34 = arith.constant dense<0.000000e+00> : vector<16xf32>
    %83 = vector.multi_reduction <add>, %82, %cst_34 [1] : vector<16x16xf32> to vector<16xf32>
    %84 = vector.shape_cast %83 : vector<16xf32> to vector<16x1xf32>
    %85 = tpu.reciprocal %84 {approx = true} : vector<16x1xf32> -> vector<16x1xf32>
    %86 = vector.broadcast %85 : vector<16x1xf32> to vector<16x16xf32>
    %87 = arith.mulf %82, %86 : vector<16x16xf32>
    %cst_35 = arith.constant dense<0.000000e+00> : vector<16x8xf32>
    %88 = tpu.matmul %87, %73, %cst_35 {dimension_numbers = #tpu.dot_dimension_numbers<[1], [0], [0], [1], [0, 0, 1, 1], [], []>} : vector<16x16xf32>, vector<16x8xf32>, vector<16x8xf32> -> vector<16x8xf32>
    %c0_36 = arith.constant 0 : index
    %c16 = arith.constant 16 : index
    %89 = vector.load %arg20[%c0_36, %c16] : memref<16x32xf32, #tpu.memory_space<vmem>>, vector<16x8xf32>
    tpu.vector_store %arg20[%c0_36, %c16], %88 {strides = array<i32>} : memref<16x32xf32, #tpu.memory_space<vmem>>, vector<16x8xf32>,
    %90 = vector.extract_strided_slice %32 {offsets = [0, 24], sizes = [16, 8], strides = [1, 1]} : vector<16x128xf32> to vector<16x8xf32>
    %91 = vector.extract_strided_slice %32 {offsets = [0, 56], sizes = [16, 8], strides = [1, 1]} : vector<16x128xf32> to vector<16x8xf32>
    %92 = vector.extract_strided_slice %32 {offsets = [0, 88], sizes = [16, 8], strides = [1, 1]} : vector<16x128xf32> to vector<16x8xf32>
    %cst_37 = arith.constant dense<0.000000e+00> : vector<16x16xf32>
    %93 = tpu.matmul %90, %91, %cst_37 {dimension_numbers = #tpu.dot_dimension_numbers<[1], [1], [0], [0], [0, 0, 1, 0], [], []>} : vector<16x8xf32>, vector<16x8xf32>, vector<16x16xf32> -> vector<16x16xf32>
    %cst_38 = arith.constant 0.353553385 : f32
    %94 = vector.broadcast %cst_38 : f32 to vector<16x16xf32>
    %95 = arith.mulf %93, %94 : vector<16x16xf32>
    %96 = arith.addf %95, %0 : vector<16x16xf32>
    %cst_39 = arith.constant dense<0xFF800000> : vector<16xf32>
    %97 = vector.multi_reduction <maximumf>, %96, %cst_39 [1] : vector<16x16xf32> to vector<16xf32>
    %98 = vector.shape_cast %97 : vector<16xf32> to vector<16x1xf32>
    %99 = vector.broadcast %98 : vector<16x1xf32> to vector<16x16xf32>
    %100 = arith.subf %96, %99 : vector<16x16xf32>
    %101 = math.exp %100 : vector<16x16xf32>
    %cst_40 = arith.constant dense<0.000000e+00> : vector<16xf32>
    %102 = vector.multi_reduction <add>, %101, %cst_40 [1] : vector<16x16xf32> to vector<16xf32>
    %103 = vector.shape_cast %102 : vector<16xf32> to vector<16x1xf32>
    %104 = tpu.reciprocal %103 {approx = true} : vector<16x1xf32> -> vector<16x1xf32>
    %105 = vector.broadcast %104 : vector<16x1xf32> to vector<16x16xf32>
    %106 = arith.mulf %101, %105 : vector<16x16xf32>
    %cst_41 = arith.constant dense<0.000000e+00> : vector<16x8xf32>
    %107 = tpu.matmul %106, %92, %cst_41 {dimension_numbers = #tpu.dot_dimension_numbers<[1], [0], [0], [1], [0, 0, 1, 1], [], []>} : vector<16x16xf32>, vector<16x8xf32>, vector<16x8xf32> -> vector<16x8xf32>
    %c0_42 = arith.constant 0 : index
    %c24 = arith.constant 24 : index
    %108 = vector.load %arg20[%c0_42, %c24] : memref<16x32xf32, #tpu.memory_space<vmem>>, vector<16x8xf32>
    tpu.vector_store %arg20[%c0_42, %c24], %107 {strides = array<i32>} : memref<16x32xf32, #tpu.memory_space<vmem>>, vector<16x8xf32>,
    %c0_43 = arith.constant 0 : index
    %c0_44 = arith.constant 0 : index
    %109 = vector.load %arg20[%c0_43, %c0_44] : memref<16x32xf32, #tpu.memory_space<vmem>>, vector<16x32xf32>
    %c0_45 = arith.constant 0 : index
    %c0_46 = arith.constant 0 : index
    %c0_47 = arith.constant 0 : index
    %110 = vector.load %arg7[%c0_45, %c0_46, %c0_47] : memref<2x32x32xf32, #tpu.memory_space<vmem>>, vector<1x32x32xf32>
    %111 = vector.shape_cast %110 : vector<1x32x32xf32> to vector<32x32xf32>
    %cst_48 = arith.constant dense<0.000000e+00> : vector<16x32xf32>
    %112 = tpu.matmul %109, %111, %cst_48 {dimension_numbers = #tpu.dot_dimension_numbers<[1], [0], [0], [1], [0, 0, 1, 1], [], []>} : vector<16x32xf32>, vector<32x32xf32>, vector<16x32xf32> -> vector<16x32xf32>
    %c0_49 = arith.constant 0 : index
    %c0_50 = arith.constant 0 : index
    %c0_51 = arith.constant 0 : index
    %113 = vector.load %arg8[%c0_49, %c0_50, %c0_51] : memref<2x1x32xf32, #tpu.memory_space<vmem>>, vector<1x1x32xf32>
    %114 = vector.shape_cast %113 : vector<1x1x32xf32> to vector<1x32xf32>
    %115 = vector.broadcast %114 : vector<1x32xf32> to vector<16x32xf32>
    %116 = arith.addf %112, %115 : vector<16x32xf32>
    %117 = arith.addf %116, %25 : vector<16x32xf32>
    %c0_52 = arith.constant 0 : index
    %c0_53 = arith.constant 0 : index
    %c0_54 = arith.constant 0 : index
    %118 = vector.load %arg9[%c0_52, %c0_53, %c0_54] : memref<2x1x32xf32, #tpu.memory_space<vmem>>, vector<1x1x32xf32>
    %119 = vector.shape_cast %118 : vector<1x1x32xf32> to vector<1x32xf32>
    %c0_55 = arith.constant 0 : index
    %c0_56 = arith.constant 0 : index
    %c0_57 = arith.constant 0 : index
    %120 = vector.load %arg10[%c0_55, %c0_56, %c0_57] : memref<2x1x32xf32, #tpu.memory_space<vmem>>, vector<1x1x32xf32>
    %121 = vector.shape_cast %120 : vector<1x1x32xf32> to vector<1x32xf32>
    %cst_58 = arith.constant dense<0.000000e+00> : vector<16xf32>
    %122 = vector.multi_reduction <add>, %117, %cst_58 [1] : vector<16x32xf32> to vector<16xf32>
    %123 = vector.shape_cast %122 : vector<16xf32> to vector<16x1xf32>
    %cst_59 = arith.constant 3.200000e+01 : f32
    %124 = vector.broadcast %cst_59 : f32 to vector<16x1xf32>
    %125 = arith.divf %123, %124 : vector<16x1xf32>
    %126 = vector.broadcast %125 : vector<16x1xf32> to vector<16x32xf32>
    %127 = arith.subf %117, %126 : vector<16x32xf32>
    %128 = arith.mulf %127, %127 : vector<16x32xf32>
    %cst_60 = arith.constant dense<0.000000e+00> : vector<16xf32>
    %129 = vector.multi_reduction <add>, %128, %cst_60 [1] : vector<16x32xf32> to vector<16xf32>
    %130 = vector.shape_cast %129 : vector<16xf32> to vector<16x1xf32>
    %cst_61 = arith.constant 3.200000e+01 : f32
    %131 = vector.broadcast %cst_61 : f32 to vector<16x1xf32>
    %132 = arith.divf %130, %131 : vector<16x1xf32>
    %133 = vector.broadcast %125 : vector<16x1xf32> to vector<16x32xf32>
    %134 = arith.subf %117, %133 : vector<16x32xf32>
    %cst_62 = arith.constant 9.99999996E-13 : f32
    %135 = vector.broadcast %cst_62 : f32 to vector<16x1xf32>
    %136 = arith.addf %132, %135 : vector<16x1xf32>
    %137 = math.rsqrt %136 : vector<16x1xf32>
    %138 = vector.broadcast %137 : vector<16x1xf32> to vector<16x32xf32>
    %139 = arith.mulf %134, %138 : vector<16x32xf32>
    %140 = vector.broadcast %119 : vector<1x32xf32> to vector<16x32xf32>
    %141 = arith.mulf %139, %140 : vector<16x32xf32>
    %142 = vector.broadcast %121 : vector<1x32xf32> to vector<16x32xf32>
    %143 = arith.addf %141, %142 : vector<16x32xf32>
    %c0_63 = arith.constant 0 : index
    %c0_64 = arith.constant 0 : index
    %c0_65 = arith.constant 0 : index
    %144 = vector.load %arg11[%c0_63, %c0_64, %c0_65] : memref<2x32x64xf32, #tpu.memory_space<vmem>>, vector<1x32x64xf32>
    %145 = vector.shape_cast %144 : vector<1x32x64xf32> to vector<32x64xf32>
    %cst_66 = arith.constant dense<0.000000e+00> : vector<16x64xf32>
    %146 = tpu.matmul %143, %145, %cst_66 {dimension_numbers = #tpu.dot_dimension_numbers<[1], [0], [0], [1], [0, 0, 1, 1], [], []>} : vector<16x32xf32>, vector<32x64xf32>, vector<16x64xf32> -> vector<16x64xf32>
    %c0_67 = arith.constant 0 : index
    %c0_68 = arith.constant 0 : index
    %c0_69 = arith.constant 0 : index
    %147 = vector.load %arg12[%c0_67, %c0_68, %c0_69] : memref<2x1x64xf32, #tpu.memory_space<vmem>>, vector<1x1x64xf32>
    %148 = vector.shape_cast %147 : vector<1x1x64xf32> to vector<1x64xf32>
    %149 = vector.broadcast %148 : vector<1x64xf32> to vector<16x64xf32>
    %150 = arith.addf %146, %149 : vector<16x64xf32>
    %cst_70 = arith.constant 5.000000e-01 : f32
    %151 = vector.broadcast %cst_70 : f32 to vector<16x64xf32>
    %152 = arith.mulf %151, %150 : vector<16x64xf32>
    %cst_71 = arith.constant 4.471500e-02 : f32
    %153 = vector.broadcast %cst_71 : f32 to vector<16x64xf32>
    %154 = arith.mulf %153, %150 : vector<16x64xf32>
    %155 = arith.mulf %154, %150 : vector<16x64xf32>
    %156 = arith.mulf %155, %150 : vector<16x64xf32>
    %157 = arith.addf %150, %156 : vector<16x64xf32>
    %cst_72 = arith.constant 0.797884583 : f32
    %158 = vector.broadcast %cst_72 : f32 to vector<16x64xf32>
    %159 = arith.mulf %158, %157 : vector<16x64xf32>
    %160 = math.tanh %159 : vector<16x64xf32>
    %cst_73 = arith.constant 1.000000e+00 : f32
    %161 = vector.broadcast %cst_73 : f32 to vector<16x64xf32>
    %162 = arith.addf %161, %160 : vector<16x64xf32>
    %163 = arith.mulf %152, %162 : vector<16x64xf32>
    %c0_74 = arith.constant 0 : index
    %c0_75 = arith.constant 0 : index
    %c0_76 = arith.constant 0 : index
    %164 = vector.load %arg13[%c0_74, %c0_75, %c0_76] : memref<2x64x32xf32, #tpu.memory_space<vmem>>, vector<1x64x32xf32>
    %165 = vector.shape_cast %164 : vector<1x64x32xf32> to vector<64x32xf32>
    %cst_77 = arith.constant dense<0.000000e+00> : vector<16x32xf32>
    %166 = tpu.matmul %163, %165, %cst_77 {dimension_numbers = #tpu.dot_dimension_numbers<[1], [0], [0], [1], [0, 0, 1, 1], [], []>} : vector<16x64xf32>, vector<64x32xf32>, vector<16x32xf32> -> vector<16x32xf32>
    %c0_78 = arith.constant 0 : index
    %c0_79 = arith.constant 0 : index
    %c0_80 = arith.constant 0 : index
    %167 = vector.load %arg14[%c0_78, %c0_79, %c0_80] : memref<2x1x32xf32, #tpu.memory_space<vmem>>, vector<1x1x32xf32>
    %168 = vector.shape_cast %167 : vector<1x1x32xf32> to vector<1x32xf32>
    %169 = vector.broadcast %168 : vector<1x32xf32> to vector<16x32xf32>
    %170 = arith.addf %166, %169 : vector<16x32xf32>
    %171 = arith.addf %170, %143 : vector<16x32xf32>
    %c0_81 = arith.constant 0 : index
    %c0_82 = arith.constant 0 : index
    %c0_83 = arith.constant 0 : index
    %172 = vector.load %arg15[%c0_81, %c0_82, %c0_83] : memref<2x1x32xf32, #tpu.memory_space<vmem>>, vector<1x1x32xf32>
    %173 = vector.shape_cast %172 : vector<1x1x32xf32> to vector<1x32xf32>
    %c0_84 = arith.constant 0 : index
    %c0_85 = arith.constant 0 : index
    %c0_86 = arith.constant 0 : index
    %174 = vector.load %arg16[%c0_84, %c0_85, %c0_86] : memref<2x1x32xf32, #tpu.memory_space<vmem>>, vector<1x1x32xf32>
    %175 = vector.shape_cast %174 : vector<1x1x32xf32> to vector<1x32xf32>
    %cst_87 = arith.constant dense<0.000000e+00> : vector<16xf32>
    %176 = vector.multi_reduction <add>, %171, %cst_87 [1] : vector<16x32xf32> to vector<16xf32>
    %177 = vector.shape_cast %176 : vector<16xf32> to vector<16x1xf32>
    %cst_88 = arith.constant 3.200000e+01 : f32
    %178 = vector.broadcast %cst_88 : f32 to vector<16x1xf32>
    %179 = arith.divf %177, %178 : vector<16x1xf32>
    %180 = vector.broadcast %179 : vector<16x1xf32> to vector<16x32xf32>
    %181 = arith.subf %171, %180 : vector<16x32xf32>
    %182 = arith.mulf %181, %181 : vector<16x32xf32>
    %cst_89 = arith.constant dense<0.000000e+00> : vector<16xf32>
    %183 = vector.multi_reduction <add>, %182, %cst_89 [1] : vector<16x32xf32> to vector<16xf32>
    %184 = vector.shape_cast %183 : vector<16xf32> to vector<16x1xf32>
    %cst_90 = arith.constant 3.200000e+01 : f32
    %185 = vector.broadcast %cst_90 : f32 to vector<16x1xf32>
    %186 = arith.divf %184, %185 : vector<16x1xf32>
    %187 = vector.broadcast %179 : vector<16x1xf32> to vector<16x32xf32>
    %188 = arith.subf %171, %187 : vector<16x32xf32>
    %cst_91 = arith.constant 9.99999996E-13 : f32
    %189 = vector.broadcast %cst_91 : f32 to vector<16x1xf32>
    %190 = arith.addf %186, %189 : vector<16x1xf32>
    %191 = math.rsqrt %190 : vector<16x1xf32>
    %192 = vector.broadcast %191 : vector<16x1xf32> to vector<16x32xf32>
    %193 = arith.mulf %188, %192 : vector<16x32xf32>
    %194 = vector.broadcast %173 : vector<1x32xf32> to vector<16x32xf32>
    %195 = arith.mulf %193, %194 : vector<16x32xf32>
    %196 = vector.broadcast %175 : vector<1x32xf32> to vector<16x32xf32>
    %197 = arith.addf %195, %196 : vector<16x32xf32>
    %c1 = arith.constant 1 : index
    %c0_92 = arith.constant 0 : index
    %c0_93 = arith.constant 0 : index
    %198 = vector.load %arg5[%c1, %c0_92, %c0_93] : memref<2x32x128xf32, #tpu.memory_space<vmem>>, vector<1x32x128xf32>
    %199 = vector.shape_cast %198 : vector<1x32x128xf32> to vector<32x128xf32>
    %cst_94 = arith.constant dense<0.000000e+00> : vector<16x128xf32>
    %200 = tpu.matmul %197, %199, %cst_94 {dimension_numbers = #tpu.dot_dimension_numbers<[1], [0], [0], [1], [0, 0, 1, 1], [], []>} : vector<16x32xf32>, vector<32x128xf32>, vector<16x128xf32> -> vector<16x128xf32>
    %c1_95 = arith.constant 1 : index
    %c0_96 = arith.constant 0 : index
    %c0_97 = arith.constant 0 : index
    %201 = vector.load %arg6[%c1_95, %c0_96, %c0_97] : memref<2x1x128xf32, #tpu.memory_space<vmem>>, vector<1x1x128xf32>
    %202 = vector.shape_cast %201 : vector<1x1x128xf32> to vector<1x128xf32>
    %203 = vector.broadcast %202 : vector<1x128xf32> to vector<16x128xf32>
    %204 = arith.addf %200, %203 : vector<16x128xf32>
    %205 = vector.extract_strided_slice %204 {offsets = [0, 0], sizes = [16, 8], strides = [1, 1]} : vector<16x128xf32> to vector<16x8xf32>
    %206 = vector.extract_strided_slice %204 {offsets = [0, 32], sizes = [16, 8], strides = [1, 1]} : vector<16x128xf32> to vector<16x8xf32>
    %207 = vector.extract_strided_slice %204 {offsets = [0, 64], sizes = [16, 8], strides = [1, 1]} : vector<16x128xf32> to vector<16x8xf32>
    %cst_98 = arith.constant dense<0.000000e+00> : vector<16x16xf32>
    %208 = tpu.matmul %205, %206, %cst_98 {dimension_numbers = #tpu.dot_dimension_numbers<[1], [1], [0], [0], [0, 0, 1, 0], [], []>} : vector<16x8xf32>, vector<16x8xf32>, vector<16x16xf32> -> vector<16x16xf32>
    %cst_99 = arith.constant 0.353553385 : f32
    %209 = vector.broadcast %cst_99 : f32 to vector<16x16xf32>
    %210 = arith.mulf %208, %209 : vector<16x16xf32>
    %211 = arith.addf %210, %0 : vector<16x16xf32>
    %cst_100 = arith.constant dense<0xFF800000> : vector<16xf32>
    %212 = vector.multi_reduction <maximumf>, %211, %cst_100 [1] : vector<16x16xf32> to vector<16xf32>
    %213 = vector.shape_cast %212 : vector<16xf32> to vector<16x1xf32>
    %214 = vector.broadcast %213 : vector<16x1xf32> to vector<16x16xf32>
    %215 = arith.subf %211, %214 : vector<16x16xf32>
    %216 = math.exp %215 : vector<16x16xf32>
    %cst_101 = arith.constant dense<0.000000e+00> : vector<16xf32>
    %217 = vector.multi_reduction <add>, %216, %cst_101 [1] : vector<16x16xf32> to vector<16xf32>
    %218 = vector.shape_cast %217 : vector<16xf32> to vector<16x1xf32>
    %219 = tpu.reciprocal %218 {approx = true} : vector<16x1xf32> -> vector<16x1xf32>
    %220 = vector.broadcast %219 : vector<16x1xf32> to vector<16x16xf32>
    %221 = arith.mulf %216, %220 : vector<16x16xf32>
    %cst_102 = arith.constant dense<0.000000e+00> : vector<16x8xf32>
    %222 = tpu.matmul %221, %207, %cst_102 {dimension_numbers = #tpu.dot_dimension_numbers<[1], [0], [0], [1], [0, 0, 1, 1], [], []>} : vector<16x16xf32>, vector<16x8xf32>, vector<16x8xf32> -> vector<16x8xf32>
    %c0_103 = arith.constant 0 : index
    %c0_104 = arith.constant 0 : index
    %223 = vector.load %arg20[%c0_103, %c0_104] : memref<16x32xf32, #tpu.memory_space<vmem>>, vector<16x8xf32>
    tpu.vector_store %arg20[%c0_103, %c0_104], %222 {strides = array<i32>} : memref<16x32xf32, #tpu.memory_space<vmem>>, vector<16x8xf32>,
    %224 = vector.extract_strided_slice %204 {offsets = [0, 8], sizes = [16, 8], strides = [1, 1]} : vector<16x128xf32> to vector<16x8xf32>
    %225 = vector.extract_strided_slice %204 {offsets = [0, 40], sizes = [16, 8], strides = [1, 1]} : vector<16x128xf32> to vector<16x8xf32>
    %226 = vector.extract_strided_slice %204 {offsets = [0, 72], sizes = [16, 8], strides = [1, 1]} : vector<16x128xf32> to vector<16x8xf32>
    %cst_105 = arith.constant dense<0.000000e+00> : vector<16x16xf32>
    %227 = tpu.matmul %224, %225, %cst_105 {dimension_numbers = #tpu.dot_dimension_numbers<[1], [1], [0], [0], [0, 0, 1, 0], [], []>} : vector<16x8xf32>, vector<16x8xf32>, vector<16x16xf32> -> vector<16x16xf32>
    %cst_106 = arith.constant 0.353553385 : f32
    %228 = vector.broadcast %cst_106 : f32 to vector<16x16xf32>
    %229 = arith.mulf %227, %228 : vector<16x16xf32>
    %230 = arith.addf %229, %0 : vector<16x16xf32>
    %cst_107 = arith.constant dense<0xFF800000> : vector<16xf32>
    %231 = vector.multi_reduction <maximumf>, %230, %cst_107 [1] : vector<16x16xf32> to vector<16xf32>
    %232 = vector.shape_cast %231 : vector<16xf32> to vector<16x1xf32>
    %233 = vector.broadcast %232 : vector<16x1xf32> to vector<16x16xf32>
    %234 = arith.subf %230, %233 : vector<16x16xf32>
    %235 = math.exp %234 : vector<16x16xf32>
    %cst_108 = arith.constant dense<0.000000e+00> : vector<16xf32>
    %236 = vector.multi_reduction <add>, %235, %cst_108 [1] : vector<16x16xf32> to vector<16xf32>
    %237 = vector.shape_cast %236 : vector<16xf32> to vector<16x1xf32>
    %238 = tpu.reciprocal %237 {approx = true} : vector<16x1xf32> -> vector<16x1xf32>
    %239 = vector.broadcast %238 : vector<16x1xf32> to vector<16x16xf32>
    %240 = arith.mulf %235, %239 : vector<16x16xf32>
    %cst_109 = arith.constant dense<0.000000e+00> : vector<16x8xf32>
    %241 = tpu.matmul %240, %226, %cst_109 {dimension_numbers = #tpu.dot_dimension_numbers<[1], [0], [0], [1], [0, 0, 1, 1], [], []>} : vector<16x16xf32>, vector<16x8xf32>, vector<16x8xf32> -> vector<16x8xf32>
    %c0_110 = arith.constant 0 : index
    %c8_111 = arith.constant 8 : index
    %242 = vector.load %arg20[%c0_110, %c8_111] : memref<16x32xf32, #tpu.memory_space<vmem>>, vector<16x8xf32>
    tpu.vector_store %arg20[%c0_110, %c8_111], %241 {strides = array<i32>} : memref<16x32xf32, #tpu.memory_space<vmem>>, vector<16x8xf32>,
    %243 = vector.extract_strided_slice %204 {offsets = [0, 16], sizes = [16, 8], strides = [1, 1]} : vector<16x128xf32> to vector<16x8xf32>
    %244 = vector.extract_strided_slice %204 {offsets = [0, 48], sizes = [16, 8], strides = [1, 1]} : vector<16x128xf32> to vector<16x8xf32>
    %245 = vector.extract_strided_slice %204 {offsets = [0, 80], sizes = [16, 8], strides = [1, 1]} : vector<16x128xf32> to vector<16x8xf32>
    %cst_112 = arith.constant dense<0.000000e+00> : vector<16x16xf32>
    %246 = tpu.matmul %243, %244, %cst_112 {dimension_numbers = #tpu.dot_dimension_numbers<[1], [1], [0], [0], [0, 0, 1, 0], [], []>} : vector<16x8xf32>, vector<16x8xf32>, vector<16x16xf32> -> vector<16x16xf32>
    %cst_113 = arith.constant 0.353553385 : f32
    %247 = vector.broadcast %cst_113 : f32 to vector<16x16xf32>
    %248 = arith.mulf %246, %247 : vector<16x16xf32>
    %249 = arith.addf %248, %0 : vector<16x16xf32>
    %cst_114 = arith.constant dense<0xFF800000> : vector<16xf32>
    %250 = vector.multi_reduction <maximumf>, %249, %cst_114 [1] : vector<16x16xf32> to vector<16xf32>
    %251 = vector.shape_cast %250 : vector<16xf32> to vector<16x1xf32>
    %252 = vector.broadcast %251 : vector<16x1xf32> to vector<16x16xf32>
    %253 = arith.subf %249, %252 : vector<16x16xf32>
    %254 = math.exp %253 : vector<16x16xf32>
    %cst_115 = arith.constant dense<0.000000e+00> : vector<16xf32>
    %255 = vector.multi_reduction <add>, %254, %cst_115 [1] : vector<16x16xf32> to vector<16xf32>
    %256 = vector.shape_cast %255 : vector<16xf32> to vector<16x1xf32>
    %257 = tpu.reciprocal %256 {approx = true} : vector<16x1xf32> -> vector<16x1xf32>
    %258 = vector.broadcast %257 : vector<16x1xf32> to vector<16x16xf32>
    %259 = arith.mulf %254, %258 : vector<16x16xf32>
    %cst_116 = arith.constant dense<0.000000e+00> : vector<16x8xf32>
    %260 = tpu.matmul %259, %245, %cst_116 {dimension_numbers = #tpu.dot_dimension_numbers<[1], [0], [0], [1], [0, 0, 1, 1], [], []>} : vector<16x16xf32>, vector<16x8xf32>, vector<16x8xf32> -> vector<16x8xf32>
    %c0_117 = arith.constant 0 : index
    %c16_118 = arith.constant 16 : index
    %261 = vector.load %arg20[%c0_117, %c16_118] : memref<16x32xf32, #tpu.memory_space<vmem>>, vector<16x8xf32>
    tpu.vector_store %arg20[%c0_117, %c16_118], %260 {strides = array<i32>} : memref<16x32xf32, #tpu.memory_space<vmem>>, vector<16x8xf32>,
    %262 = vector.extract_strided_slice %204 {offsets = [0, 24], sizes = [16, 8], strides = [1, 1]} : vector<16x128xf32> to vector<16x8xf32>
    %263 = vector.extract_strided_slice %204 {offsets = [0, 56], sizes = [16, 8], strides = [1, 1]} : vector<16x128xf32> to vector<16x8xf32>
    %264 = vector.extract_strided_slice %204 {offsets = [0, 88], sizes = [16, 8], strides = [1, 1]} : vector<16x128xf32> to vector<16x8xf32>
    %cst_119 = arith.constant dense<0.000000e+00> : vector<16x16xf32>
    %265 = tpu.matmul %262, %263, %cst_119 {dimension_numbers = #tpu.dot_dimension_numbers<[1], [1], [0], [0], [0, 0, 1, 0], [], []>} : vector<16x8xf32>, vector<16x8xf32>, vector<16x16xf32> -> vector<16x16xf32>
    %cst_120 = arith.constant 0.353553385 : f32
    %266 = vector.broadcast %cst_120 : f32 to vector<16x16xf32>
    %267 = arith.mulf %265, %266 : vector<16x16xf32>
    %268 = arith.addf %267, %0 : vector<16x16xf32>
    %cst_121 = arith.constant dense<0xFF800000> : vector<16xf32>
    %269 = vector.multi_reduction <maximumf>, %268, %cst_121 [1] : vector<16x16xf32> to vector<16xf32>
    %270 = vector.shape_cast %269 : vector<16xf32> to vector<16x1xf32>
    %271 = vector.broadcast %270 : vector<16x1xf32> to vector<16x16xf32>
    %272 = arith.subf %268, %271 : vector<16x16xf32>
    %273 = math.exp %272 : vector<16x16xf32>
    %cst_122 = arith.constant dense<0.000000e+00> : vector<16xf32>
    %274 = vector.multi_reduction <add>, %273, %cst_122 [1] : vector<16x16xf32> to vector<16xf32>
    %275 = vector.shape_cast %274 : vector<16xf32> to vector<16x1xf32>
    %276 = tpu.reciprocal %275 {approx = true} : vector<16x1xf32> -> vector<16x1xf32>
    %277 = vector.broadcast %276 : vector<16x1xf32> to vector<16x16xf32>
    %278 = arith.mulf %273, %277 : vector<16x16xf32>
    %cst_123 = arith.constant dense<0.000000e+00> : vector<16x8xf32>
    %279 = tpu.matmul %278, %264, %cst_123 {dimension_numbers = #tpu.dot_dimension_numbers<[1], [0], [0], [1], [0, 0, 1, 1], [], []>} : vector<16x16xf32>, vector<16x8xf32>, vector<16x8xf32> -> vector<16x8xf32>
    %c0_124 = arith.constant 0 : index
    %c24_125 = arith.constant 24 : index
    %280 = vector.load %arg20[%c0_124, %c24_125] : memref<16x32xf32, #tpu.memory_space<vmem>>, vector<16x8xf32>
    tpu.vector_store %arg20[%c0_124, %c24_125], %279 {strides = array<i32>} : memref<16x32xf32, #tpu.memory_space<vmem>>, vector<16x8xf32>,
    %c0_126 = arith.constant 0 : index
    %c0_127 = arith.constant 0 : index
    %281 = vector.load %arg20[%c0_126, %c0_127] : memref<16x32xf32, #tpu.memory_space<vmem>>, vector<16x32xf32>
    %c1_128 = arith.constant 1 : index
    %c0_129 = arith.constant 0 : index
    %c0_130 = arith.constant 0 : index
    %282 = vector.load %arg7[%c1_128, %c0_129, %c0_130] : memref<2x32x32xf32, #tpu.memory_space<vmem>>, vector<1x32x32xf32>
    %283 = vector.shape_cast %282 : vector<1x32x32xf32> to vector<32x32xf32>
    %cst_131 = arith.constant dense<0.000000e+00> : vector<16x32xf32>
    %284 = tpu.matmul %281, %283, %cst_131 {dimension_numbers = #tpu.dot_dimension_numbers<[1], [0], [0], [1], [0, 0, 1, 1], [], []>} : vector<16x32xf32>, vector<32x32xf32>, vector<16x32xf32> -> vector<16x32xf32>
    %c1_132 = arith.constant 1 : index
    %c0_133 = arith.constant 0 : index
    %c0_134 = arith.constant 0 : index
    %285 = vector.load %arg8[%c1_132, %c0_133, %c0_134] : memref<2x1x32xf32, #tpu.memory_space<vmem>>, vector<1x1x32xf32>
    %286 = vector.shape_cast %285 : vector<1x1x32xf32> to vector<1x32xf32>
    %287 = vector.broadcast %286 : vector<1x32xf32> to vector<16x32xf32>
    %288 = arith.addf %284, %287 : vector<16x32xf32>
    %289 = arith.addf %288, %197 : vector<16x32xf32>
    %c1_135 = arith.constant 1 : index
    %c0_136 = arith.constant 0 : index
    %c0_137 = arith.constant 0 : index
    %290 = vector.load %arg9[%c1_135, %c0_136, %c0_137] : memref<2x1x32xf32, #tpu.memory_space<vmem>>, vector<1x1x32xf32>
    %291 = vector.shape_cast %290 : vector<1x1x32xf32> to vector<1x32xf32>
    %c1_138 = arith.constant 1 : index
    %c0_139 = arith.constant 0 : index
    %c0_140 = arith.constant 0 : index
    %292 = vector.load %arg10[%c1_138, %c0_139, %c0_140] : memref<2x1x32xf32, #tpu.memory_space<vmem>>, vector<1x1x32xf32>
    %293 = vector.shape_cast %292 : vector<1x1x32xf32> to vector<1x32xf32>
    %cst_141 = arith.constant dense<0.000000e+00> : vector<16xf32>
    %294 = vector.multi_reduction <add>, %289, %cst_141 [1] : vector<16x32xf32> to vector<16xf32>
    %295 = vector.shape_cast %294 : vector<16xf32> to vector<16x1xf32>
    %cst_142 = arith.constant 3.200000e+01 : f32
    %296 = vector.broadcast %cst_142 : f32 to vector<16x1xf32>
    %297 = arith.divf %295, %296 : vector<16x1xf32>
    %298 = vector.broadcast %297 : vector<16x1xf32> to vector<16x32xf32>
    %299 = arith.subf %289, %298 : vector<16x32xf32>
    %300 = arith.mulf %299, %299 : vector<16x32xf32>
    %cst_143 = arith.constant dense<0.000000e+00> : vector<16xf32>
    %301 = vector.multi_reduction <add>, %300, %cst_143 [1] : vector<16x32xf32> to vector<16xf32>
    %302 = vector.shape_cast %301 : vector<16xf32> to vector<16x1xf32>
    %cst_144 = arith.constant 3.200000e+01 : f32
    %303 = vector.broadcast %cst_144 : f32 to vector<16x1xf32>
    %304 = arith.divf %302, %303 : vector<16x1xf32>
    %305 = vector.broadcast %297 : vector<16x1xf32> to vector<16x32xf32>
    %306 = arith.subf %289, %305 : vector<16x32xf32>
    %cst_145 = arith.constant 9.99999996E-13 : f32
    %307 = vector.broadcast %cst_145 : f32 to vector<16x1xf32>
    %308 = arith.addf %304, %307 : vector<16x1xf32>
    %309 = math.rsqrt %308 : vector<16x1xf32>
    %310 = vector.broadcast %309 : vector<16x1xf32> to vector<16x32xf32>
    %311 = arith.mulf %306, %310 : vector<16x32xf32>
    %312 = vector.broadcast %291 : vector<1x32xf32> to vector<16x32xf32>
    %313 = arith.mulf %311, %312 : vector<16x32xf32>
    %314 = vector.broadcast %293 : vector<1x32xf32> to vector<16x32xf32>
    %315 = arith.addf %313, %314 : vector<16x32xf32>
    %c1_146 = arith.constant 1 : index
    %c0_147 = arith.constant 0 : index
    %c0_148 = arith.constant 0 : index
    %316 = vector.load %arg11[%c1_146, %c0_147, %c0_148] : memref<2x32x64xf32, #tpu.memory_space<vmem>>, vector<1x32x64xf32>
    %317 = vector.shape_cast %316 : vector<1x32x64xf32> to vector<32x64xf32>
    %cst_149 = arith.constant dense<0.000000e+00> : vector<16x64xf32>
    %318 = tpu.matmul %315, %317, %cst_149 {dimension_numbers = #tpu.dot_dimension_numbers<[1], [0], [0], [1], [0, 0, 1, 1], [], []>} : vector<16x32xf32>, vector<32x64xf32>, vector<16x64xf32> -> vector<16x64xf32>
    %c1_150 = arith.constant 1 : index
    %c0_151 = arith.constant 0 : index
    %c0_152 = arith.constant 0 : index
    %319 = vector.load %arg12[%c1_150, %c0_151, %c0_152] : memref<2x1x64xf32, #tpu.memory_space<vmem>>, vector<1x1x64xf32>
    %320 = vector.shape_cast %319 : vector<1x1x64xf32> to vector<1x64xf32>
    %321 = vector.broadcast %320 : vector<1x64xf32> to vector<16x64xf32>
    %322 = arith.addf %318, %321 : vector<16x64xf32>
    %cst_153 = arith.constant 5.000000e-01 : f32
    %323 = vector.broadcast %cst_153 : f32 to vector<16x64xf32>
    %324 = arith.mulf %323, %322 : vector<16x64xf32>
    %cst_154 = arith.constant 4.471500e-02 : f32
    %325 = vector.broadcast %cst_154 : f32 to vector<16x64xf32>
    %326 = arith.mulf %325, %322 : vector<16x64xf32>
    %327 = arith.mulf %326, %322 : vector<16x64xf32>
    %328 = arith.mulf %327, %322 : vector<16x64xf32>
    %329 = arith.addf %322, %328 : vector<16x64xf32>
    %cst_155 = arith.constant 0.797884583 : f32
    %330 = vector.broadcast %cst_155 : f32 to vector<16x64xf32>
    %331 = arith.mulf %330, %329 : vector<16x64xf32>
    %332 = math.tanh %331 : vector<16x64xf32>
    %cst_156 = arith.constant 1.000000e+00 : f32
    %333 = vector.broadcast %cst_156 : f32 to vector<16x64xf32>
    %334 = arith.addf %333, %332 : vector<16x64xf32>
    %335 = arith.mulf %324, %334 : vector<16x64xf32>
    %c1_157 = arith.constant 1 : index
    %c0_158 = arith.constant 0 : index
    %c0_159 = arith.constant 0 : index
    %336 = vector.load %arg13[%c1_157, %c0_158, %c0_159] : memref<2x64x32xf32, #tpu.memory_space<vmem>>, vector<1x64x32xf32>
    %337 = vector.shape_cast %336 : vector<1x64x32xf32> to vector<64x32xf32>
    %cst_160 = arith.constant dense<0.000000e+00> : vector<16x32xf32>
    %338 = tpu.matmul %335, %337, %cst_160 {dimension_numbers = #tpu.dot_dimension_numbers<[1], [0], [0], [1], [0, 0, 1, 1], [], []>} : vector<16x64xf32>, vector<64x32xf32>, vector<16x32xf32> -> vector<16x32xf32>
    %c1_161 = arith.constant 1 : index
    %c0_162 = arith.constant 0 : index
    %c0_163 = arith.constant 0 : index
    %339 = vector.load %arg14[%c1_161, %c0_162, %c0_163] : memref<2x1x32xf32, #tpu.memory_space<vmem>>, vector<1x1x32xf32>
    %340 = vector.shape_cast %339 : vector<1x1x32xf32> to vector<1x32xf32>
    %341 = vector.broadcast %340 : vector<1x32xf32> to vector<16x32xf32>
    %342 = arith.addf %338, %341 : vector<16x32xf32>
    %343 = arith.addf %342, %315 : vector<16x32xf32>
    %c1_164 = arith.constant 1 : index
    %c0_165 = arith.constant 0 : index
    %c0_166 = arith.constant 0 : index
    %344 = vector.load %arg15[%c1_164, %c0_165, %c0_166] : memref<2x1x32xf32, #tpu.memory_space<vmem>>, vector<1x1x32xf32>
    %345 = vector.shape_cast %344 : vector<1x1x32xf32> to vector<1x32xf32>
    %c1_167 = arith.constant 1 : index
    %c0_168 = arith.constant 0 : index
    %c0_169 = arith.constant 0 : index
    %346 = vector.load %arg16[%c1_167, %c0_168, %c0_169] : memref<2x1x32xf32, #tpu.memory_space<vmem>>, vector<1x1x32xf32>
    %347 = vector.shape_cast %346 : vector<1x1x32xf32> to vector<1x32xf32>
    %cst_170 = arith.constant dense<0.000000e+00> : vector<16xf32>
    %348 = vector.multi_reduction <add>, %343, %cst_170 [1] : vector<16x32xf32> to vector<16xf32>
    %349 = vector.shape_cast %348 : vector<16xf32> to vector<16x1xf32>
    %cst_171 = arith.constant 3.200000e+01 : f32
    %350 = vector.broadcast %cst_171 : f32 to vector<16x1xf32>
    %351 = arith.divf %349, %350 : vector<16x1xf32>
    %352 = vector.broadcast %351 : vector<16x1xf32> to vector<16x32xf32>
    %353 = arith.subf %343, %352 : vector<16x32xf32>
    %354 = arith.mulf %353, %353 : vector<16x32xf32>
    %cst_172 = arith.constant dense<0.000000e+00> : vector<16xf32>
    %355 = vector.multi_reduction <add>, %354, %cst_172 [1] : vector<16x32xf32> to vector<16xf32>
    %356 = vector.shape_cast %355 : vector<16xf32> to vector<16x1xf32>
    %cst_173 = arith.constant 3.200000e+01 : f32
    %357 = vector.broadcast %cst_173 : f32 to vector<16x1xf32>
    %358 = arith.divf %356, %357 : vector<16x1xf32>
    %359 = vector.broadcast %351 : vector<16x1xf32> to vector<16x32xf32>
    %360 = arith.subf %343, %359 : vector<16x32xf32>
    %cst_174 = arith.constant 9.99999996E-13 : f32
    %361 = vector.broadcast %cst_174 : f32 to vector<16x1xf32>
    %362 = arith.addf %358, %361 : vector<16x1xf32>
    %363 = math.rsqrt %362 : vector<16x1xf32>
    %364 = vector.broadcast %363 : vector<16x1xf32> to vector<16x32xf32>
    %365 = arith.mulf %360, %364 : vector<16x32xf32>
    %366 = vector.broadcast %345 : vector<1x32xf32> to vector<16x32xf32>
    %367 = arith.mulf %365, %366 : vector<16x32xf32>
    %368 = vector.broadcast %347 : vector<1x32xf32> to vector<16x32xf32>
    %369 = arith.addf %367, %368 : vector<16x32xf32>
    %c0_175 = arith.constant 0 : index
    %c0_176 = arith.constant 0 : index
    %370 = vector.load %arg17[%c0_175, %c0_176] : memref<32x16xf32, #tpu.memory_space<vmem>>, vector<32x16xf32>
    %cst_177 = arith.constant dense<0.000000e+00> : vector<16x16xf32>
    %371 = tpu.matmul %369, %370, %cst_177 {dimension_numbers = #tpu.dot_dimension_numbers<[1], [0], [0], [1], [0, 0, 1, 1], [], []>} : vector<16x32xf32>, vector<32x16xf32>, vector<16x16xf32> -> vector<16x16xf32>
    %c0_178 = arith.constant 0 : index
    %c0_179 = arith.constant 0 : index
    %372 = vector.load %arg18[%c0_178, %c0_179] : memref<1x16xf32, #tpu.memory_space<vmem>>, vector<1x16xf32>
    %373 = vector.broadcast %372 : vector<1x16xf32> to vector<16x16xf32>
    %374 = arith.addf %371, %373 : vector<16x16xf32>
    %375 = math.tanh %374 : vector<16x16xf32>
    %376 = vector.extract_strided_slice %375 {offsets = [0, 0], sizes = [1, 16], strides = [1, 1]} : vector<16x16xf32> to vector<1x16xf32>
    %c0_180 = arith.constant 0 : index
    %c0_181 = arith.constant 0 : index
    %377 = vector.load %arg19[%c0_180, %c0_181] : memref<2x16xf32, #tpu.memory_space<vmem>>, vector<1x16xf32>
    tpu.vector_store %arg19[%c0_180, %c0_181], %376 {strides = array<i32>} : memref<2x16xf32, #tpu.memory_space<vmem>>, vector<1x16xf32>,
    %378 = vector.extract_strided_slice %375 {offsets = [8, 0], sizes = [1, 16], strides = [1, 1]} : vector<16x16xf32> to vector<1x16xf32>
    %c1_182 = arith.constant 1 : index
    %c0_183 = arith.constant 0 : index
    %379 = vector.load %arg19[%c1_182, %c0_183] : memref<2x16xf32, #tpu.memory_space<vmem>>, vector<1x16xf32>
    tpu.vector_store %arg19[%c1_182, %c0_183], %378 {strides = array<i32>} : memref<2x16xf32, #tpu.memory_space<vmem>>, vector<1x16xf32>,
    return
  }
  func.func @transform_0(%arg0: i32) -> (i32, i32) {
    %c0_i32 = arith.constant 0 : i32
    %c0_i32_0 = arith.constant 0 : i32
    %c0_i32_1 = arith.constant 0 : i32
    return %c0_i32, %c0_i32_0 : i32, i32
  }
  func.func @transform_1(%arg0: i32) -> (i32, i32) {
    %c0_i32 = arith.constant 0 : i32
    %c0_i32_0 = arith.constant 0 : i32
    %c0_i32_1 = arith.constant 0 : i32
    return %c0_i32, %c0_i32_0 : i32, i32
  }
  func.func @transform_2(%arg0: i32) -> (i32, i32) {
    %c0_i32 = arith.constant 0 : i32
    %c0_i32_0 = arith.constant 0 : i32
    %c0_i32_1 = arith.constant 0 : i32
    return %c0_i32, %c0_i32_0 : i32, i32
  }
  func.func @transform_3(%arg0: i32) -> (i32, i32) {
    %c0_i32 = arith.constant 0 : i32
    %c0_i32_0 = arith.constant 0 : i32
    %c0_i32_1 = arith.constant 0 : i32
    return %c0_i32, %c0_i32_0 : i32, i32
  }
  func.func @transform_4(%arg0: i32) -> (i32, i32, i32) {
    %c0_i32 = arith.constant 0 : i32
    %c0_i32_0 = arith.constant 0 : i32
    %c0_i32_1 = arith.constant 0 : i32
    %c0_i32_2 = arith.constant 0 : i32
    return %c0_i32, %c0_i32_0, %c0_i32_1 : i32, i32, i32
  }
  func.func @transform_5(%arg0: i32) -> (i32, i32, i32) {
    %c0_i32 = arith.constant 0 : i32
    %c0_i32_0 = arith.constant 0 : i32
    %c0_i32_1 = arith.constant 0 : i32
    %c0_i32_2 = arith.constant 0 : i32
    return %c0_i32, %c0_i32_0, %c0_i32_1 : i32, i32, i32
  }
  func.func @transform_6(%arg0: i32) -> (i32, i32, i32) {
    %c0_i32 = arith.constant 0 : i32
    %c0_i32_0 = arith.constant 0 : i32
    %c0_i32_1 = arith.constant 0 : i32
    %c0_i32_2 = arith.constant 0 : i32
    return %c0_i32, %c0_i32_0, %c0_i32_1 : i32, i32, i32
  }
  func.func @transform_7(%arg0: i32) -> (i32, i32, i32) {
    %c0_i32 = arith.constant 0 : i32
    %c0_i32_0 = arith.constant 0 : i32
    %c0_i32_1 = arith.constant 0 : i32
    %c0_i32_2 = arith.constant 0 : i32
    return %c0_i32, %c0_i32_0, %c0_i32_1 : i32, i32, i32
  }
  func.func @transform_8(%arg0: i32) -> (i32, i32, i32) {
    %c0_i32 = arith.constant 0 : i32
    %c0_i32_0 = arith.constant 0 : i32
    %c0_i32_1 = arith.constant 0 : i32
    %c0_i32_2 = arith.constant 0 : i32
    return %c0_i32, %c0_i32_0, %c0_i32_1 : i32, i32, i32
  }
  func.func @transform_9(%arg0: i32) -> (i32, i32, i32) {
    %c0_i32 = arith.constant 0 : i32
    %c0_i32_0 = arith.constant 0 : i32
    %c0_i32_1 = arith.constant 0 : i32
    %c0_i32_2 = arith.constant 0 : i32
    return %c0_i32, %c0_i32_0, %c0_i32_1 : i32, i32, i32
  }
  func.func @transform_10(%arg0: i32) -> (i32, i32, i32) {
    %c0_i32 = arith.constant 0 : i32
    %c0_i32_0 = arith.constant 0 : i32
    %c0_i32_1 = arith.constant 0 : i32
    %c0_i32_2 = arith.constant 0 : i32
    return %c0_i32, %c0_i32_0, %c0_i32_1 : i32, i32, i32
  }
  func.func @transform_11(%arg0: i32) -> (i32, i32, i32) {
    %c0_i32 = arith.constant 0 : i32
    %c0_i32_0 = arith.constant 0 : i32
    %c0_i32_1 = arith.constant 0 : i32
    %c0_i32_2 = arith.constant 0 : i32
    return %c0_i32, %c0_i32_0, %c0_i32_1 : i32, i32, i32
  }
  func.func @transform_12(%arg0: i32) -> (i32, i32, i32) {
    %c0_i32 = arith.constant 0 : i32
    %c0_i32_0 = arith.constant 0 : i32
    %c0_i32_1 = arith.constant 0 : i32
    %c0_i32_2 = arith.constant 0 : i32
    return %c0_i32, %c0_i32_0, %c0_i32_1 : i32, i32, i32
  }
  func.func @transform_13(%arg0: i32) -> (i32, i32, i32) {
    %c0_i32 = arith.constant 0 : i32
    %c0_i32_0 = arith.constant 0 : i32
    %c0_i32_1 = arith.constant 0 : i32
    %c0_i32_2 = arith.constant 0 : i32
    return %c0_i32, %c0_i32_0, %c0_i32_1 : i32, i32, i32
  }
  func.func @transform_14(%arg0: i32) -> (i32, i32, i32) {
    %c0_i32 = arith.constant 0 : i32
    %c0_i32_0 = arith.constant 0 : i32
    %c0_i32_1 = arith.constant 0 : i32
    %c0_i32_2 = arith.constant 0 : i32
    return %c0_i32, %c0_i32_0, %c0_i32_1 : i32, i32, i32
  }
  func.func @transform_15(%arg0: i32) -> (i32, i32, i32) {
    %c0_i32 = arith.constant 0 : i32
    %c0_i32_0 = arith.constant 0 : i32
    %c0_i32_1 = arith.constant 0 : i32
    %c0_i32_2 = arith.constant 0 : i32
    return %c0_i32, %c0_i32_0, %c0_i32_1 : i32, i32, i32
  }
  func.func @transform_16(%arg0: i32) -> (i32, i32) {
    %c0_i32 = arith.constant 0 : i32
    %c0_i32_0 = arith.constant 0 : i32
    %c0_i32_1 = arith.constant 0 : i32
    return %c0_i32, %c0_i32_0 : i32, i32
  }
  func.func @transform_17(%arg0: i32) -> (i32, i32) {
    %c0_i32 = arith.constant 0 : i32
    %c0_i32_0 = arith.constant 0 : i32
    %c0_i32_1 = arith.constant 0 : i32
    return %c0_i32, %c0_i32_0 : i32, i32
  }
  func.func @transform_18(%arg0: i32) -> (i32, i32) {
    %c0_i32 = arith.constant 0 : i32
    %c0_i32_0 = arith.constant 0 : i32
    %c0_i32_1 = arith.constant 0 : i32
    return %c0_i32, %c0_i32_0 : i32, i32
  }
}

</mosaic_0001>

<llo_original>
// kernel: bert_text_net.1
$region0: #{bert_text_net.1}
  #allocation0 [shape = 'u32[]', space=smem, size = 0x4, offset = 0x4, fixed_abs, tag = 'smem constant byte address 0x4 - core index']
  #allocation1 [shape = 'u32[144,128]{1,0:T(1,128)}', space=vmem, size = 0x12000, scoped, tag = 'internal scratch']
  #allocation2 [shape = 'f32[16,32]{1,0:T(8,128)}', space=vmem, size = 0x2000, scoped, tag = 'scratch operand']
  %s0 = inlined_call_operand.vmem [shape: f32[16,32], index: 0, kind: input, shape index: {}]
  %s1 = inlined_call_operand.vmem [shape: f32[16,16], index: 1, kind: input, shape index: {}]
  %s2 = inlined_call_operand.vmem [shape: f32[1,32], index: 2, kind: input, shape index: {}]
  %s3 = inlined_call_operand.vmem [shape: f32[1,32], index: 3, kind: input, shape index: {}]
  %s4 = inlined_call_operand.vmem [shape: f32[2,32,128], index: 4, kind: input, shape index: {}]
  %s5 = inlined_call_operand.vmem [shape: f32[2,1,128], index: 5, kind: input, shape index: {}]
  %s6 = inlined_call_operand.vmem [shape: f32[2,32,32], index: 6, kind: input, shape index: {}]
  %s7 = inlined_call_operand.vmem [shape: f32[2,1,32], index: 7, kind: input, shape index: {}]
  %s8 = inlined_call_operand.vmem [shape: f32[2,1,32], index: 8, kind: input, shape index: {}]
  %s9 = inlined_call_operand.vmem [shape: f32[2,1,32], index: 9, kind: input, shape index: {}]
  %s10 = inlined_call_operand.vmem [shape: f32[2,32,64], index: 10, kind: input, shape index: {}]
  %s11 = inlined_call_operand.vmem [shape: f32[2,1,64], index: 11, kind: input, shape index: {}]
  %s12 = inlined_call_operand.vmem [shape: f32[2,64,32], index: 12, kind: input, shape index: {}]
  %s13 = inlined_call_operand.vmem [shape: f32[2,1,32], index: 13, kind: input, shape index: {}]
  %s14 = inlined_call_operand.vmem [shape: f32[2,1,32], index: 14, kind: input, shape index: {}]
  %s15 = inlined_call_operand.vmem [shape: f32[2,1,32], index: 15, kind: input, shape index: {}]
  %s16 = inlined_call_operand.vmem [shape: f32[32,16], index: 16, kind: input, shape index: {}]
  %s17 = inlined_call_operand.vmem [shape: f32[1,16], index: 17, kind: input, shape index: {}]
  %s18 = inlined_call_operand.hbm [shape: f32[2,16], index: 18, kind: output, shape index: {}]
  %s19 = sld [smem:[#allocation0]]
  $region82: #{bert_text_net.1} parent=0
    _
  %s21 = ssub.s32 1, %s19
  %s22 = scalar_select 0, %s21, %s19
  $region1: #{bert_text_net.1} parent=0
    #allocation3 [shape = 'u8[1024]{0}', space=vmem, size = 0x400, scoped, tag = 'output window, operand 0, single buffered']
    #allocation4 [shape = 's32[1]{0}', space=sflag, size = 0x4, scoped, tag = 'scoped memory for bert_text_net.1']
    %23 = vsyncpa [#allocation4], 0
    // Predicated region
    $region2: #{bert_text_net.1} parent=1 // pred_check
      _
    $region3: #{bert_text_net.1} parent=1 // pred_check_branch
      %25 = sbr.rel (0) target = $region5
    $region4: #{bert_text_net.1} parent=1 // pred_region
      _
    $region5: #{bert_text_net.1} parent=1 // pred_fallthru
      _
    // Predicated region
    $region6: #{bert_text_net.1} parent=1 // pred_check
      _
    $region7: #{bert_text_net.1} parent=1 // pred_check_branch
      %27 = sbr.rel (0) target = $region9
    $region8: #{bert_text_net.1} parent=1 // pred_region
      _
    $region9: #{bert_text_net.1} parent=1 // pred_fallthru
      _
    // Predicated region
    $region10: #{bert_text_net.1} parent=1 // pred_check
      _
    $region11: #{bert_text_net.1} parent=1 // pred_check_branch
      %29 = sbr.rel (0) target = $region13
    $region12: #{bert_text_net.1} parent=1 // pred_region
      _
    $region13: #{bert_text_net.1} parent=1 // pred_fallthru
      _
    // Predicated region
    $region14: #{bert_text_net.1} parent=1 // pred_check
      _
    $region15: #{bert_text_net.1} parent=1 // pred_check_branch
      %31 = sbr.rel (0) target = $region17
    $region16: #{bert_text_net.1} parent=1 // pred_region
      _
    $region17: #{bert_text_net.1} parent=1 // pred_fallthru
      _
    // Predicated region
    $region18: #{bert_text_net.1} parent=1 // pred_check
      _
    $region19: #{bert_text_net.1} parent=1 // pred_check_branch
      %33 = sbr.rel (0) target = $region21
    $region20: #{bert_text_net.1} parent=1 // pred_region
      _
    $region21: #{bert_text_net.1} parent=1 // pred_fallthru
      _
    // Predicated region
    $region22: #{bert_text_net.1} parent=1 // pred_check
      _
    $region23: #{bert_text_net.1} parent=1 // pred_check_branch
      %35 = sbr.rel (0) target = $region25
    $region24: #{bert_text_net.1} parent=1 // pred_region
      _
    $region25: #{bert_text_net.1} parent=1 // pred_fallthru
      _
    // Predicated region
    $region26: #{bert_text_net.1} parent=1 // pred_check
      _
    $region27: #{bert_text_net.1} parent=1 // pred_check_branch
      %37 = sbr.rel (0) target = $region29
    $region28: #{bert_text_net.1} parent=1 // pred_region
      _
    $region29: #{bert_text_net.1} parent=1 // pred_fallthru
      _
    // Predicated region
    $region30: #{bert_text_net.1} parent=1 // pred_check
      _
    $region31: #{bert_text_net.1} parent=1 // pred_check_branch
      %39 = sbr.rel (0) target = $region33
    $region32: #{bert_text_net.1} parent=1 // pred_region
      _
    $region33: #{bert_text_net.1} parent=1 // pred_fallthru
      _
    // Predicated region
    $region34: #{bert_text_net.1} parent=1 // pred_check
      _
    $region35: #{bert_text_net.1} parent=1 // pred_check_branch
      %41 = sbr.rel (0) target = $region37
    $region36: #{bert_text_net.1} parent=1 // pred_region
      _
    $region37: #{bert_text_net.1} parent=1 // pred_fallthru
      _
    // Predicated region
    $region38: #{bert_text_net.1} parent=1 // pred_check
      _
    $region39: #{bert_text_net.1} parent=1 // pred_check_branch
      %43 = sbr.rel (0) target = $region41
    $region40: #{bert_text_net.1} parent=1 // pred_region
      _
    $region41: #{bert_text_net.1} parent=1 // pred_fallthru
      _
    // Predicated region
    $region42: #{bert_text_net.1} parent=1 // pred_check
      _
    $region43: #{bert_text_net.1} parent=1 // pred_check_branch
      %45 = sbr.rel (0) target = $region45
    $region44: #{bert_text_net.1} parent=1 // pred_region
      _
    $region45: #{bert_text_net.1} parent=1 // pred_fallthru
      _
    // Predicated region
    $region46: #{bert_text_net.1} parent=1 // pred_check
      _
    $region47: #{bert_text_net.1} parent=1 // pred_check_branch
      %47 = sbr.rel (0) target = $region49
    $region48: #{bert_text_net.1} parent=1 // pred_region
      _
    $region49: #{bert_text_net.1} parent=1 // pred_fallthru
      _
    // Predicated region
    $region50: #{bert_text_net.1} parent=1 // pred_check
      _
    $region51: #{bert_text_net.1} parent=1 // pred_check_branch
      %49 = sbr.rel (0) target = $region53
    $region52: #{bert_text_net.1} parent=1 // pred_region
      _
    $region53: #{bert_text_net.1} parent=1 // pred_fallthru
      _
    // Predicated region
    $region54: #{bert_text_net.1} parent=1 // pred_check
      _
    $region55: #{bert_text_net.1} parent=1 // pred_check_branch
      %51 = sbr.rel (0) target = $region57
    $region56: #{bert_text_net.1} parent=1 // pred_region
      _
    $region57: #{bert_text_net.1} parent=1 // pred_fallthru
      _
    // Predicated region
    $region58: #{bert_text_net.1} parent=1 // pred_check
      _
    $region59: #{bert_text_net.1} parent=1 // pred_check_branch
      %53 = sbr.rel (0) target = $region61
    $region60: #{bert_text_net.1} parent=1 // pred_region
      _
    $region61: #{bert_text_net.1} parent=1 // pred_fallthru
      _
    // Predicated region
    $region62: #{bert_text_net.1} parent=1 // pred_check
      _
    $region63: #{bert_text_net.1} parent=1 // pred_check_branch
      %55 = sbr.rel (0) target = $region65
    $region64: #{bert_text_net.1} parent=1 // pred_region
      _
    $region65: #{bert_text_net.1} parent=1 // pred_fallthru
      _
    // Predicated region
    $region66: #{bert_text_net.1} parent=1 // pred_check
      _
    $region67: #{bert_text_net.1} parent=1 // pred_check_branch
      %57 = sbr.rel (0) target = $region69
    $region68: #{bert_text_net.1} parent=1 // pred_region
      _
    $region69: #{bert_text_net.1} parent=1 // pred_fallthru
      _
    // Predicated region
    $region70: #{bert_text_net.1} parent=1 // pred_check
      _
    $region71: #{bert_text_net.1} parent=1 // pred_check_branch
      %59 = sbr.rel (0) target = $region73
    $region72: #{bert_text_net.1} parent=1 // pred_region
      _
    $region73: #{bert_text_net.1} parent=1 // pred_fallthru
      _
    %v60 = vld [vmem:[%s1] sm:$0xff]
    %v61 = vld [vmem:[%s1 + $0x8] sm:$0xff]
    %v62 = vld [vmem:[%s0] sm:$0xff]
    %v63 = vld [vmem:[%s0 + $0x8] sm:$0xff]
    %v64 = vld [vmem:[%s2] sm:$0x1]
    %v65 = vld [vmem:[%s3] sm:$0x1]
    %vm66 = vcmask 261120
    %v67 = vsel %vm66, %v62, 0.0
    %68 = vadd.xlane.f32.xlu0 %v67
    %v69 = vpop.xlane.xlu0 %68
    %v70 = vsel %vm66, %v63, 0.0
    %71 = vadd.xlane.f32.xlu0 %v70
    %v72 = vpop.xlane.xlu0 %71
    %v73 = vrcp.pop 32.0
    %v74 = vmul.f32 %v69, %v73
    %v75 = vmul.f32 %v72, %v73
    %v76 = vsub.f32 %v62, %v74
    %v77 = vsub.f32 %v63, %v75
    %v78 = vmul.f32 %v76, %v76
    %v79 = vmul.f32 %v77, %v77
    %v80 = vsel %vm66, %v78, 0.0
    %81 = vadd.xlane.f32.xlu0 %v80
    %v82 = vpop.xlane.xlu0 %81
    %v83 = vsel %vm66, %v79, 0.0
    %84 = vadd.xlane.f32.xlu0 %v83
    %v85 = vpop.xlane.xlu0 %84
    %v86 = vmul.f32 %v82, %v73
    %v87 = vmul.f32 %v85, %v73
    %v88 = vadd.f32 %v86, 1e-12
    %v89 = vadd.f32 %v87, 1e-12
    %v90 = vrsqrt.pop %v88
    %v91 = vrsqrt.pop %v89
    %v92 = vmul.f32 %v76, %v90
    %v93 = vmul.f32 %v77, %v91
    %v95 = vlaneseq
    %v96 = vshrl.u32 %v95, 7
    %v97 = vsub.s32 0, %v96
    %v98 = vrot.slane %v64, %v97
    %v100 = vmul.f32 %v92, %v98
    %v101 = vmul.f32 %v93, %v98
    %v103 = vlaneseq
    %v104 = vshrl.u32 %v103, 7
    %v105 = vsub.s32 0, %v104
    %v106 = vrot.slane %v65, %v105
    %v108 = vadd.f32 %v100, %v106
    %v109 = vadd.f32 %v101, %v106
    %v110 = vld [vmem:[%s4] sm:$0xff]
    %v111 = vld [vmem:[%s4 + $0x8] sm:$0xff]
    %v112 = vld [vmem:[%s4 + $0x10] sm:$0xff]
    %v113 = vld [vmem:[%s4 + $0x18] sm:$0xff]
    %v114 = vld [vmem:[%s5] sm:$0x1]
    %v116 = vlaneseq
    %v117 = vshrl.u32 %v116, 7
    %v118 = vsub.s32 0, %v117
    %v119 = vrot.slane %v114, %v118
    %v122 = vsel %vm66, %v108, 0
    %v125 = vsel %vm66, %v109, 0
    %127 = vmatprep.subr.mxu0 0.0
    %128 = vmatpush1.msra.mxu0 %v110
    %129 = vmatprep.subr.mxu0 0.0
    %130 = vmatpush1.msra.mxu0 %v111
    %131 = vmatprep.subr.mxu0 0.0
    %132 = vmatpush1.msra.mxu0 %v112
    %133 = vmatprep.subr.mxu0 0.0
    %134 = vmatpush1.msra.mxu0 %v113
    %135 = vmatprep.subr.mxu0 0.0
    %136 = vmatpush1.msra.mxu0 0.0
    %137 = vmatprep.subr.mxu0 0.0
    %138 = vmatpush1.msra.mxu0 0.0
    %139 = vmatprep.subr.mxu0 0.0
    %140 = vmatpush1.msra.mxu0 0.0
    %141 = vmatprep.subr.mxu0 0.0
    %142 = vmatpush1.msra.mxu0 0.0
    %143 = vmatprep.subr.mxu0 0.0
    %144 = vmatpush1.msra.mxu0 0.0
    %145 = vmatprep.subr.mxu0 0.0
    %146 = vmatpush1.msra.mxu0 0.0
    %147 = vmatprep.subr.mxu0 0.0
    %148 = vmatpush1.msra.mxu0 0.0
    %149 = vmatprep.subr.mxu0 0.0
    %150 = vmatpush1.msra.mxu0 0.0
    %151 = vmatprep.subr.mxu0 0.0
    %152 = vmatpush1.msra.mxu0 0.0
    %153 = vmatprep.subr.mxu0 0.0
    %154 = vmatpush1.msra.mxu0 0.0
    %155 = vmatprep.subr.mxu0 0.0
    %156 = vmatpush1.msra.mxu0 0.0
    %157 = vmatprep.subr.mxu0 0.0
    %158 = vmatpush1.msra.mxu0 0.0
    %159 = vmatprep.subr.mxu0 0.0
    %160 = vmatpush1.msra.mxu0 0.0
    %161 = vmatprep.subr.mxu0 0.0
    %162 = vmatpush1.msra.mxu0 0.0
    %163 = vmatprep.subr.mxu0 0.0
    %164 = vmatpush1.msra.mxu0 0.0
    %165 = vmatprep.subr.mxu0 0.0
    %166 = vmatpush1.msra.mxu0 0.0
    %167 = vmatprep.subr.mxu0 0.0
    %168 = vmatpush1.msra.mxu0 0.0
    %169 = vmatprep.subr.mxu0 0.0
    %170 = vmatpush1.msra.mxu0 0.0
    %171 = vmatprep.subr.mxu0 0.0
    %172 = vmatpush1.msra.mxu0 0.0
    %173 = vmatprep.subr.mxu0 0.0
    %174 = vmatpush1.msra.mxu0 0.0
    %175 = vmatprep.subr.mxu0 0.0
    %176 = vmatpush1.msra.mxu0 0.0
    %177 = vmatprep.subr.mxu0 0.0
    %178 = vmatpush1.msra.mxu0 0.0
    %179 = vmatprep.subr.mxu0 0.0
    %180 = vmatpush1.msra.mxu0 0.0
    %181 = vmatprep.subr.mxu0 0.0
    %182 = vmatpush1.msra.mxu0 0.0
    %183 = vmatprep.subr.mxu0 0.0
    %184 = vmatpush1.msra.mxu0 0.0
    %185 = vmatprep.subr.mxu0 0.0
    %186 = vmatpush1.msra.mxu0 0.0
    %187 = vmatprep.subr.mxu0 0.0
    %188 = vmatpush1.msra.mxu0 0.0
    %189 = vmatprep.subr.mxu0 0.0
    %190 = vmatpush1.msra.mxu0 0.0
    %191 = vmatprep.mubr.f32.mxu0 0.0
    %192 = vmatmul.mubr.f32.gmra.mrb[0].mxu0 %v122
    %v193 = vpop.f32.mrb[0].mxu0
    %v194 = vadd.f32 %v119, %v193
    %v195 = vpop.f32.mrb[0].mxu0
    %196 = vmatprep.mubr.f32.mxu0 0.0
    %197 = vmatmul.mubr.f32.gmra.mrb[0].mxu0 %v125
    %v198 = vpop.f32.mrb[0].mxu0
    %v199 = vadd.f32 %v119, %v198
    %v200 = vpop.f32.mrb[0].mxu0
    %201 = vdwg.mxu0
    %204 = vrot.lane.b32.xlu0 %v194, 96
    %v205 = vpop.permute.xlu0 %204
    %206 = vrot.lane.b32.xlu0 %v199, 96
    %v207 = vpop.permute.xlu0 %206
    %vm208 = vcmask 64512
    %v209 = vsel %vm208, %v194, 0
    %v211 = vsel %vm208, %v199, 0
    %v213 = vsel %vm208, %v205, 0
    %v215 = vsel %vm208, %v207, 0
    %217 = vmatprep.subr.mxu0 0.0
    %218 = vmatpush1.xpose.msra.mxu0 %v213
    %219 = vmatprep.subr.mxu0 0.0
    %220 = vmatpush1.xpose.msra.mxu0 %v215
    %221 = vmatprep.subr.mxu0 0.0
    %222 = vmatpush1.xpose.msra.mxu0 0.0
    %223 = vmatprep.subr.mxu0 0.0
    %224 = vmatpush1.xpose.msra.mxu0 0.0
    %225 = vmatprep.subr.mxu0 0.0
    %226 = vmatpush1.xpose.msra.mxu0 0.0
    %227 = vmatprep.subr.mxu0 0.0
    %228 = vmatpush1.xpose.msra.mxu0 0.0
    %229 = vmatprep.subr.mxu0 0.0
    %230 = vmatpush1.xpose.msra.mxu0 0.0
    %231 = vmatprep.subr.mxu0 0.0
    %232 = vmatpush1.xpose.msra.mxu0 0.0
    %233 = vmatprep.subr.mxu0 0.0
    %234 = vmatpush1.xpose.msra.mxu0 0.0
    %235 = vmatprep.subr.mxu0 0.0
    %236 = vmatpush1.xpose.msra.mxu0 0.0
    %237 = vmatprep.subr.mxu0 0.0
    %238 = vmatpush1.xpose.msra.mxu0 0.0
    %239 = vmatprep.subr.mxu0 0.0
    %240 = vmatpush1.xpose.msra.mxu0 0.0
    %241 = vmatprep.subr.mxu0 0.0
    %242 = vmatpush1.xpose.msra.mxu0 0.0
    %243 = vmatprep.subr.mxu0 0.0
    %244 = vmatpush1.xpose.msra.mxu0 0.0
    %245 = vmatprep.subr.mxu0 0.0
    %246 = vmatpush1.xpose.msra.mxu0 0.0
    %247 = vmatprep.subr.mxu0 0.0
    %248 = vmatpush1.xpose.msra.mxu0 0.0
    %249 = vmatprep.subr.mxu0 0.0
    %250 = vmatpush1.xpose.msra.mxu0 0.0
    %251 = vmatprep.subr.mxu0 0.0
    %252 = vmatpush1.xpose.msra.mxu0 0.0
    %253 = vmatprep.subr.mxu0 0.0
    %254 = vmatpush1.xpose.msra.mxu0 0.0
    %255 = vmatprep.subr.mxu0 0.0
    %256 = vmatpush1.xpose.msra.mxu0 0.0
    %257 = vmatprep.subr.mxu0 0.0
    %258 = vmatpush1.xpose.msra.mxu0 0.0
    %259 = vmatprep.subr.mxu0 0.0
    %260 = vmatpush1.xpose.msra.mxu0 0.0
    %261 = vmatprep.subr.mxu0 0.0
    %262 = vmatpush1.xpose.msra.mxu0 0.0
    %263 = vmatprep.subr.mxu0 0.0
    %264 = vmatpush1.xpose.msra.mxu0 0.0
    %265 = vmatprep.subr.mxu0 0.0
    %266 = vmatpush1.xpose.msra.mxu0 0.0
    %267 = vmatprep.subr.mxu0 0.0
    %268 = vmatpush1.xpose.msra.mxu0 0.0
    %269 = vmatprep.subr.mxu0 0.0
    %270 = vmatpush1.xpose.msra.mxu0 0.0
    %271 = vmatprep.subr.mxu0 0.0
    %272 = vmatpush1.xpose.msra.mxu0 0.0
    %273 = vmatprep.subr.mxu0 0.0
    %274 = vmatpush1.xpose.msra.mxu0 0.0
    %275 = vmatprep.subr.mxu0 0.0
    %276 = vmatpush1.xpose.msra.mxu0 0.0
    %277 = vmatprep.subr.mxu0 0.0
    %278 = vmatpush1.xpose.msra.mxu0 0.0
    %279 = vmatprep.subr.mxu0 0.0
    %280 = vmatpush1.xpose.msra.mxu0 0.0
    %281 = vmatprep.mubr.f32.mxu0 0.0
    %282 = vmatmul.mubr.f32.gmra.mrb[0].mxu0 %v209
    %v283 = vpop.f32.mrb[0].mxu0
    %v284 = vadd.f32 0.0, %v283
    %v285 = vpop.f32.mrb[0].mxu0
    %286 = vmatprep.mubr.f32.mxu0 0.0
    %287 = vmatmul.mubr.f32.gmra.mrb[0].mxu0 %v211
    %v288 = vpop.f32.mrb[0].mxu0
    %v289 = vadd.f32 0.0, %v288
    %v290 = vpop.f32.mrb[0].mxu0
    %291 = vdwg.mxu0
    %v292 = vmul.f32 %v284, 0.35355338
    %v293 = vmul.f32 %v289, 0.35355338
    %v294 = vadd.f32 %v292, %v60
    %v295 = vadd.f32 %v293, %v61
    %vm296 = vcmask 130048
    %v297 = vsel %vm296, %v294, -inf
    %298 = vmax.xlane.f32.xlu0 %v297
    %v299 = vpop.xlane.xlu0 %298
    %v300 = vsel %vm296, %v295, -inf
    %301 = vmax.xlane.f32.xlu0 %v300
    %v302 = vpop.xlane.xlu0 %301
    %v303 = vsub.f32 %v294, %v299
    %v304 = vsub.f32 %v295, %v302
    %v305 = vmul.f32 %v303, 1.442695
    %v306 = vpow.pop %v305
    %v307 = vmul.f32 %v304, 1.442695
    %v308 = vpow.pop %v307
    %v309 = vsel %vm296, %v306, 0.0
    %310 = vadd.xlane.f32.xlu0 %v309
    %v311 = vpop.xlane.xlu0 %310
    %v312 = vsel %vm296, %v308, 0.0
    %313 = vadd.xlane.f32.xlu0 %v312
    %v314 = vpop.xlane.xlu0 %313
    %v315 = vrcp.pop %v311
    %v316 = vrcp.pop %v314
    %v317 = vmul.f32 %v306, %v315
    %v318 = vmul.f32 %v308, %v316
    %319 = vrot.lane.b32.xlu0 %v194, 64
    %v320 = vpop.permute.xlu0 %319
    %321 = vrot.lane.b32.xlu0 %v199, 64
    %v322 = vpop.permute.xlu0 %321
    %v326 = vsel %vm296, %v317, 0
    %v329 = vsel %vm296, %v318, 0
    %331 = vmatprep.subr.mxu0 0.0
    %332 = vmatpush1.msra.mxu0 %v320
    %333 = vmatprep.subr.mxu0 0.0
    %334 = vmatpush1.msra.mxu0 %v322
    %335 = vmatprep.subr.mxu0 0.0
    %336 = vmatpush1.msra.mxu0 0.0
    %337 = vmatprep.subr.mxu0 0.0
    %338 = vmatpush1.msra.mxu0 0.0
    %339 = vmatprep.subr.mxu0 0.0
    %340 = vmatpush1.msra.mxu0 0.0
    %341 = vmatprep.subr.mxu0 0.0
    %342 = vmatpush1.msra.mxu0 0.0
    %343 = vmatprep.subr.mxu0 0.0
    %344 = vmatpush1.msra.mxu0 0.0
    %345 = vmatprep.subr.mxu0 0.0
    %346 = vmatpush1.msra.mxu0 0.0
    %347 = vmatprep.subr.mxu0 0.0
    %348 = vmatpush1.msra.mxu0 0.0
    %349 = vmatprep.subr.mxu0 0.0
    %350 = vmatpush1.msra.mxu0 0.0
    %351 = vmatprep.subr.mxu0 0.0
    %352 = vmatpush1.msra.mxu0 0.0
    %353 = vmatprep.subr.mxu0 0.0
    %354 = vmatpush1.msra.mxu0 0.0
    %355 = vmatprep.subr.mxu0 0.0
    %356 = vmatpush1.msra.mxu0 0.0
    %357 = vmatprep.subr.mxu0 0.0
    %358 = vmatpush1.msra.mxu0 0.0
    %359 = vmatprep.subr.mxu0 0.0
    %360 = vmatpush1.msra.mxu0 0.0
    %361 = vmatprep.subr.mxu0 0.0
    %362 = vmatpush1.msra.mxu0 0.0
    %363 = vmatprep.subr.mxu0 0.0
    %364 = vmatpush1.msra.mxu0 0.0
    %365 = vmatprep.subr.mxu0 0.0
    %366 = vmatpush1.msra.mxu0 0.0
    %367 = vmatprep.subr.mxu0 0.0
    %368 = vmatpush1.msra.mxu0 0.0
    %369 = vmatprep.subr.mxu0 0.0
    %370 = vmatpush1.msra.mxu0 0.0
    %371 = vmatprep.subr.mxu0 0.0
    %372 = vmatpush1.msra.mxu0 0.0
    %373 = vmatprep.subr.mxu0 0.0
    %374 = vmatpush1.msra.mxu0 0.0
    %375 = vmatprep.subr.mxu0 0.0
    %376 = vmatpush1.msra.mxu0 0.0
    %377 = vmatprep.subr.mxu0 0.0
    %378 = vmatpush1.msra.mxu0 0.0
    %379 = vmatprep.subr.mxu0 0.0
    %380 = vmatpush1.msra.mxu0 0.0
    %381 = vmatprep.subr.mxu0 0.0
    %382 = vmatpush1.msra.mxu0 0.0
    %383 = vmatprep.subr.mxu0 0.0
    %384 = vmatpush1.msra.mxu0 0.0
    %385 = vmatprep.subr.mxu0 0.0
    %386 = vmatpush1.msra.mxu0 0.0
    %387 = vmatprep.subr.mxu0 0.0
    %388 = vmatpush1.msra.mxu0 0.0
    %389 = vmatprep.subr.mxu0 0.0
    %390 = vmatpush1.msra.mxu0 0.0
    %391 = vmatprep.subr.mxu0 0.0
    %392 = vmatpush1.msra.mxu0 0.0
    %393 = vmatprep.subr.mxu0 0.0
    %394 = vmatpush1.msra.mxu0 0.0
    %395 = vmatprep.mubr.f32.mxu0 0.0
    %396 = vmatmul.mubr.f32.gmra.mrb[0].mxu0 %v326
    %v397 = vpop.f32.mrb[0].mxu0
    %v398 = vadd.f32 0.0, %v397
    %v399 = vpop.f32.mrb[0].mxu0
    %400 = vmatprep.mubr.f32.mxu0 0.0
    %401 = vmatmul.mubr.f32.gmra.mrb[0].mxu0 %v329
    %v402 = vpop.f32.mrb[0].mxu0
    %v403 = vadd.f32 0.0, %v402
    %v404 = vpop.f32.mrb[0].mxu0
    %405 = vdwg.mxu0
    %406 = vst.msk [vmem:[#allocation2] sm:$0xff] %vm208, %v398
    %407 = vst.msk [vmem:[#allocation2 + $0x8] sm:$0xff] %vm208, %v403
    %408 = vrot.lane.b32.xlu0 %v194, 120
    %v409 = vpop.permute.xlu0 %408
    %410 = vrot.lane.b32.xlu0 %v199, 120
    %v411 = vpop.permute.xlu0 %410
    %412 = vrot.lane.b32.xlu0 %v194, 88
    %v413 = vpop.permute.xlu0 %412
    %414 = vrot.lane.b32.xlu0 %v199, 88
    %v415 = vpop.permute.xlu0 %414
    %v416 = vsel %vm208, %v409, 0
    %v418 = vsel %vm208, %v411, 0
    %v420 = vsel %vm208, %v413, 0
    %v422 = vsel %vm208, %v415, 0
    %424 = vmatprep.subr.mxu0 0.0
    %425 = vmatpush1.xpose.msra.mxu0 %v420
    %426 = vmatprep.subr.mxu0 0.0
    %427 = vmatpush1.xpose.msra.mxu0 %v422
    %428 = vmatprep.subr.mxu0 0.0
    %429 = vmatpush1.xpose.msra.mxu0 0.0
    %430 = vmatprep.subr.mxu0 0.0
    %431 = vmatpush1.xpose.msra.mxu0 0.0
    %432 = vmatprep.subr.mxu0 0.0
    %433 = vmatpush1.xpose.msra.mxu0 0.0
    %434 = vmatprep.subr.mxu0 0.0
    %435 = vmatpush1.xpose.msra.mxu0 0.0
    %436 = vmatprep.subr.mxu0 0.0
    %437 = vmatpush1.xpose.msra.mxu0 0.0
    %438 = vmatprep.subr.mxu0 0.0
    %439 = vmatpush1.xpose.msra.mxu0 0.0
    %440 = vmatprep.subr.mxu0 0.0
    %441 = vmatpush1.xpose.msra.mxu0 0.0
    %442 = vmatprep.subr.mxu0 0.0
    %443 = vmatpush1.xpose.msra.mxu0 0.0
    %444 = vmatprep.subr.mxu0 0.0
    %445 = vmatpush1.xpose.msra.mxu0 0.0
    %446 = vmatprep.subr.mxu0 0.0
    %447 = vmatpush1.xpose.msra.mxu0 0.0
    %448 = vmatprep.subr.mxu0 0.0
    %449 = vmatpush1.xpose.msra.mxu0 0.0
    %450 = vmatprep.subr.mxu0 0.0
    %451 = vmatpush1.xpose.msra.mxu0 0.0
    %452 = vmatprep.subr.mxu0 0.0
    %453 = vmatpush1.xpose.msra.mxu0 0.0
    %454 = vmatprep.subr.mxu0 0.0
    %455 = vmatpush1.xpose.msra.mxu0 0.0
    %456 = vmatprep.subr.mxu0 0.0
    %457 = vmatpush1.xpose.msra.mxu0 0.0
    %458 = vmatprep.subr.mxu0 0.0
    %459 = vmatpush1.xpose.msra.mxu0 0.0
    %460 = vmatprep.subr.mxu0 0.0
    %461 = vmatpush1.xpose.msra.mxu0 0.0
    %462 = vmatprep.subr.mxu0 0.0
    %463 = vmatpush1.xpose.msra.mxu0 0.0
    %464 = vmatprep.subr.mxu0 0.0
    %465 = vmatpush1.xpose.msra.mxu0 0.0
    %466 = vmatprep.subr.mxu0 0.0
    %467 = vmatpush1.xpose.msra.mxu0 0.0
    %468 = vmatprep.subr.mxu0 0.0
    %469 = vmatpush1.xpose.msra.mxu0 0.0
    %470 = vmatprep.subr.mxu0 0.0
    %471 = vmatpush1.xpose.msra.mxu0 0.0
    %472 = vmatprep.subr.mxu0 0.0
    %473 = vmatpush1.xpose.msra.mxu0 0.0
    %474 = vmatprep.subr.mxu0 0.0
    %475 = vmatpush1.xpose.msra.mxu0 0.0
    %476 = vmatprep.subr.mxu0 0.0
    %477 = vmatpush1.xpose.msra.mxu0 0.0
    %478 = vmatprep.subr.mxu0 0.0
    %479 = vmatpush1.xpose.msra.mxu0 0.0
    %480 = vmatprep.subr.mxu0 0.0
    %481 = vmatpush1.xpose.msra.mxu0 0.0
    %482 = vmatprep.subr.mxu0 0.0
    %483 = vmatpush1.xpose.msra.mxu0 0.0
    %484 = vmatprep.subr.mxu0 0.0
    %485 = vmatpush1.xpose.msra.mxu0 0.0
    %486 = vmatprep.subr.mxu0 0.0
    %487 = vmatpush1.xpose.msra.mxu0 0.0
    %488 = vmatprep.mubr.f32.mxu0 0.0
    %489 = vmatmul.mubr.f32.gmra.mrb[0].mxu0 %v416
    %v490 = vpop.f32.mrb[0].mxu0
    %v491 = vadd.f32 0.0, %v490
    %v492 = vpop.f32.mrb[0].mxu0
    %493 = vmatprep.mubr.f32.mxu0 0.0
    %494 = vmatmul.mubr.f32.gmra.mrb[0].mxu0 %v418
    %v495 = vpop.f32.mrb[0].mxu0
    %v496 = vadd.f32 0.0, %v495
    %v497 = vpop.f32.mrb[0].mxu0
    %498 = vdwg.mxu0
    %v499 = vmul.f32 %v491, 0.35355338
    %v500 = vmul.f32 %v496, 0.35355338
    %v501 = vadd.f32 %v499, %v60
    %v502 = vadd.f32 %v500, %v61
    %v503 = vsel %vm296, %v501, -inf
    %504 = vmax.xlane.f32.xlu0 %v503
    %v505 = vpop.xlane.xlu0 %504
    %v506 = vsel %vm296, %v502, -inf
    %507 = vmax.xlane.f32.xlu0 %v506
    %v508 = vpop.xlane.xlu0 %507
    %v509 = vsub.f32 %v501, %v505
    %v510 = vsub.f32 %v502, %v508
    %v511 = vmul.f32 %v509, 1.442695
    %v512 = vpow.pop %v511
    %v513 = vmul.f32 %v510, 1.442695
    %v514 = vpow.pop %v513
    %v515 = vsel %vm296, %v512, 0.0
    %516 = vadd.xlane.f32.xlu0 %v515
    %v517 = vpop.xlane.xlu0 %516
    %v518 = vsel %vm296, %v514, 0.0
    %519 = vadd.xlane.f32.xlu0 %v518
    %v520 = vpop.xlane.xlu0 %519
    %v521 = vrcp.pop %v517
    %v522 = vrcp.pop %v520
    %v523 = vmul.f32 %v512, %v521
    %v524 = vmul.f32 %v514, %v522
    %525 = vrot.lane.b32.xlu0 %v194, 56
    %v526 = vpop.permute.xlu0 %525
    %527 = vrot.lane.b32.xlu0 %v199, 56
    %v528 = vpop.permute.xlu0 %527
    %v532 = vsel %vm296, %v523, 0
    %v535 = vsel %vm296, %v524, 0
    %537 = vmatprep.subr.mxu0 0.0
    %538 = vmatpush1.msra.mxu0 %v526
    %539 = vmatprep.subr.mxu0 0.0
    %540 = vmatpush1.msra.mxu0 %v528
    %541 = vmatprep.subr.mxu0 0.0
    %542 = vmatpush1.msra.mxu0 0.0
    %543 = vmatprep.subr.mxu0 0.0
    %544 = vmatpush1.msra.mxu0 0.0
    %545 = vmatprep.subr.mxu0 0.0
    %546 = vmatpush1.msra.mxu0 0.0
    %547 = vmatprep.subr.mxu0 0.0
    %548 = vmatpush1.msra.mxu0 0.0
    %549 = vmatprep.subr.mxu0 0.0
    %550 = vmatpush1.msra.mxu0 0.0
    %551 = vmatprep.subr.mxu0 0.0
    %552 = vmatpush1.msra.mxu0 0.0
    %553 = vmatprep.subr.mxu0 0.0
    %554 = vmatpush1.msra.mxu0 0.0
    %555 = vmatprep.subr.mxu0 0.0
    %556 = vmatpush1.msra.mxu0 0.0
    %557 = vmatprep.subr.mxu0 0.0
    %558 = vmatpush1.msra.mxu0 0.0
    %559 = vmatprep.subr.mxu0 0.0
    %560 = vmatpush1.msra.mxu0 0.0
    %561 = vmatprep.subr.mxu0 0.0
    %562 = vmatpush1.msra.mxu0 0.0
    %563 = vmatprep.subr.mxu0 0.0
    %564 = vmatpush1.msra.mxu0 0.0
    %565 = vmatprep.subr.mxu0 0.0
    %566 = vmatpush1.msra.mxu0 0.0
    %567 = vmatprep.subr.mxu0 0.0
    %568 = vmatpush1.msra.mxu0 0.0
    %569 = vmatprep.subr.mxu0 0.0
    %570 = vmatpush1.msra.mxu0 0.0
    %571 = vmatprep.subr.mxu0 0.0
    %572 = vmatpush1.msra.mxu0 0.0
    %573 = vmatprep.subr.mxu0 0.0
    %574 = vmatpush1.msra.mxu0 0.0
    %575 = vmatprep.subr.mxu0 0.0
    %576 = vmatpush1.msra.mxu0 0.0
    %577 = vmatprep.subr.mxu0 0.0
    %578 = vmatpush1.msra.mxu0 0.0
    %579 = vmatprep.subr.mxu0 0.0
    %580 = vmatpush1.msra.mxu0 0.0
    %581 = vmatprep.subr.mxu0 0.0
    %582 = vmatpush1.msra.mxu0 0.0
    %583 = vmatprep.subr.mxu0 0.0
    %584 = vmatpush1.msra.mxu0 0.0
    %585 = vmatprep.subr.mxu0 0.0
    %586 = vmatpush1.msra.mxu0 0.0
    %587 = vmatprep.subr.mxu0 0.0
    %588 = vmatpush1.msra.mxu0 0.0
    %589 = vmatprep.subr.mxu0 0.0
    %590 = vmatpush1.msra.mxu0 0.0
    %591 = vmatprep.subr.mxu0 0.0
    %592 = vmatpush1.msra.mxu0 0.0
    %593 = vmatprep.subr.mxu0 0.0
    %594 = vmatpush1.msra.mxu0 0.0
    %595 = vmatprep.subr.mxu0 0.0
    %596 = vmatpush1.msra.mxu0 0.0
    %597 = vmatprep.subr.mxu0 0.0
    %598 = vmatpush1.msra.mxu0 0.0
    %599 = vmatprep.subr.mxu0 0.0
    %600 = vmatpush1.msra.mxu0 0.0
    %601 = vmatprep.mubr.f32.mxu0 0.0
    %602 = vmatmul.mubr.f32.gmra.mrb[0].mxu0 %v532
    %v603 = vpop.f32.mrb[0].mxu0
    %v604 = vadd.f32 0.0, %v603
    %v605 = vpop.f32.mrb[0].mxu0
    %606 = vmatprep.mubr.f32.mxu0 0.0
    %607 = vmatmul.mubr.f32.gmra.mrb[0].mxu0 %v535
    %v608 = vpop.f32.mrb[0].mxu0
    %v609 = vadd.f32 0.0, %v608
    %v610 = vpop.f32.mrb[0].mxu0
    %611 = vdwg.mxu0
    %614 = vrot.lane.b32.xlu0 %v604, 8
    %v615 = vpop.permute.xlu0 %614
    %616 = vrot.lane.b32.xlu0 %v609, 8
    %v617 = vpop.permute.xlu0 %616
    %vm620 = vcmask 130112
    %621 = vst.msk [vmem:[#allocation2] sm:$0xff] %vm620, %v615
    %622 = vst.msk [vmem:[#allocation2 + $0x8] sm:$0xff] %vm620, %v617
    %623 = vrot.lane.b32.xlu0 %v194, 112
    %v624 = vpop.permute.xlu0 %623
    %625 = vrot.lane.b32.xlu0 %v199, 112
    %v626 = vpop.permute.xlu0 %625
    %627 = vrot.lane.b32.xlu0 %v194, 80
    %v628 = vpop.permute.xlu0 %627
    %629 = vrot.lane.b32.xlu0 %v199, 80
    %v630 = vpop.permute.xlu0 %629
    %v631 = vsel %vm208, %v624, 0
    %v633 = vsel %vm208, %v626, 0
    %v635 = vsel %vm208, %v628, 0
    %v637 = vsel %vm208, %v630, 0
    %639 = vmatprep.subr.mxu0 0.0
    %640 = vmatpush1.xpose.msra.mxu0 %v635
    %641 = vmatprep.subr.mxu0 0.0
    %642 = vmatpush1.xpose.msra.mxu0 %v637
    %643 = vmatprep.subr.mxu0 0.0
    %644 = vmatpush1.xpose.msra.mxu0 0.0
    %645 = vmatprep.subr.mxu0 0.0
    %646 = vmatpush1.xpose.msra.mxu0 0.0
    %647 = vmatprep.subr.mxu0 0.0
    %648 = vmatpush1.xpose.msra.mxu0 0.0
    %649 = vmatprep.subr.mxu0 0.0
    %650 = vmatpush1.xpose.msra.mxu0 0.0
    %651 = vmatprep.subr.mxu0 0.0
    %652 = vmatpush1.xpose.msra.mxu0 0.0
    %653 = vmatprep.subr.mxu0 0.0
    %654 = vmatpush1.xpose.msra.mxu0 0.0
    %655 = vmatprep.subr.mxu0 0.0
    %656 = vmatpush1.xpose.msra.mxu0 0.0
    %657 = vmatprep.subr.mxu0 0.0
    %658 = vmatpush1.xpose.msra.mxu0 0.0
    %659 = vmatprep.subr.mxu0 0.0
    %660 = vmatpush1.xpose.msra.mxu0 0.0
    %661 = vmatprep.subr.mxu0 0.0
    %662 = vmatpush1.xpose.msra.mxu0 0.0
    %663 = vmatprep.subr.mxu0 0.0
    %664 = vmatpush1.xpose.msra.mxu0 0.0
    %665 = vmatprep.subr.mxu0 0.0
    %666 = vmatpush1.xpose.msra.mxu0 0.0
    %667 = vmatprep.subr.mxu0 0.0
    %668 = vmatpush1.xpose.msra.mxu0 0.0
    %669 = vmatprep.subr.mxu0 0.0
    %670 = vmatpush1.xpose.msra.mxu0 0.0
    %671 = vmatprep.subr.mxu0 0.0
    %672 = vmatpush1.xpose.msra.mxu0 0.0
    %673 = vmatprep.subr.mxu0 0.0
    %674 = vmatpush1.xpose.msra.mxu0 0.0
    %675 = vmatprep.subr.mxu0 0.0
    %676 = vmatpush1.xpose.msra.mxu0 0.0
    %677 = vmatprep.subr.mxu0 0.0
    %678 = vmatpush1.xpose.msra.mxu0 0.0
    %679 = vmatprep.subr.mxu0 0.0
    %680 = vmatpush1.xpose.msra.mxu0 0.0
    %681 = vmatprep.subr.mxu0 0.0
    %682 = vmatpush1.xpose.msra.mxu0 0.0
    %683 = vmatprep.subr.mxu0 0.0
    %684 = vmatpush1.xpose.msra.mxu0 0.0
    %685 = vmatprep.subr.mxu0 0.0
    %686 = vmatpush1.xpose.msra.mxu0 0.0
    %687 = vmatprep.subr.mxu0 0.0
    %688 = vmatpush1.xpose.msra.mxu0 0.0
    %689 = vmatprep.subr.mxu0 0.0
    %690 = vmatpush1.xpose.msra.mxu0 0.0
    %691 = vmatprep.subr.mxu0 0.0
    %692 = vmatpush1.xpose.msra.mxu0 0.0
    %693 = vmatprep.subr.mxu0 0.0
    %694 = vmatpush1.xpose.msra.mxu0 0.0
    %695 = vmatprep.subr.mxu0 0.0
    %696 = vmatpush1.xpose.msra.mxu0 0.0
    %697 = vmatprep.subr.mxu0 0.0
    %698 = vmatpush1.xpose.msra.mxu0 0.0
    %699 = vmatprep.subr.mxu0 0.0
    %700 = vmatpush1.xpose.msra.mxu0 0.0
    %701 = vmatprep.subr.mxu0 0.0
    %702 = vmatpush1.xpose.msra.mxu0 0.0
    %703 = vmatprep.mubr.f32.mxu0 0.0
    %704 = vmatmul.mubr.f32.gmra.mrb[0].mxu0 %v631
    %v705 = vpop.f32.mrb[0].mxu0
    %v706 = vadd.f32 0.0, %v705
    %v707 = vpop.f32.mrb[0].mxu0
    %708 = vmatprep.mubr.f32.mxu0 0.0
    %709 = vmatmul.mubr.f32.gmra.mrb[0].mxu0 %v633
    %v710 = vpop.f32.mrb[0].mxu0
    %v711 = vadd.f32 0.0, %v710
    %v712 = vpop.f32.mrb[0].mxu0
    %713 = vdwg.mxu0
    %v714 = vmul.f32 %v706, 0.35355338
    %v715 = vmul.f32 %v711, 0.35355338
    %v716 = vadd.f32 %v714, %v60
    %v717 = vadd.f32 %v715, %v61
    %v718 = vsel %vm296, %v716, -inf
    %719 = vmax.xlane.f32.xlu0 %v718
    %v720 = vpop.xlane.xlu0 %719
    %v721 = vsel %vm296, %v717, -inf
    %722 = vmax.xlane.f32.xlu0 %v721
    %v723 = vpop.xlane.xlu0 %722
    %v724 = vsub.f32 %v716, %v720
    %v725 = vsub.f32 %v717, %v723
    %v726 = vmul.f32 %v724, 1.442695
    %v727 = vpow.pop %v726
    %v728 = vmul.f32 %v725, 1.442695
    %v729 = vpow.pop %v728
    %v730 = vsel %vm296, %v727, 0.0
    %731 = vadd.xlane.f32.xlu0 %v730
    %v732 = vpop.xlane.xlu0 %731
    %v733 = vsel %vm296, %v729, 0.0
    %734 = vadd.xlane.f32.xlu0 %v733
    %v735 = vpop.xlane.xlu0 %734
    %v736 = vrcp.pop %v732
    %v737 = vrcp.pop %v735
    %v738 = vmul.f32 %v727, %v736
    %v739 = vmul.f32 %v729, %v737
    %740 = vrot.lane.b32.xlu0 %v194, 48
    %v741 = vpop.permute.xlu0 %740
    %742 = vrot.lane.b32.xlu0 %v199, 48
    %v743 = vpop.permute.xlu0 %742
    %v747 = vsel %vm296, %v738, 0
    %v750 = vsel %vm296, %v739, 0
    %752 = vmatprep.subr.mxu0 0.0
    %753 = vmatpush1.msra.mxu0 %v741
    %754 = vmatprep.subr.mxu0 0.0
    %755 = vmatpush1.msra.mxu0 %v743
    %756 = vmatprep.subr.mxu0 0.0
    %757 = vmatpush1.msra.mxu0 0.0
    %758 = vmatprep.subr.mxu0 0.0
    %759 = vmatpush1.msra.mxu0 0.0
    %760 = vmatprep.subr.mxu0 0.0
    %761 = vmatpush1.msra.mxu0 0.0
    %762 = vmatprep.subr.mxu0 0.0
    %763 = vmatpush1.msra.mxu0 0.0
    %764 = vmatprep.subr.mxu0 0.0
    %765 = vmatpush1.msra.mxu0 0.0
    %766 = vmatprep.subr.mxu0 0.0
    %767 = vmatpush1.msra.mxu0 0.0
    %768 = vmatprep.subr.mxu0 0.0
    %769 = vmatpush1.msra.mxu0 0.0
    %770 = vmatprep.subr.mxu0 0.0
    %771 = vmatpush1.msra.mxu0 0.0
    %772 = vmatprep.subr.mxu0 0.0
    %773 = vmatpush1.msra.mxu0 0.0
    %774 = vmatprep.subr.mxu0 0.0
    %775 = vmatpush1.msra.mxu0 0.0
    %776 = vmatprep.subr.mxu0 0.0
    %777 = vmatpush1.msra.mxu0 0.0
    %778 = vmatprep.subr.mxu0 0.0
    %779 = vmatpush1.msra.mxu0 0.0
    %780 = vmatprep.subr.mxu0 0.0
    %781 = vmatpush1.msra.mxu0 0.0
    %782 = vmatprep.subr.mxu0 0.0
    %783 = vmatpush1.msra.mxu0 0.0
    %784 = vmatprep.subr.mxu0 0.0
    %785 = vmatpush1.msra.mxu0 0.0
    %786 = vmatprep.subr.mxu0 0.0
    %787 = vmatpush1.msra.mxu0 0.0
    %788 = vmatprep.subr.mxu0 0.0
    %789 = vmatpush1.msra.mxu0 0.0
    %790 = vmatprep.subr.mxu0 0.0
    %791 = vmatpush1.msra.mxu0 0.0
    %792 = vmatprep.subr.mxu0 0.0
    %793 = vmatpush1.msra.mxu0 0.0
    %794 = vmatprep.subr.mxu0 0.0
    %795 = vmatpush1.msra.mxu0 0.0
    %796 = vmatprep.subr.mxu0 0.0
    %797 = vmatpush1.msra.mxu0 0.0
    %798 = vmatprep.subr.mxu0 0.0
    %799 = vmatpush1.msra.mxu0 0.0
    %800 = vmatprep.subr.mxu0 0.0
    %801 = vmatpush1.msra.mxu0 0.0
    %802 = vmatprep.subr.mxu0 0.0
    %803 = vmatpush1.msra.mxu0 0.0
    %804 = vmatprep.subr.mxu0 0.0
    %805 = vmatpush1.msra.mxu0 0.0
    %806 = vmatprep.subr.mxu0 0.0
    %807 = vmatpush1.msra.mxu0 0.0
    %808 = vmatprep.subr.mxu0 0.0
    %809 = vmatpush1.msra.mxu0 0.0
    %810 = vmatprep.subr.mxu0 0.0
    %811 = vmatpush1.msra.mxu0 0.0
    %812 = vmatprep.subr.mxu0 0.0
    %813 = vmatpush1.msra.mxu0 0.0
    %814 = vmatprep.subr.mxu0 0.0
    %815 = vmatpush1.msra.mxu0 0.0
    %816 = vmatprep.mubr.f32.mxu0 0.0
    %817 = vmatmul.mubr.f32.gmra.mrb[0].mxu0 %v747
    %v818 = vpop.f32.mrb[0].mxu0
    %v819 = vadd.f32 0.0, %v818
    %v820 = vpop.f32.mrb[0].mxu0
    %821 = vmatprep.mubr.f32.mxu0 0.0
    %822 = vmatmul.mubr.f32.gmra.mrb[0].mxu0 %v750
    %v823 = vpop.f32.mrb[0].mxu0
    %v824 = vadd.f32 0.0, %v823
    %v825 = vpop.f32.mrb[0].mxu0
    %826 = vdwg.mxu0
    %829 = vrot.lane.b32.xlu0 %v819, 16
    %v830 = vpop.permute.xlu0 %829
    %831 = vrot.lane.b32.xlu0 %v824, 16
    %v832 = vpop.permute.xlu0 %831
    %vm835 = vcmask 195712
    %836 = vst.msk [vmem:[#allocation2] sm:$0xff] %vm835, %v830
    %837 = vst.msk [vmem:[#allocation2 + $0x8] sm:$0xff] %vm835, %v832
    %838 = vrot.lane.b32.xlu0 %v194, 104
    %v839 = vpop.permute.xlu0 %838
    %840 = vrot.lane.b32.xlu0 %v199, 104
    %v841 = vpop.permute.xlu0 %840
    %842 = vrot.lane.b32.xlu0 %v194, 72
    %v843 = vpop.permute.xlu0 %842
    %844 = vrot.lane.b32.xlu0 %v199, 72
    %v845 = vpop.permute.xlu0 %844
    %v846 = vsel %vm208, %v839, 0
    %v848 = vsel %vm208, %v841, 0
    %v850 = vsel %vm208, %v843, 0
    %v852 = vsel %vm208, %v845, 0
    %854 = vmatprep.subr.mxu0 0.0
    %855 = vmatpush1.xpose.msra.mxu0 %v850
    %856 = vmatprep.subr.mxu0 0.0
    %857 = vmatpush1.xpose.msra.mxu0 %v852
    %858 = vmatprep.subr.mxu0 0.0
    %859 = vmatpush1.xpose.msra.mxu0 0.0
    %860 = vmatprep.subr.mxu0 0.0
    %861 = vmatpush1.xpose.msra.mxu0 0.0
    %862 = vmatprep.subr.mxu0 0.0
    %863 = vmatpush1.xpose.msra.mxu0 0.0
    %864 = vmatprep.subr.mxu0 0.0
    %865 = vmatpush1.xpose.msra.mxu0 0.0
    %866 = vmatprep.subr.mxu0 0.0
    %867 = vmatpush1.xpose.msra.mxu0 0.0
    %868 = vmatprep.subr.mxu0 0.0
    %869 = vmatpush1.xpose.msra.mxu0 0.0
    %870 = vmatprep.subr.mxu0 0.0
    %871 = vmatpush1.xpose.msra.mxu0 0.0
    %872 = vmatprep.subr.mxu0 0.0
    %873 = vmatpush1.xpose.msra.mxu0 0.0
    %874 = vmatprep.subr.mxu0 0.0
    %875 = vmatpush1.xpose.msra.mxu0 0.0
    %876 = vmatprep.subr.mxu0 0.0
    %877 = vmatpush1.xpose.msra.mxu0 0.0
    %878 = vmatprep.subr.mxu0 0.0
    %879 = vmatpush1.xpose.msra.mxu0 0.0
    %880 = vmatprep.subr.mxu0 0.0
    %881 = vmatpush1.xpose.msra.mxu0 0.0
    %882 = vmatprep.subr.mxu0 0.0
    %883 = vmatpush1.xpose.msra.mxu0 0.0
    %884 = vmatprep.subr.mxu0 0.0
    %885 = vmatpush1.xpose.msra.mxu0 0.0
    %886 = vmatprep.subr.mxu0 0.0
    %887 = vmatpush1.xpose.msra.mxu0 0.0
    %888 = vmatprep.subr.mxu0 0.0
    %889 = vmatpush1.xpose.msra.mxu0 0.0
    %890 = vmatprep.subr.mxu0 0.0
    %891 = vmatpush1.xpose.msra.mxu0 0.0
    %892 = vmatprep.subr.mxu0 0.0
    %893 = vmatpush1.xpose.msra.mxu0 0.0
    %894 = vmatprep.subr.mxu0 0.0
    %895 = vmatpush1.xpose.msra.mxu0 0.0
    %896 = vmatprep.subr.mxu0 0.0
    %897 = vmatpush1.xpose.msra.mxu0 0.0
    %898 = vmatprep.subr.mxu0 0.0
    %899 = vmatpush1.xpose.msra.mxu0 0.0
    %900 = vmatprep.subr.mxu0 0.0
    %901 = vmatpush1.xpose.msra.mxu0 0.0
    %902 = vmatprep.subr.mxu0 0.0
    %903 = vmatpush1.xpose.msra.mxu0 0.0
    %904 = vmatprep.subr.mxu0 0.0
    %905 = vmatpush1.xpose.msra.mxu0 0.0
    %906 = vmatprep.subr.mxu0 0.0
    %907 = vmatpush1.xpose.msra.mxu0 0.0
    %908 = vmatprep.subr.mxu0 0.0
    %909 = vmatpush1.xpose.msra.mxu0 0.0
    %910 = vmatprep.subr.mxu0 0.0
    %911 = vmatpush1.xpose.msra.mxu0 0.0
    %912 = vmatprep.subr.mxu0 0.0
    %913 = vmatpush1.xpose.msra.mxu0 0.0
    %914 = vmatprep.subr.mxu0 0.0
    %915 = vmatpush1.xpose.msra.mxu0 0.0
    %916 = vmatprep.subr.mxu0 0.0
    %917 = vmatpush1.xpose.msra.mxu0 0.0
    %918 = vmatprep.mubr.f32.mxu0 0.0
    %919 = vmatmul.mubr.f32.gmra.mrb[0].mxu0 %v846
    %v920 = vpop.f32.mrb[0].mxu0
    %v921 = vadd.f32 0.0, %v920
    %v922 = vpop.f32.mrb[0].mxu0
    %923 = vmatprep.mubr.f32.mxu0 0.0
    %924 = vmatmul.mubr.f32.gmra.mrb[0].mxu0 %v848
    %v925 = vpop.f32.mrb[0].mxu0
    %v926 = vadd.f32 0.0, %v925
    %v927 = vpop.f32.mrb[0].mxu0
    %928 = vdwg.mxu0
    %v929 = vmul.f32 %v921, 0.35355338
    %v930 = vmul.f32 %v926, 0.35355338
    %v931 = vadd.f32 %v929, %v60
    %v932 = vadd.f32 %v930, %v61
    %v933 = vsel %vm296, %v931, -inf
    %934 = vmax.xlane.f32.xlu0 %v933
    %v935 = vpop.xlane.xlu0 %934
    %v936 = vsel %vm296, %v932, -inf
    %937 = vmax.xlane.f32.xlu0 %v936
    %v938 = vpop.xlane.xlu0 %937
    %v939 = vsub.f32 %v931, %v935
    %v940 = vsub.f32 %v932, %v938
    %v941 = vmul.f32 %v939, 1.442695
    %v942 = vpow.pop %v941
    %v943 = vmul.f32 %v940, 1.442695
    %v944 = vpow.pop %v943
    %v945 = vsel %vm296, %v942, 0.0
    %946 = vadd.xlane.f32.xlu0 %v945
    %v947 = vpop.xlane.xlu0 %946
    %v948 = vsel %vm296, %v944, 0.0
    %949 = vadd.xlane.f32.xlu0 %v948
    %v950 = vpop.xlane.xlu0 %949
    %v951 = vrcp.pop %v947
    %v952 = vrcp.pop %v950
    %v953 = vmul.f32 %v942, %v951
    %v954 = vmul.f32 %v944, %v952
    %955 = vrot.lane.b32.xlu0 %v194, 40
    %v956 = vpop.permute.xlu0 %955
    %957 = vrot.lane.b32.xlu0 %v199, 40
    %v958 = vpop.permute.xlu0 %957
    %v962 = vsel %vm296, %v953, 0
    %v965 = vsel %vm296, %v954, 0
    %967 = vmatprep.subr.mxu0 0.0
    %968 = vmatpush1.msra.mxu0 %v956
    %969 = vmatprep.subr.mxu0 0.0
    %970 = vmatpush1.msra.mxu0 %v958
    %971 = vmatprep.subr.mxu0 0.0
    %972 = vmatpush1.msra.mxu0 0.0
    %973 = vmatprep.subr.mxu0 0.0
    %974 = vmatpush1.msra.mxu0 0.0
    %975 = vmatprep.subr.mxu0 0.0
    %976 = vmatpush1.msra.mxu0 0.0
    %977 = vmatprep.subr.mxu0 0.0
    %978 = vmatpush1.msra.mxu0 0.0
    %979 = vmatprep.subr.mxu0 0.0
    %980 = vmatpush1.msra.mxu0 0.0
    %981 = vmatprep.subr.mxu0 0.0
    %982 = vmatpush1.msra.mxu0 0.0
    %983 = vmatprep.subr.mxu0 0.0
    %984 = vmatpush1.msra.mxu0 0.0
    %985 = vmatprep.subr.mxu0 0.0
    %986 = vmatpush1.msra.mxu0 0.0
    %987 = vmatprep.subr.mxu0 0.0
    %988 = vmatpush1.msra.mxu0 0.0
    %989 = vmatprep.subr.mxu0 0.0
    %990 = vmatpush1.msra.mxu0 0.0
    %991 = vmatprep.subr.mxu0 0.0
    %992 = vmatpush1.msra.mxu0 0.0
    %993 = vmatprep.subr.mxu0 0.0
    %994 = vmatpush1.msra.mxu0 0.0
    %995 = vmatprep.subr.mxu0 0.0
    %996 = vmatpush1.msra.mxu0 0.0
    %997 = vmatprep.subr.mxu0 0.0
    %998 = vmatpush1.msra.mxu0 0.0
    %999 = vmatprep.subr.mxu0 0.0
    %1000 = vmatpush1.msra.mxu0 0.0
    %1001 = vmatprep.subr.mxu0 0.0
    %1002 = vmatpush1.msra.mxu0 0.0
    %1003 = vmatprep.subr.mxu0 0.0
    %1004 = vmatpush1.msra.mxu0 0.0
    %1005 = vmatprep.subr.mxu0 0.0
    %1006 = vmatpush1.msra.mxu0 0.0
    %1007 = vmatprep.subr.mxu0 0.0
    %1008 = vmatpush1.msra.mxu0 0.0
    %1009 = vmatprep.subr.mxu0 0.0
    %1010 = vmatpush1.msra.mxu0 0.0
    %1011 = vmatprep.subr.mxu0 0.0
    %1012 = vmatpush1.msra.mxu0 0.0
    %1013 = vmatprep.subr.mxu0 0.0
    %1014 = vmatpush1.msra.mxu0 0.0
    %1015 = vmatprep.subr.mxu0 0.0
    %1016 = vmatpush1.msra.mxu0 0.0
    %1017 = vmatprep.subr.mxu0 0.0
    %1018 = vmatpush1.msra.mxu0 0.0
    %1019 = vmatprep.subr.mxu0 0.0
    %1020 = vmatpush1.msra.mxu0 0.0
    %1021 = vmatprep.subr.mxu0 0.0
    %1022 = vmatpush1.msra.mxu0 0.0
    %1023 = vmatprep.subr.mxu0 0.0
    %1024 = vmatpush1.msra.mxu0 0.0
    %1025 = vmatprep.subr.mxu0 0.0
    %1026 = vmatpush1.msra.mxu0 0.0
    %1027 = vmatprep.subr.mxu0 0.0
    %1028 = vmatpush1.msra.mxu0 0.0
    %1029 = vmatprep.subr.mxu0 0.0
    %1030 = vmatpush1.msra.mxu0 0.0
    %1031 = vmatprep.mubr.f32.mxu0 0.0
    %1032 = vmatmul.mubr.f32.gmra.mrb[0].mxu0 %v962
    %v1033 = vpop.f32.mrb[0].mxu0
    %v1034 = vadd.f32 0.0, %v1033
    %v1035 = vpop.f32.mrb[0].mxu0
    %1036 = vmatprep.mubr.f32.mxu0 0.0
    %1037 = vmatmul.mubr.f32.gmra.mrb[0].mxu0 %v965
    %v1038 = vpop.f32.mrb[0].mxu0
    %v1039 = vadd.f32 0.0, %v1038
    %v1040 = vpop.f32.mrb[0].mxu0
    %1041 = vdwg.mxu0
    %1044 = vrot.lane.b32.xlu0 %v1034, 24
    %v1045 = vpop.permute.xlu0 %1044
    %1046 = vrot.lane.b32.xlu0 %v1039, 24
    %v1047 = vpop.permute.xlu0 %1046
    %vm1050 = vcmask 261312
    %1051 = vst.msk [vmem:[#allocation2] sm:$0xff] %vm1050, %v1045
    %1052 = vst.msk [vmem:[#allocation2 + $0x8] sm:$0xff] %vm1050, %v1047
    %v1053 = vld [vmem:[#allocation2] sm:$0xff]
    %v1054 = vld [vmem:[#allocation2 + $0x8] sm:$0xff]
    %v1055 = vld [vmem:[%s6] sm:$0xff]
    %v1056 = vld [vmem:[%s6 + $0x8] sm:$0xff]
    %v1057 = vld [vmem:[%s6 + $0x10] sm:$0xff]
    %v1058 = vld [vmem:[%s6 + $0x18] sm:$0xff]
    %v1059 = vld [vmem:[%s7] sm:$0x1]
    %v1061 = vlaneseq
    %v1062 = vshrl.u32 %v1061, 7
    %v1063 = vsub.s32 0, %v1062
    %v1064 = vrot.slane %v1059, %v1063
    %v1067 = vsel %vm66, %v1053, 0
    %v1070 = vsel %vm66, %v1054, 0
    %1072 = vmatprep.subr.mxu0 0.0
    %1073 = vmatpush1.msra.mxu0 %v1055
    %1074 = vmatprep.subr.mxu0 0.0
    %1075 = vmatpush1.msra.mxu0 %v1056
    %1076 = vmatprep.subr.mxu0 0.0
    %1077 = vmatpush1.msra.mxu0 %v1057
    %1078 = vmatprep.subr.mxu0 0.0
    %1079 = vmatpush1.msra.mxu0 %v1058
    %1080 = vmatprep.subr.mxu0 0.0
    %1081 = vmatpush1.msra.mxu0 0.0
    %1082 = vmatprep.subr.mxu0 0.0
    %1083 = vmatpush1.msra.mxu0 0.0
    %1084 = vmatprep.subr.mxu0 0.0
    %1085 = vmatpush1.msra.mxu0 0.0
    %1086 = vmatprep.subr.mxu0 0.0
    %1087 = vmatpush1.msra.mxu0 0.0
    %1088 = vmatprep.subr.mxu0 0.0
    %1089 = vmatpush1.msra.mxu0 0.0
    %1090 = vmatprep.subr.mxu0 0.0
    %1091 = vmatpush1.msra.mxu0 0.0
    %1092 = vmatprep.subr.mxu0 0.0
    %1093 = vmatpush1.msra.mxu0 0.0
    %1094 = vmatprep.subr.mxu0 0.0
    %1095 = vmatpush1.msra.mxu0 0.0
    %1096 = vmatprep.subr.mxu0 0.0
    %1097 = vmatpush1.msra.mxu0 0.0
    %1098 = vmatprep.subr.mxu0 0.0
    %1099 = vmatpush1.msra.mxu0 0.0
    %1100 = vmatprep.subr.mxu0 0.0
    %1101 = vmatpush1.msra.mxu0 0.0
    %1102 = vmatprep.subr.mxu0 0.0
    %1103 = vmatpush1.msra.mxu0 0.0
    %1104 = vmatprep.subr.mxu0 0.0
    %1105 = vmatpush1.msra.mxu0 0.0
    %1106 = vmatprep.subr.mxu0 0.0
    %1107 = vmatpush1.msra.mxu0 0.0
    %1108 = vmatprep.subr.mxu0 0.0
    %1109 = vmatpush1.msra.mxu0 0.0
    %1110 = vmatprep.subr.mxu0 0.0
    %1111 = vmatpush1.msra.mxu0 0.0
    %1112 = vmatprep.subr.mxu0 0.0
    %1113 = vmatpush1.msra.mxu0 0.0
    %1114 = vmatprep.subr.mxu0 0.0
    %1115 = vmatpush1.msra.mxu0 0.0
    %1116 = vmatprep.subr.mxu0 0.0
    %1117 = vmatpush1.msra.mxu0 0.0
    %1118 = vmatprep.subr.mxu0 0.0
    %1119 = vmatpush1.msra.mxu0 0.0
    %1120 = vmatprep.subr.mxu0 0.0
    %1121 = vmatpush1.msra.mxu0 0.0
    %1122 = vmatprep.subr.mxu0 0.0
    %1123 = vmatpush1.msra.mxu0 0.0
    %1124 = vmatprep.subr.mxu0 0.0
    %1125 = vmatpush1.msra.mxu0 0.0
    %1126 = vmatprep.subr.mxu0 0.0
    %1127 = vmatpush1.msra.mxu0 0.0
    %1128 = vmatprep.subr.mxu0 0.0
    %1129 = vmatpush1.msra.mxu0 0.0
    %1130 = vmatprep.subr.mxu0 0.0
    %1131 = vmatpush1.msra.mxu0 0.0
    %1132 = vmatprep.subr.mxu0 0.0
    %1133 = vmatpush1.msra.mxu0 0.0
    %1134 = vmatprep.subr.mxu0 0.0
    %1135 = vmatpush1.msra.mxu0 0.0
    %1136 = vmatprep.mubr.f32.mxu0 0.0
    %1137 = vmatmul.mubr.f32.gmra.mrb[0].mxu0 %v1067
    %v1138 = vpop.f32.mrb[0].mxu0
    %v1139 = vadd.f32 %v1064, %v1138
    %v1140 = vpop.f32.mrb[0].mxu0
    %1141 = vmatprep.mubr.f32.mxu0 0.0
    %1142 = vmatmul.mubr.f32.gmra.mrb[0].mxu0 %v1070
    %v1143 = vpop.f32.mrb[0].mxu0
    %v1144 = vadd.f32 %v1064, %v1143
    %v1145 = vpop.f32.mrb[0].mxu0
    %1146 = vdwg.mxu0
    %v1147 = vadd.f32 %v1139, %v108
    %v1148 = vadd.f32 %v1144, %v109
    %v1149 = vld [vmem:[%s8] sm:$0x1]
    %v1150 = vld [vmem:[%s9] sm:$0x1]
    %v1151 = vsel %vm66, %v1147, 0.0
    %1152 = vadd.xlane.f32.xlu0 %v1151
    %v1153 = vpop.xlane.xlu0 %1152
    %v1154 = vsel %vm66, %v1148, 0.0
    %1155 = vadd.xlane.f32.xlu0 %v1154
    %v1156 = vpop.xlane.xlu0 %1155
    %v1157 = vmul.f32 %v1153, %v73
    %v1158 = vmul.f32 %v1156, %v73
    %v1159 = vsub.f32 %v1147, %v1157
    %v1160 = vsub.f32 %v1148, %v1158
    %v1161 = vmul.f32 %v1159, %v1159
    %v1162 = vmul.f32 %v1160, %v1160
    %v1163 = vsel %vm66, %v1161, 0.0
    %1164 = vadd.xlane.f32.xlu0 %v1163
    %v1165 = vpop.xlane.xlu0 %1164
    %v1166 = vsel %vm66, %v1162, 0.0
    %1167 = vadd.xlane.f32.xlu0 %v1166
    %v1168 = vpop.xlane.xlu0 %1167
    %v1169 = vmul.f32 %v1165, %v73
    %v1170 = vmul.f32 %v1168, %v73
    %v1171 = vadd.f32 %v1169, 1e-12
    %v1172 = vadd.f32 %v1170, 1e-12
    %v1173 = vrsqrt.pop %v1171
    %v1174 = vrsqrt.pop %v1172
    %v1175 = vmul.f32 %v1159, %v1173
    %v1176 = vmul.f32 %v1160, %v1174
    %v1178 = vlaneseq
    %v1179 = vshrl.u32 %v1178, 7
    %v1180 = vsub.s32 0, %v1179
    %v1181 = vrot.slane %v1149, %v1180
    %v1183 = vmul.f32 %v1175, %v1181
    %v1184 = vmul.f32 %v1176, %v1181
    %v1186 = vlaneseq
    %v1187 = vshrl.u32 %v1186, 7
    %v1188 = vsub.s32 0, %v1187
    %v1189 = vrot.slane %v1150, %v1188
    %v1191 = vadd.f32 %v1183, %v1189
    %v1192 = vadd.f32 %v1184, %v1189
    %v1193 = vld [vmem:[%s10] sm:$0xff]
    %v1194 = vld [vmem:[%s10 + $0x8] sm:$0xff]
    %v1195 = vld [vmem:[%s10 + $0x10] sm:$0xff]
    %v1196 = vld [vmem:[%s10 + $0x18] sm:$0xff]
    %v1197 = vld [vmem:[%s11] sm:$0x1]
    %v1199 = vlaneseq
    %v1200 = vshrl.u32 %v1199, 7
    %v1201 = vsub.s32 0, %v1200
    %v1202 = vrot.slane %v1197, %v1201
    %v1205 = vsel %vm66, %v1191, 0
    %v1208 = vsel %vm66, %v1192, 0
    %1210 = vmatprep.subr.mxu0 0.0
    %1211 = vmatpush1.msra.mxu0 %v1193
    %1212 = vmatprep.subr.mxu0 0.0
    %1213 = vmatpush1.msra.mxu0 %v1194
    %1214 = vmatprep.subr.mxu0 0.0
    %1215 = vmatpush1.msra.mxu0 %v1195
    %1216 = vmatprep.subr.mxu0 0.0
    %1217 = vmatpush1.msra.mxu0 %v1196
    %1218 = vmatprep.subr.mxu0 0.0
    %1219 = vmatpush1.msra.mxu0 0.0
    %1220 = vmatprep.subr.mxu0 0.0
    %1221 = vmatpush1.msra.mxu0 0.0
    %1222 = vmatprep.subr.mxu0 0.0
    %1223 = vmatpush1.msra.mxu0 0.0
    %1224 = vmatprep.subr.mxu0 0.0
    %1225 = vmatpush1.msra.mxu0 0.0
    %1226 = vmatprep.subr.mxu0 0.0
    %1227 = vmatpush1.msra.mxu0 0.0
    %1228 = vmatprep.subr.mxu0 0.0
    %1229 = vmatpush1.msra.mxu0 0.0
    %1230 = vmatprep.subr.mxu0 0.0
    %1231 = vmatpush1.msra.mxu0 0.0
    %1232 = vmatprep.subr.mxu0 0.0
    %1233 = vmatpush1.msra.mxu0 0.0
    %1234 = vmatprep.subr.mxu0 0.0
    %1235 = vmatpush1.msra.mxu0 0.0
    %1236 = vmatprep.subr.mxu0 0.0
    %1237 = vmatpush1.msra.mxu0 0.0
    %1238 = vmatprep.subr.mxu0 0.0
    %1239 = vmatpush1.msra.mxu0 0.0
    %1240 = vmatprep.subr.mxu0 0.0
    %1241 = vmatpush1.msra.mxu0 0.0
    %1242 = vmatprep.subr.mxu0 0.0
    %1243 = vmatpush1.msra.mxu0 0.0
    %1244 = vmatprep.subr.mxu0 0.0
    %1245 = vmatpush1.msra.mxu0 0.0
    %1246 = vmatprep.subr.mxu0 0.0
    %1247 = vmatpush1.msra.mxu0 0.0
    %1248 = vmatprep.subr.mxu0 0.0
    %1249 = vmatpush1.msra.mxu0 0.0
    %1250 = vmatprep.subr.mxu0 0.0
    %1251 = vmatpush1.msra.mxu0 0.0
    %1252 = vmatprep.subr.mxu0 0.0
    %1253 = vmatpush1.msra.mxu0 0.0
    %1254 = vmatprep.subr.mxu0 0.0
    %1255 = vmatpush1.msra.mxu0 0.0
    %1256 = vmatprep.subr.mxu0 0.0
    %1257 = vmatpush1.msra.mxu0 0.0
    %1258 = vmatprep.subr.mxu0 0.0
    %1259 = vmatpush1.msra.mxu0 0.0
    %1260 = vmatprep.subr.mxu0 0.0
    %1261 = vmatpush1.msra.mxu0 0.0
    %1262 = vmatprep.subr.mxu0 0.0
    %1263 = vmatpush1.msra.mxu0 0.0
    %1264 = vmatprep.subr.mxu0 0.0
    %1265 = vmatpush1.msra.mxu0 0.0
    %1266 = vmatprep.subr.mxu0 0.0
    %1267 = vmatpush1.msra.mxu0 0.0
    %1268 = vmatprep.subr.mxu0 0.0
    %1269 = vmatpush1.msra.mxu0 0.0
    %1270 = vmatprep.subr.mxu0 0.0
    %1271 = vmatpush1.msra.mxu0 0.0
    %1272 = vmatprep.subr.mxu0 0.0
    %1273 = vmatpush1.msra.mxu0 0.0
    %1274 = vmatprep.mubr.f32.mxu0 0.0
    %1275 = vmatmul.mubr.f32.gmra.mrb[0].mxu0 %v1205
    %v1276 = vpop.f32.mrb[0].mxu0
    %v1277 = vadd.f32 %v1202, %v1276
    %v1278 = vpop.f32.mrb[0].mxu0
    %1279 = vmatprep.mubr.f32.mxu0 0.0
    %1280 = vmatmul.mubr.f32.gmra.mrb[0].mxu0 %v1208
    %v1281 = vpop.f32.mrb[0].mxu0
    %v1282 = vadd.f32 %v1202, %v1281
    %v1283 = vpop.f32.mrb[0].mxu0
    %1284 = vdwg.mxu0
    %v1285 = vmul.f32 %v1277, 0.5
    %v1286 = vmul.f32 %v1282, 0.5
    %v1287 = vmul.f32 %v1277, 0.044715
    %v1288 = vmul.f32 %v1282, 0.044715
    %v1289 = vmul.f32 %v1287, %v1277
    %v1290 = vmul.f32 %v1288, %v1282
    %v1291 = vmul.f32 %v1289, %v1277
    %v1292 = vmul.f32 %v1290, %v1282
    %v1293 = vadd.f32 %v1277, %v1291
    %v1294 = vadd.f32 %v1282, %v1292
    %v1295 = vmul.f32 %v1293, 0.7978846
    %v1296 = vmul.f32 %v1294, 0.7978846
    %v1297 = vtanh.pop %v1295
    %v1298 = vtanh.pop %v1296
    %v1299 = vadd.f32 %v1297, 1.0
    %v1300 = vadd.f32 %v1298, 1.0
    %v1301 = vmul.f32 %v1285, %v1299
    %v1302 = vmul.f32 %v1286, %v1300
    %v1303 = vld [vmem:[%s12] sm:$0xff]
    %v1304 = vld [vmem:[%s12 + $0x8] sm:$0xff]
    %v1305 = vld [vmem:[%s12 + $0x10] sm:$0xff]
    %v1306 = vld [vmem:[%s12 + $0x18] sm:$0xff]
    %v1307 = vld [vmem:[%s12 + $0x20] sm:$0xff]
    %v1308 = vld [vmem:[%s12 + $0x28] sm:$0xff]
    %v1309 = vld [vmem:[%s12 + $0x30] sm:$0xff]
    %v1310 = vld [vmem:[%s12 + $0x38] sm:$0xff]
    %v1311 = vld [vmem:[%s13] sm:$0x1]
    %v1313 = vlaneseq
    %v1314 = vshrl.u32 %v1313, 7
    %v1315 = vsub.s32 0, %v1314
    %v1316 = vrot.slane %v1311, %v1315
    %vm1318 = vcmask 523264
    %v1320 = vsel %vm1318, %v1301, 0
    %v1323 = vsel %vm1318, %v1302, 0
    %1325 = vmatprep.subr.mxu0 0.0
    %1326 = vmatpush1.msra.mxu0 %v1303
    %1327 = vmatprep.subr.mxu0 0.0
    %1328 = vmatpush1.msra.mxu0 %v1304
    %1329 = vmatprep.subr.mxu0 0.0
    %1330 = vmatpush1.msra.mxu0 %v1305
    %1331 = vmatprep.subr.mxu0 0.0
    %1332 = vmatpush1.msra.mxu0 %v1306
    %1333 = vmatprep.subr.mxu0 0.0
    %1334 = vmatpush1.msra.mxu0 %v1307
    %1335 = vmatprep.subr.mxu0 0.0
    %1336 = vmatpush1.msra.mxu0 %v1308
    %1337 = vmatprep.subr.mxu0 0.0
    %1338 = vmatpush1.msra.mxu0 %v1309
    %1339 = vmatprep.subr.mxu0 0.0
    %1340 = vmatpush1.msra.mxu0 %v1310
    %1341 = vmatprep.subr.mxu0 0.0
    %1342 = vmatpush1.msra.mxu0 0.0
    %1343 = vmatprep.subr.mxu0 0.0
    %1344 = vmatpush1.msra.mxu0 0.0
    %1345 = vmatprep.subr.mxu0 0.0
    %1346 = vmatpush1.msra.mxu0 0.0
    %1347 = vmatprep.subr.mxu0 0.0
    %1348 = vmatpush1.msra.mxu0 0.0
    %1349 = vmatprep.subr.mxu0 0.0
    %1350 = vmatpush1.msra.mxu0 0.0
    %1351 = vmatprep.subr.mxu0 0.0
    %1352 = vmatpush1.msra.mxu0 0.0
    %1353 = vmatprep.subr.mxu0 0.0
    %1354 = vmatpush1.msra.mxu0 0.0
    %1355 = vmatprep.subr.mxu0 0.0
    %1356 = vmatpush1.msra.mxu0 0.0
    %1357 = vmatprep.subr.mxu0 0.0
    %1358 = vmatpush1.msra.mxu0 0.0
    %1359 = vmatprep.subr.mxu0 0.0
    %1360 = vmatpush1.msra.mxu0 0.0
    %1361 = vmatprep.subr.mxu0 0.0
    %1362 = vmatpush1.msra.mxu0 0.0
    %1363 = vmatprep.subr.mxu0 0.0
    %1364 = vmatpush1.msra.mxu0 0.0
    %1365 = vmatprep.subr.mxu0 0.0
    %1366 = vmatpush1.msra.mxu0 0.0
    %1367 = vmatprep.subr.mxu0 0.0
    %1368 = vmatpush1.msra.mxu0 0.0
    %1369 = vmatprep.subr.mxu0 0.0
    %1370 = vmatpush1.msra.mxu0 0.0
    %1371 = vmatprep.subr.mxu0 0.0
    %1372 = vmatpush1.msra.mxu0 0.0
    %1373 = vmatprep.subr.mxu0 0.0
    %1374 = vmatpush1.msra.mxu0 0.0
    %1375 = vmatprep.subr.mxu0 0.0
    %1376 = vmatpush1.msra.mxu0 0.0
    %1377 = vmatprep.subr.mxu0 0.0
    %1378 = vmatpush1.msra.mxu0 0.0
    %1379 = vmatprep.subr.mxu0 0.0
    %1380 = vmatpush1.msra.mxu0 0.0
    %1381 = vmatprep.subr.mxu0 0.0
    %1382 = vmatpush1.msra.mxu0 0.0
    %1383 = vmatprep.subr.mxu0 0.0
    %1384 = vmatpush1.msra.mxu0 0.0
    %1385 = vmatprep.subr.mxu0 0.0
    %1386 = vmatpush1.msra.mxu0 0.0
    %1387 = vmatprep.subr.mxu0 0.0
    %1388 = vmatpush1.msra.mxu0 0.0
    %1389 = vmatprep.mubr.f32.mxu0 0.0
    %1390 = vmatmul.mubr.f32.gmra.mrb[0].mxu0 %v1320
    %v1391 = vpop.f32.mrb[0].mxu0
    %v1392 = vadd.f32 %v1316, %v1391
    %v1393 = vpop.f32.mrb[0].mxu0
    %1394 = vmatprep.mubr.f32.mxu0 0.0
    %1395 = vmatmul.mubr.f32.gmra.mrb[0].mxu0 %v1323
    %v1396 = vpop.f32.mrb[0].mxu0
    %v1397 = vadd.f32 %v1316, %v1396
    %v1398 = vpop.f32.mrb[0].mxu0
    %1399 = vdwg.mxu0
    %v1400 = vadd.f32 %v1392, %v1191
    %v1401 = vadd.f32 %v1397, %v1192
    %v1402 = vld [vmem:[%s14] sm:$0x1]
    %v1403 = vld [vmem:[%s15] sm:$0x1]
    %v1404 = vsel %vm66, %v1400, 0.0
    %1405 = vadd.xlane.f32.xlu0 %v1404
    %v1406 = vpop.xlane.xlu0 %1405
    %v1407 = vsel %vm66, %v1401, 0.0
    %1408 = vadd.xlane.f32.xlu0 %v1407
    %v1409 = vpop.xlane.xlu0 %1408
    %v1410 = vmul.f32 %v1406, %v73
    %v1411 = vmul.f32 %v1409, %v73
    %v1412 = vsub.f32 %v1400, %v1410
    %v1413 = vsub.f32 %v1401, %v1411
    %v1414 = vmul.f32 %v1412, %v1412
    %v1415 = vmul.f32 %v1413, %v1413
    %v1416 = vsel %vm66, %v1414, 0.0
    %1417 = vadd.xlane.f32.xlu0 %v1416
    %v1418 = vpop.xlane.xlu0 %1417
    %v1419 = vsel %vm66, %v1415, 0.0
    %1420 = vadd.xlane.f32.xlu0 %v1419
    %v1421 = vpop.xlane.xlu0 %1420
    %v1422 = vmul.f32 %v1418, %v73
    %v1423 = vmul.f32 %v1421, %v73
    %v1424 = vadd.f32 %v1422, 1e-12
    %v1425 = vadd.f32 %v1423, 1e-12
    %v1426 = vrsqrt.pop %v1424
    %v1427 = vrsqrt.pop %v1425
    %v1428 = vmul.f32 %v1412, %v1426
    %v1429 = vmul.f32 %v1413, %v1427
    %v1431 = vlaneseq
    %v1432 = vshrl.u32 %v1431, 7
    %v1433 = vsub.s32 0, %v1432
    %v1434 = vrot.slane %v1402, %v1433
    %v1436 = vmul.f32 %v1428, %v1434
    %v1437 = vmul.f32 %v1429, %v1434
    %v1439 = vlaneseq
    %v1440 = vshrl.u32 %v1439, 7
    %v1441 = vsub.s32 0, %v1440
    %v1442 = vrot.slane %v1403, %v1441
    %v1444 = vadd.f32 %v1436, %v1442
    %v1445 = vadd.f32 %v1437, %v1442
    %s1446 = scalar_lea.vmem %s4, 32
    %v1447 = vld [vmem:[%s1446] sm:$0xff]
    %v1448 = vld [vmem:[%s1446 + $0x8] sm:$0xff]
    %v1449 = vld [vmem:[%s1446 + $0x10] sm:$0xff]
    %v1450 = vld [vmem:[%s1446 + $0x18] sm:$0xff]
    %s1451 = scalar_lea.vmem %s5, 1
    %v1452 = vld [vmem:[%s1451] sm:$0x1]
    %v1454 = vlaneseq
    %v1455 = vshrl.u32 %v1454, 7
    %v1456 = vsub.s32 0, %v1455
    %v1457 = vrot.slane %v1452, %v1456
    %v1460 = vsel %vm66, %v1444, 0
    %v1463 = vsel %vm66, %v1445, 0
    %1465 = vmatprep.subr.mxu0 0.0
    %1466 = vmatpush1.msra.mxu0 %v1447
    %1467 = vmatprep.subr.mxu0 0.0
    %1468 = vmatpush1.msra.mxu0 %v1448
    %1469 = vmatprep.subr.mxu0 0.0
    %1470 = vmatpush1.msra.mxu0 %v1449
    %1471 = vmatprep.subr.mxu0 0.0
    %1472 = vmatpush1.msra.mxu0 %v1450
    %1473 = vmatprep.subr.mxu0 0.0
    %1474 = vmatpush1.msra.mxu0 0.0
    %1475 = vmatprep.subr.mxu0 0.0
    %1476 = vmatpush1.msra.mxu0 0.0
    %1477 = vmatprep.subr.mxu0 0.0
    %1478 = vmatpush1.msra.mxu0 0.0
    %1479 = vmatprep.subr.mxu0 0.0
    %1480 = vmatpush1.msra.mxu0 0.0
    %1481 = vmatprep.subr.mxu0 0.0
    %1482 = vmatpush1.msra.mxu0 0.0
    %1483 = vmatprep.subr.mxu0 0.0
    %1484 = vmatpush1.msra.mxu0 0.0
    %1485 = vmatprep.subr.mxu0 0.0
    %1486 = vmatpush1.msra.mxu0 0.0
    %1487 = vmatprep.subr.mxu0 0.0
    %1488 = vmatpush1.msra.mxu0 0.0
    %1489 = vmatprep.subr.mxu0 0.0
    %1490 = vmatpush1.msra.mxu0 0.0
    %1491 = vmatprep.subr.mxu0 0.0
    %1492 = vmatpush1.msra.mxu0 0.0
    %1493 = vmatprep.subr.mxu0 0.0
    %1494 = vmatpush1.msra.mxu0 0.0
    %1495 = vmatprep.subr.mxu0 0.0
    %1496 = vmatpush1.msra.mxu0 0.0
    %1497 = vmatprep.subr.mxu0 0.0
    %1498 = vmatpush1.msra.mxu0 0.0
    %1499 = vmatprep.subr.mxu0 0.0
    %1500 = vmatpush1.msra.mxu0 0.0
    %1501 = vmatprep.subr.mxu0 0.0
    %1502 = vmatpush1.msra.mxu0 0.0
    %1503 = vmatprep.subr.mxu0 0.0
    %1504 = vmatpush1.msra.mxu0 0.0
    %1505 = vmatprep.subr.mxu0 0.0
    %1506 = vmatpush1.msra.mxu0 0.0
    %1507 = vmatprep.subr.mxu0 0.0
    %1508 = vmatpush1.msra.mxu0 0.0
    %1509 = vmatprep.subr.mxu0 0.0
    %1510 = vmatpush1.msra.mxu0 0.0
    %1511 = vmatprep.subr.mxu0 0.0
    %1512 = vmatpush1.msra.mxu0 0.0
    %1513 = vmatprep.subr.mxu0 0.0
    %1514 = vmatpush1.msra.mxu0 0.0
    %1515 = vmatprep.subr.mxu0 0.0
    %1516 = vmatpush1.msra.mxu0 0.0
    %1517 = vmatprep.subr.mxu0 0.0
    %1518 = vmatpush1.msra.mxu0 0.0
    %1519 = vmatprep.subr.mxu0 0.0
    %1520 = vmatpush1.msra.mxu0 0.0
    %1521 = vmatprep.subr.mxu0 0.0
    %1522 = vmatpush1.msra.mxu0 0.0
    %1523 = vmatprep.subr.mxu0 0.0
    %1524 = vmatpush1.msra.mxu0 0.0
    %1525 = vmatprep.subr.mxu0 0.0
    %1526 = vmatpush1.msra.mxu0 0.0
    %1527 = vmatprep.subr.mxu0 0.0
    %1528 = vmatpush1.msra.mxu0 0.0
    %1529 = vmatprep.mubr.f32.mxu0 0.0
    %1530 = vmatmul.mubr.f32.gmra.mrb[0].mxu0 %v1460
    %v1531 = vpop.f32.mrb[0].mxu0
    %v1532 = vadd.f32 %v1457, %v1531
    %v1533 = vpop.f32.mrb[0].mxu0
    %1534 = vmatprep.mubr.f32.mxu0 0.0
    %1535 = vmatmul.mubr.f32.gmra.mrb[0].mxu0 %v1463
    %v1536 = vpop.f32.mrb[0].mxu0
    %v1537 = vadd.f32 %v1457, %v1536
    %v1538 = vpop.f32.mrb[0].mxu0
    %1539 = vdwg.mxu0
    %1542 = vrot.lane.b32.xlu0 %v1532, 96
    %v1543 = vpop.permute.xlu0 %1542
    %1544 = vrot.lane.b32.xlu0 %v1537, 96
    %v1545 = vpop.permute.xlu0 %1544
    %v1546 = vsel %vm208, %v1532, 0
    %v1548 = vsel %vm208, %v1537, 0
    %v1550 = vsel %vm208, %v1543, 0
    %v1552 = vsel %vm208, %v1545, 0
    %1554 = vmatprep.subr.mxu0 0.0
    %1555 = vmatpush1.xpose.msra.mxu0 %v1550
    %1556 = vmatprep.subr.mxu0 0.0
    %1557 = vmatpush1.xpose.msra.mxu0 %v1552
    %1558 = vmatprep.subr.mxu0 0.0
    %1559 = vmatpush1.xpose.msra.mxu0 0.0
    %1560 = vmatprep.subr.mxu0 0.0
    %1561 = vmatpush1.xpose.msra.mxu0 0.0
    %1562 = vmatprep.subr.mxu0 0.0
    %1563 = vmatpush1.xpose.msra.mxu0 0.0
    %1564 = vmatprep.subr.mxu0 0.0
    %1565 = vmatpush1.xpose.msra.mxu0 0.0
    %1566 = vmatprep.subr.mxu0 0.0
    %1567 = vmatpush1.xpose.msra.mxu0 0.0
    %1568 = vmatprep.subr.mxu0 0.0
    %1569 = vmatpush1.xpose.msra.mxu0 0.0
    %1570 = vmatprep.subr.mxu0 0.0
    %1571 = vmatpush1.xpose.msra.mxu0 0.0
    %1572 = vmatprep.subr.mxu0 0.0
    %1573 = vmatpush1.xpose.msra.mxu0 0.0
    %1574 = vmatprep.subr.mxu0 0.0
    %1575 = vmatpush1.xpose.msra.mxu0 0.0
    %1576 = vmatprep.subr.mxu0 0.0
    %1577 = vmatpush1.xpose.msra.mxu0 0.0
    %1578 = vmatprep.subr.mxu0 0.0
    %1579 = vmatpush1.xpose.msra.mxu0 0.0
    %1580 = vmatprep.subr.mxu0 0.0
    %1581 = vmatpush1.xpose.msra.mxu0 0.0
    %1582 = vmatprep.subr.mxu0 0.0
    %1583 = vmatpush1.xpose.msra.mxu0 0.0
    %1584 = vmatprep.subr.mxu0 0.0
    %1585 = vmatpush1.xpose.msra.mxu0 0.0
    %1586 = vmatprep.subr.mxu0 0.0
    %1587 = vmatpush1.xpose.msra.mxu0 0.0
    %1588 = vmatprep.subr.mxu0 0.0
    %1589 = vmatpush1.xpose.msra.mxu0 0.0
    %1590 = vmatprep.subr.mxu0 0.0
    %1591 = vmatpush1.xpose.msra.mxu0 0.0
    %1592 = vmatprep.subr.mxu0 0.0
    %1593 = vmatpush1.xpose.msra.mxu0 0.0
    %1594 = vmatprep.subr.mxu0 0.0
    %1595 = vmatpush1.xpose.msra.mxu0 0.0
    %1596 = vmatprep.subr.mxu0 0.0
    %1597 = vmatpush1.xpose.msra.mxu0 0.0
    %1598 = vmatprep.subr.mxu0 0.0
    %1599 = vmatpush1.xpose.msra.mxu0 0.0
    %1600 = vmatprep.subr.mxu0 0.0
    %1601 = vmatpush1.xpose.msra.mxu0 0.0
    %1602 = vmatprep.subr.mxu0 0.0
    %1603 = vmatpush1.xpose.msra.mxu0 0.0
    %1604 = vmatprep.subr.mxu0 0.0
    %1605 = vmatpush1.xpose.msra.mxu0 0.0
    %1606 = vmatprep.subr.mxu0 0.0
    %1607 = vmatpush1.xpose.msra.mxu0 0.0
    %1608 = vmatprep.subr.mxu0 0.0
    %1609 = vmatpush1.xpose.msra.mxu0 0.0
    %1610 = vmatprep.subr.mxu0 0.0
    %1611 = vmatpush1.xpose.msra.mxu0 0.0
    %1612 = vmatprep.subr.mxu0 0.0
    %1613 = vmatpush1.xpose.msra.mxu0 0.0
    %1614 = vmatprep.subr.mxu0 0.0
    %1615 = vmatpush1.xpose.msra.mxu0 0.0
    %1616 = vmatprep.subr.mxu0 0.0
    %1617 = vmatpush1.xpose.msra.mxu0 0.0
    %1618 = vmatprep.mubr.f32.mxu0 0.0
    %1619 = vmatmul.mubr.f32.gmra.mrb[0].mxu0 %v1546
    %v1620 = vpop.f32.mrb[0].mxu0
    %v1621 = vadd.f32 0.0, %v1620
    %v1622 = vpop.f32.mrb[0].mxu0
    %1623 = vmatprep.mubr.f32.mxu0 0.0
    %1624 = vmatmul.mubr.f32.gmra.mrb[0].mxu0 %v1548
    %v1625 = vpop.f32.mrb[0].mxu0
    %v1626 = vadd.f32 0.0, %v1625
    %v1627 = vpop.f32.mrb[0].mxu0
    %1628 = vdwg.mxu0
    %v1629 = vmul.f32 %v1621, 0.35355338
    %v1630 = vmul.f32 %v1626, 0.35355338
    %v1631 = vadd.f32 %v1629, %v60
    %v1632 = vadd.f32 %v1630, %v61
    %v1633 = vsel %vm296, %v1631, -inf
    %1634 = vmax.xlane.f32.xlu0 %v1633
    %v1635 = vpop.xlane.xlu0 %1634
    %v1636 = vsel %vm296, %v1632, -inf
    %1637 = vmax.xlane.f32.xlu0 %v1636
    %v1638 = vpop.xlane.xlu0 %1637
    %v1639 = vsub.f32 %v1631, %v1635
    %v1640 = vsub.f32 %v1632, %v1638
    %v1641 = vmul.f32 %v1639, 1.442695
    %v1642 = vpow.pop %v1641
    %v1643 = vmul.f32 %v1640, 1.442695
    %v1644 = vpow.pop %v1643
    %v1645 = vsel %vm296, %v1642, 0.0
    %1646 = vadd.xlane.f32.xlu0 %v1645
    %v1647 = vpop.xlane.xlu0 %1646
    %v1648 = vsel %vm296, %v1644, 0.0
    %1649 = vadd.xlane.f32.xlu0 %v1648
    %v1650 = vpop.xlane.xlu0 %1649
    %v1651 = vrcp.pop %v1647
    %v1652 = vrcp.pop %v1650
    %v1653 = vmul.f32 %v1642, %v1651
    %v1654 = vmul.f32 %v1644, %v1652
    %1655 = vrot.lane.b32.xlu0 %v1532, 64
    %v1656 = vpop.permute.xlu0 %1655
    %1657 = vrot.lane.b32.xlu0 %v1537, 64
    %v1658 = vpop.permute.xlu0 %1657
    %v1662 = vsel %vm296, %v1653, 0
    %v1665 = vsel %vm296, %v1654, 0
    %1667 = vmatprep.subr.mxu0 0.0
    %1668 = vmatpush1.msra.mxu0 %v1656
    %1669 = vmatprep.subr.mxu0 0.0
    %1670 = vmatpush1.msra.mxu0 %v1658
    %1671 = vmatprep.subr.mxu0 0.0
    %1672 = vmatpush1.msra.mxu0 0.0
    %1673 = vmatprep.subr.mxu0 0.0
    %1674 = vmatpush1.msra.mxu0 0.0
    %1675 = vmatprep.subr.mxu0 0.0
    %1676 = vmatpush1.msra.mxu0 0.0
    %1677 = vmatprep.subr.mxu0 0.0
    %1678 = vmatpush1.msra.mxu0 0.0
    %1679 = vmatprep.subr.mxu0 0.0
    %1680 = vmatpush1.msra.mxu0 0.0
    %1681 = vmatprep.subr.mxu0 0.0
    %1682 = vmatpush1.msra.mxu0 0.0
    %1683 = vmatprep.subr.mxu0 0.0
    %1684 = vmatpush1.msra.mxu0 0.0
    %1685 = vmatprep.subr.mxu0 0.0
    %1686 = vmatpush1.msra.mxu0 0.0
    %1687 = vmatprep.subr.mxu0 0.0
    %1688 = vmatpush1.msra.mxu0 0.0
    %1689 = vmatprep.subr.mxu0 0.0
    %1690 = vmatpush1.msra.mxu0 0.0
    %1691 = vmatprep.subr.mxu0 0.0
    %1692 = vmatpush1.msra.mxu0 0.0
    %1693 = vmatprep.subr.mxu0 0.0
    %1694 = vmatpush1.msra.mxu0 0.0
    %1695 = vmatprep.subr.mxu0 0.0
    %1696 = vmatpush1.msra.mxu0 0.0
    %1697 = vmatprep.subr.mxu0 0.0
    %1698 = vmatpush1.msra.mxu0 0.0
    %1699 = vmatprep.subr.mxu0 0.0
    %1700 = vmatpush1.msra.mxu0 0.0
    %1701 = vmatprep.subr.mxu0 0.0
    %1702 = vmatpush1.msra.mxu0 0.0
    %1703 = vmatprep.subr.mxu0 0.0
    %1704 = vmatpush1.msra.mxu0 0.0
    %1705 = vmatprep.subr.mxu0 0.0
    %1706 = vmatpush1.msra.mxu0 0.0
    %1707 = vmatprep.subr.mxu0 0.0
    %1708 = vmatpush1.msra.mxu0 0.0
    %1709 = vmatprep.subr.mxu0 0.0
    %1710 = vmatpush1.msra.mxu0 0.0
    %1711 = vmatprep.subr.mxu0 0.0
    %1712 = vmatpush1.msra.mxu0 0.0
    %1713 = vmatprep.subr.mxu0 0.0
    %1714 = vmatpush1.msra.mxu0 0.0
    %1715 = vmatprep.subr.mxu0 0.0
    %1716 = vmatpush1.msra.mxu0 0.0
    %1717 = vmatprep.subr.mxu0 0.0
    %1718 = vmatpush1.msra.mxu0 0.0
    %1719 = vmatprep.subr.mxu0 0.0
    %1720 = vmatpush1.msra.mxu0 0.0
    %1721 = vmatprep.subr.mxu0 0.0
    %1722 = vmatpush1.msra.mxu0 0.0
    %1723 = vmatprep.subr.mxu0 0.0
    %1724 = vmatpush1.msra.mxu0 0.0
    %1725 = vmatprep.subr.mxu0 0.0
    %1726 = vmatpush1.msra.mxu0 0.0
    %1727 = vmatprep.subr.mxu0 0.0
    %1728 = vmatpush1.msra.mxu0 0.0
    %1729 = vmatprep.subr.mxu0 0.0
    %1730 = vmatpush1.msra.mxu0 0.0
    %1731 = vmatprep.mubr.f32.mxu0 0.0
    %1732 = vmatmul.mubr.f32.gmra.mrb[0].mxu0 %v1662
    %v1733 = vpop.f32.mrb[0].mxu0
    %v1734 = vadd.f32 0.0, %v1733
    %v1735 = vpop.f32.mrb[0].mxu0
    %1736 = vmatprep.mubr.f32.mxu0 0.0
    %1737 = vmatmul.mubr.f32.gmra.mrb[0].mxu0 %v1665
    %v1738 = vpop.f32.mrb[0].mxu0
    %v1739 = vadd.f32 0.0, %v1738
    %v1740 = vpop.f32.mrb[0].mxu0
    %1741 = vdwg.mxu0
    %1742 = vst.msk [vmem:[#allocation2] sm:$0xff] %vm208, %v1734
    %1743 = vst.msk [vmem:[#allocation2 + $0x8] sm:$0xff] %vm208, %v1739
    %1744 = vrot.lane.b32.xlu0 %v1532, 120
    %v1745 = vpop.permute.xlu0 %1744
    %1746 = vrot.lane.b32.xlu0 %v1537, 120
    %v1747 = vpop.permute.xlu0 %1746
    %1748 = vrot.lane.b32.xlu0 %v1532, 88
    %v1749 = vpop.permute.xlu0 %1748
    %1750 = vrot.lane.b32.xlu0 %v1537, 88
    %v1751 = vpop.permute.xlu0 %1750
    %v1752 = vsel %vm208, %v1745, 0
    %v1754 = vsel %vm208, %v1747, 0
    %v1756 = vsel %vm208, %v1749, 0
    %v1758 = vsel %vm208, %v1751, 0
    %1760 = vmatprep.subr.mxu0 0.0
    %1761 = vmatpush1.xpose.msra.mxu0 %v1756
    %1762 = vmatprep.subr.mxu0 0.0
    %1763 = vmatpush1.xpose.msra.mxu0 %v1758
    %1764 = vmatprep.subr.mxu0 0.0
    %1765 = vmatpush1.xpose.msra.mxu0 0.0
    %1766 = vmatprep.subr.mxu0 0.0
    %1767 = vmatpush1.xpose.msra.mxu0 0.0
    %1768 = vmatprep.subr.mxu0 0.0
    %1769 = vmatpush1.xpose.msra.mxu0 0.0
    %1770 = vmatprep.subr.mxu0 0.0
    %1771 = vmatpush1.xpose.msra.mxu0 0.0
    %1772 = vmatprep.subr.mxu0 0.0
    %1773 = vmatpush1.xpose.msra.mxu0 0.0
    %1774 = vmatprep.subr.mxu0 0.0
    %1775 = vmatpush1.xpose.msra.mxu0 0.0
    %1776 = vmatprep.subr.mxu0 0.0
    %1777 = vmatpush1.xpose.msra.mxu0 0.0
    %1778 = vmatprep.subr.mxu0 0.0
    %1779 = vmatpush1.xpose.msra.mxu0 0.0
    %1780 = vmatprep.subr.mxu0 0.0
    %1781 = vmatpush1.xpose.msra.mxu0 0.0
    %1782 = vmatprep.subr.mxu0 0.0
    %1783 = vmatpush1.xpose.msra.mxu0 0.0
    %1784 = vmatprep.subr.mxu0 0.0
    %1785 = vmatpush1.xpose.msra.mxu0 0.0
    %1786 = vmatprep.subr.mxu0 0.0
    %1787 = vmatpush1.xpose.msra.mxu0 0.0
    %1788 = vmatprep.subr.mxu0 0.0
    %1789 = vmatpush1.xpose.msra.mxu0 0.0
    %1790 = vmatprep.subr.mxu0 0.0
    %1791 = vmatpush1.xpose.msra.mxu0 0.0
    %1792 = vmatprep.subr.mxu0 0.0
    %1793 = vmatpush1.xpose.msra.mxu0 0.0
    %1794 = vmatprep.subr.mxu0 0.0
    %1795 = vmatpush1.xpose.msra.mxu0 0.0
    %1796 = vmatprep.subr.mxu0 0.0
    %1797 = vmatpush1.xpose.msra.mxu0 0.0
    %1798 = vmatprep.subr.mxu0 0.0
    %1799 = vmatpush1.xpose.msra.mxu0 0.0
    %1800 = vmatprep.subr.mxu0 0.0
    %1801 = vmatpush1.xpose.msra.mxu0 0.0
    %1802 = vmatprep.subr.mxu0 0.0
    %1803 = vmatpush1.xpose.msra.mxu0 0.0
    %1804 = vmatprep.subr.mxu0 0.0
    %1805 = vmatpush1.xpose.msra.mxu0 0.0
    %1806 = vmatprep.subr.mxu0 0.0
    %1807 = vmatpush1.xpose.msra.mxu0 0.0
    %1808 = vmatprep.subr.mxu0 0.0
    %1809 = vmatpush1.xpose.msra.mxu0 0.0
    %1810 = vmatprep.subr.mxu0 0.0
    %1811 = vmatpush1.xpose.msra.mxu0 0.0
    %1812 = vmatprep.subr.mxu0 0.0
    %1813 = vmatpush1.xpose.msra.mxu0 0.0
    %1814 = vmatprep.subr.mxu0 0.0
    %1815 = vmatpush1.xpose.msra.mxu0 0.0
    %1816 = vmatprep.subr.mxu0 0.0
    %1817 = vmatpush1.xpose.msra.mxu0 0.0
    %1818 = vmatprep.subr.mxu0 0.0
    %1819 = vmatpush1.xpose.msra.mxu0 0.0
    %1820 = vmatprep.subr.mxu0 0.0
    %1821 = vmatpush1.xpose.msra.mxu0 0.0
    %1822 = vmatprep.subr.mxu0 0.0
    %1823 = vmatpush1.xpose.msra.mxu0 0.0
    %1824 = vmatprep.mubr.f32.mxu0 0.0
    %1825 = vmatmul.mubr.f32.gmra.mrb[0].mxu0 %v1752
    %v1826 = vpop.f32.mrb[0].mxu0
    %v1827 = vadd.f32 0.0, %v1826
    %v1828 = vpop.f32.mrb[0].mxu0
    %1829 = vmatprep.mubr.f32.mxu0 0.0
    %1830 = vmatmul.mubr.f32.gmra.mrb[0].mxu0 %v1754
    %v1831 = vpop.f32.mrb[0].mxu0
    %v1832 = vadd.f32 0.0, %v1831
    %v1833 = vpop.f32.mrb[0].mxu0
    %1834 = vdwg.mxu0
    %v1835 = vmul.f32 %v1827, 0.35355338
    %v1836 = vmul.f32 %v1832, 0.35355338
    %v1837 = vadd.f32 %v1835, %v60
    %v1838 = vadd.f32 %v1836, %v61
    %v1839 = vsel %vm296, %v1837, -inf
    %1840 = vmax.xlane.f32.xlu0 %v1839
    %v1841 = vpop.xlane.xlu0 %1840
    %v1842 = vsel %vm296, %v1838, -inf
    %1843 = vmax.xlane.f32.xlu0 %v1842
    %v1844 = vpop.xlane.xlu0 %1843
    %v1845 = vsub.f32 %v1837, %v1841
    %v1846 = vsub.f32 %v1838, %v1844
    %v1847 = vmul.f32 %v1845, 1.442695
    %v1848 = vpow.pop %v1847
    %v1849 = vmul.f32 %v1846, 1.442695
    %v1850 = vpow.pop %v1849
    %v1851 = vsel %vm296, %v1848, 0.0
    %1852 = vadd.xlane.f32.xlu0 %v1851
    %v1853 = vpop.xlane.xlu0 %1852
    %v1854 = vsel %vm296, %v1850, 0.0
    %1855 = vadd.xlane.f32.xlu0 %v1854
    %v1856 = vpop.xlane.xlu0 %1855
    %v1857 = vrcp.pop %v1853
    %v1858 = vrcp.pop %v1856
    %v1859 = vmul.f32 %v1848, %v1857
    %v1860 = vmul.f32 %v1850, %v1858
    %1861 = vrot.lane.b32.xlu0 %v1532, 56
    %v1862 = vpop.permute.xlu0 %1861
    %1863 = vrot.lane.b32.xlu0 %v1537, 56
    %v1864 = vpop.permute.xlu0 %1863
    %v1868 = vsel %vm296, %v1859, 0
    %v1871 = vsel %vm296, %v1860, 0
    %1873 = vmatprep.subr.mxu0 0.0
    %1874 = vmatpush1.msra.mxu0 %v1862
    %1875 = vmatprep.subr.mxu0 0.0
    %1876 = vmatpush1.msra.mxu0 %v1864
    %1877 = vmatprep.subr.mxu0 0.0
    %1878 = vmatpush1.msra.mxu0 0.0
    %1879 = vmatprep.subr.mxu0 0.0
    %1880 = vmatpush1.msra.mxu0 0.0
    %1881 = vmatprep.subr.mxu0 0.0
    %1882 = vmatpush1.msra.mxu0 0.0
    %1883 = vmatprep.subr.mxu0 0.0
    %1884 = vmatpush1.msra.mxu0 0.0
    %1885 = vmatprep.subr.mxu0 0.0
    %1886 = vmatpush1.msra.mxu0 0.0
    %1887 = vmatprep.subr.mxu0 0.0
    %1888 = vmatpush1.msra.mxu0 0.0
    %1889 = vmatprep.subr.mxu0 0.0
    %1890 = vmatpush1.msra.mxu0 0.0
    %1891 = vmatprep.subr.mxu0 0.0
    %1892 = vmatpush1.msra.mxu0 0.0
    %1893 = vmatprep.subr.mxu0 0.0
    %1894 = vmatpush1.msra.mxu0 0.0
    %1895 = vmatprep.subr.mxu0 0.0
    %1896 = vmatpush1.msra.mxu0 0.0
    %1897 = vmatprep.subr.mxu0 0.0
    %1898 = vmatpush1.msra.mxu0 0.0
    %1899 = vmatprep.subr.mxu0 0.0
    %1900 = vmatpush1.msra.mxu0 0.0
    %1901 = vmatprep.subr.mxu0 0.0
    %1902 = vmatpush1.msra.mxu0 0.0
    %1903 = vmatprep.subr.mxu0 0.0
    %1904 = vmatpush1.msra.mxu0 0.0
    %1905 = vmatprep.subr.mxu0 0.0
    %1906 = vmatpush1.msra.mxu0 0.0
    %1907 = vmatprep.subr.mxu0 0.0
    %1908 = vmatpush1.msra.mxu0 0.0
    %1909 = vmatprep.subr.mxu0 0.0
    %1910 = vmatpush1.msra.mxu0 0.0
    %1911 = vmatprep.subr.mxu0 0.0
    %1912 = vmatpush1.msra.mxu0 0.0
    %1913 = vmatprep.subr.mxu0 0.0
    %1914 = vmatpush1.msra.mxu0 0.0
    %1915 = vmatprep.subr.mxu0 0.0
    %1916 = vmatpush1.msra.mxu0 0.0
    %1917 = vmatprep.subr.mxu0 0.0
    %1918 = vmatpush1.msra.mxu0 0.0
    %1919 = vmatprep.subr.mxu0 0.0
    %1920 = vmatpush1.msra.mxu0 0.0
    %1921 = vmatprep.subr.mxu0 0.0
    %1922 = vmatpush1.msra.mxu0 0.0
    %1923 = vmatprep.subr.mxu0 0.0
    %1924 = vmatpush1.msra.mxu0 0.0
    %1925 = vmatprep.subr.mxu0 0.0
    %1926 = vmatpush1.msra.mxu0 0.0
    %1927 = vmatprep.subr.mxu0 0.0
    %1928 = vmatpush1.msra.mxu0 0.0
    %1929 = vmatprep.subr.mxu0 0.0
    %1930 = vmatpush1.msra.mxu0 0.0
    %1931 = vmatprep.subr.mxu0 0.0
    %1932 = vmatpush1.msra.mxu0 0.0
    %1933 = vmatprep.subr.mxu0 0.0
    %1934 = vmatpush1.msra.mxu0 0.0
    %1935 = vmatprep.subr.mxu0 0.0
    %1936 = vmatpush1.msra.mxu0 0.0
    %1937 = vmatprep.mubr.f32.mxu0 0.0
    %1938 = vmatmul.mubr.f32.gmra.mrb[0].mxu0 %v1868
    %v1939 = vpop.f32.mrb[0].mxu0
    %v1940 = vadd.f32 0.0, %v1939
    %v1941 = vpop.f32.mrb[0].mxu0
    %1942 = vmatprep.mubr.f32.mxu0 0.0
    %1943 = vmatmul.mubr.f32.gmra.mrb[0].mxu0 %v1871
    %v1944 = vpop.f32.mrb[0].mxu0
    %v1945 = vadd.f32 0.0, %v1944
    %v1946 = vpop.f32.mrb[0].mxu0
    %1947 = vdwg.mxu0
    %1950 = vrot.lane.b32.xlu0 %v1940, 8
    %v1951 = vpop.permute.xlu0 %1950
    %1952 = vrot.lane.b32.xlu0 %v1945, 8
    %v1953 = vpop.permute.xlu0 %1952
    %1956 = vst.msk [vmem:[#allocation2] sm:$0xff] %vm620, %v1951
    %1957 = vst.msk [vmem:[#allocation2 + $0x8] sm:$0xff] %vm620, %v1953
    %1958 = vrot.lane.b32.xlu0 %v1532, 112
    %v1959 = vpop.permute.xlu0 %1958
    %1960 = vrot.lane.b32.xlu0 %v1537, 112
    %v1961 = vpop.permute.xlu0 %1960
    %1962 = vrot.lane.b32.xlu0 %v1532, 80
    %v1963 = vpop.permute.xlu0 %1962
    %1964 = vrot.lane.b32.xlu0 %v1537, 80
    %v1965 = vpop.permute.xlu0 %1964
    %v1966 = vsel %vm208, %v1959, 0
    %v1968 = vsel %vm208, %v1961, 0
    %v1970 = vsel %vm208, %v1963, 0
    %v1972 = vsel %vm208, %v1965, 0
    %1974 = vmatprep.subr.mxu0 0.0
    %1975 = vmatpush1.xpose.msra.mxu0 %v1970
    %1976 = vmatprep.subr.mxu0 0.0
    %1977 = vmatpush1.xpose.msra.mxu0 %v1972
    %1978 = vmatprep.subr.mxu0 0.0
    %1979 = vmatpush1.xpose.msra.mxu0 0.0
    %1980 = vmatprep.subr.mxu0 0.0
    %1981 = vmatpush1.xpose.msra.mxu0 0.0
    %1982 = vmatprep.subr.mxu0 0.0
    %1983 = vmatpush1.xpose.msra.mxu0 0.0
    %1984 = vmatprep.subr.mxu0 0.0
    %1985 = vmatpush1.xpose.msra.mxu0 0.0
    %1986 = vmatprep.subr.mxu0 0.0
    %1987 = vmatpush1.xpose.msra.mxu0 0.0
    %1988 = vmatprep.subr.mxu0 0.0
    %1989 = vmatpush1.xpose.msra.mxu0 0.0
    %1990 = vmatprep.subr.mxu0 0.0
    %1991 = vmatpush1.xpose.msra.mxu0 0.0
    %1992 = vmatprep.subr.mxu0 0.0
    %1993 = vmatpush1.xpose.msra.mxu0 0.0
    %1994 = vmatprep.subr.mxu0 0.0
    %1995 = vmatpush1.xpose.msra.mxu0 0.0
    %1996 = vmatprep.subr.mxu0 0.0
    %1997 = vmatpush1.xpose.msra.mxu0 0.0
    %1998 = vmatprep.subr.mxu0 0.0
    %1999 = vmatpush1.xpose.msra.mxu0 0.0
    %2000 = vmatprep.subr.mxu0 0.0
    %2001 = vmatpush1.xpose.msra.mxu0 0.0
    %2002 = vmatprep.subr.mxu0 0.0
    %2003 = vmatpush1.xpose.msra.mxu0 0.0
    %2004 = vmatprep.subr.mxu0 0.0
    %2005 = vmatpush1.xpose.msra.mxu0 0.0
    %2006 = vmatprep.subr.mxu0 0.0
    %2007 = vmatpush1.xpose.msra.mxu0 0.0
    %2008 = vmatprep.subr.mxu0 0.0
    %2009 = vmatpush1.xpose.msra.mxu0 0.0
    %2010 = vmatprep.subr.mxu0 0.0
    %2011 = vmatpush1.xpose.msra.mxu0 0.0
    %2012 = vmatprep.subr.mxu0 0.0
    %2013 = vmatpush1.xpose.msra.mxu0 0.0
    %2014 = vmatprep.subr.mxu0 0.0
    %2015 = vmatpush1.xpose.msra.mxu0 0.0
    %2016 = vmatprep.subr.mxu0 0.0
    %2017 = vmatpush1.xpose.msra.mxu0 0.0
    %2018 = vmatprep.subr.mxu0 0.0
    %2019 = vmatpush1.xpose.msra.mxu0 0.0
    %2020 = vmatprep.subr.mxu0 0.0
    %2021 = vmatpush1.xpose.msra.mxu0 0.0
    %2022 = vmatprep.subr.mxu0 0.0
    %2023 = vmatpush1.xpose.msra.mxu0 0.0
    %2024 = vmatprep.subr.mxu0 0.0
    %2025 = vmatpush1.xpose.msra.mxu0 0.0
    %2026 = vmatprep.subr.mxu0 0.0
    %2027 = vmatpush1.xpose.msra.mxu0 0.0
    %2028 = vmatprep.subr.mxu0 0.0
    %2029 = vmatpush1.xpose.msra.mxu0 0.0
    %2030 = vmatprep.subr.mxu0 0.0
    %2031 = vmatpush1.xpose.msra.mxu0 0.0
    %2032 = vmatprep.subr.mxu0 0.0
    %2033 = vmatpush1.xpose.msra.mxu0 0.0
    %2034 = vmatprep.subr.mxu0 0.0
    %2035 = vmatpush1.xpose.msra.mxu0 0.0
    %2036 = vmatprep.subr.mxu0 0.0
    %2037 = vmatpush1.xpose.msra.mxu0 0.0
    %2038 = vmatprep.mubr.f32.mxu0 0.0
    %2039 = vmatmul.mubr.f32.gmra.mrb[0].mxu0 %v1966
    %v2040 = vpop.f32.mrb[0].mxu0
    %v2041 = vadd.f32 0.0, %v2040
    %v2042 = vpop.f32.mrb[0].mxu0
    %2043 = vmatprep.mubr.f32.mxu0 0.0
    %2044 = vmatmul.mubr.f32.gmra.mrb[0].mxu0 %v1968
    %v2045 = vpop.f32.mrb[0].mxu0
    %v2046 = vadd.f32 0.0, %v2045
    %v2047 = vpop.f32.mrb[0].mxu0
    %2048 = vdwg.mxu0
    %v2049 = vmul.f32 %v2041, 0.35355338
    %v2050 = vmul.f32 %v2046, 0.35355338
    %v2051 = vadd.f32 %v2049, %v60
    %v2052 = vadd.f32 %v2050, %v61
    %v2053 = vsel %vm296, %v2051, -inf
    %2054 = vmax.xlane.f32.xlu0 %v2053
    %v2055 = vpop.xlane.xlu0 %2054
    %v2056 = vsel %vm296, %v2052, -inf
    %2057 = vmax.xlane.f32.xlu0 %v2056
    %v2058 = vpop.xlane.xlu0 %2057
    %v2059 = vsub.f32 %v2051, %v2055
    %v2060 = vsub.f32 %v2052, %v2058
    %v2061 = vmul.f32 %v2059, 1.442695
    %v2062 = vpow.pop %v2061
    %v2063 = vmul.f32 %v2060, 1.442695
    %v2064 = vpow.pop %v2063
    %v2065 = vsel %vm296, %v2062, 0.0
    %2066 = vadd.xlane.f32.xlu0 %v2065
    %v2067 = vpop.xlane.xlu0 %2066
    %v2068 = vsel %vm296, %v2064, 0.0
    %2069 = vadd.xlane.f32.xlu0 %v2068
    %v2070 = vpop.xlane.xlu0 %2069
    %v2071 = vrcp.pop %v2067
    %v2072 = vrcp.pop %v2070
    %v2073 = vmul.f32 %v2062, %v2071
    %v2074 = vmul.f32 %v2064, %v2072
    %2075 = vrot.lane.b32.xlu0 %v1532, 48
    %v2076 = vpop.permute.xlu0 %2075
    %2077 = vrot.lane.b32.xlu0 %v1537, 48
    %v2078 = vpop.permute.xlu0 %2077
    %v2082 = vsel %vm296, %v2073, 0
    %v2085 = vsel %vm296, %v2074, 0
    %2087 = vmatprep.subr.mxu0 0.0
    %2088 = vmatpush1.msra.mxu0 %v2076
    %2089 = vmatprep.subr.mxu0 0.0
    %2090 = vmatpush1.msra.mxu0 %v2078
    %2091 = vmatprep.subr.mxu0 0.0
    %2092 = vmatpush1.msra.mxu0 0.0
    %2093 = vmatprep.subr.mxu0 0.0
    %2094 = vmatpush1.msra.mxu0 0.0
    %2095 = vmatprep.subr.mxu0 0.0
    %2096 = vmatpush1.msra.mxu0 0.0
    %2097 = vmatprep.subr.mxu0 0.0
    %2098 = vmatpush1.msra.mxu0 0.0
    %2099 = vmatprep.subr.mxu0 0.0
    %2100 = vmatpush1.msra.mxu0 0.0
    %2101 = vmatprep.subr.mxu0 0.0
    %2102 = vmatpush1.msra.mxu0 0.0
    %2103 = vmatprep.subr.mxu0 0.0
    %2104 = vmatpush1.msra.mxu0 0.0
    %2105 = vmatprep.subr.mxu0 0.0
    %2106 = vmatpush1.msra.mxu0 0.0
    %2107 = vmatprep.subr.mxu0 0.0
    %2108 = vmatpush1.msra.mxu0 0.0
    %2109 = vmatprep.subr.mxu0 0.0
    %2110 = vmatpush1.msra.mxu0 0.0
    %2111 = vmatprep.subr.mxu0 0.0
    %2112 = vmatpush1.msra.mxu0 0.0
    %2113 = vmatprep.subr.mxu0 0.0
    %2114 = vmatpush1.msra.mxu0 0.0
    %2115 = vmatprep.subr.mxu0 0.0
    %2116 = vmatpush1.msra.mxu0 0.0
    %2117 = vmatprep.subr.mxu0 0.0
    %2118 = vmatpush1.msra.mxu0 0.0
    %2119 = vmatprep.subr.mxu0 0.0
    %2120 = vmatpush1.msra.mxu0 0.0
    %2121 = vmatprep.subr.mxu0 0.0
    %2122 = vmatpush1.msra.mxu0 0.0
    %2123 = vmatprep.subr.mxu0 0.0
    %2124 = vmatpush1.msra.mxu0 0.0
    %2125 = vmatprep.subr.mxu0 0.0
    %2126 = vmatpush1.msra.mxu0 0.0
    %2127 = vmatprep.subr.mxu0 0.0
    %2128 = vmatpush1.msra.mxu0 0.0
    %2129 = vmatprep.subr.mxu0 0.0
    %2130 = vmatpush1.msra.mxu0 0.0
    %2131 = vmatprep.subr.mxu0 0.0
    %2132 = vmatpush1.msra.mxu0 0.0
    %2133 = vmatprep.subr.mxu0 0.0
    %2134 = vmatpush1.msra.mxu0 0.0
    %2135 = vmatprep.subr.mxu0 0.0
    %2136 = vmatpush1.msra.mxu0 0.0
    %2137 = vmatprep.subr.mxu0 0.0
    %2138 = vmatpush1.msra.mxu0 0.0
    %2139 = vmatprep.subr.mxu0 0.0
    %2140 = vmatpush1.msra.mxu0 0.0
    %2141 = vmatprep.subr.mxu0 0.0
    %2142 = vmatpush1.msra.mxu0 0.0
    %2143 = vmatprep.subr.mxu0 0.0
    %2144 = vmatpush1.msra.mxu0 0.0
    %2145 = vmatprep.subr.mxu0 0.0
    %2146 = vmatpush1.msra.mxu0 0.0
    %2147 = vmatprep.subr.mxu0 0.0
    %2148 = vmatpush1.msra.mxu0 0.0
    %2149 = vmatprep.subr.mxu0 0.0
    %2150 = vmatpush1.msra.mxu0 0.0
    %2151 = vmatprep.mubr.f32.mxu0 0.0
    %2152 = vmatmul.mubr.f32.gmra.mrb[0].mxu0 %v2082
    %v2153 = vpop.f32.mrb[0].mxu0
    %v2154 = vadd.f32 0.0, %v2153
    %v2155 = vpop.f32.mrb[0].mxu0
    %2156 = vmatprep.mubr.f32.mxu0 0.0
    %2157 = vmatmul.mubr.f32.gmra.mrb[0].mxu0 %v2085
    %v2158 = vpop.f32.mrb[0].mxu0
    %v2159 = vadd.f32 0.0, %v2158
    %v2160 = vpop.f32.mrb[0].mxu0
    %2161 = vdwg.mxu0
    %2164 = vrot.lane.b32.xlu0 %v2154, 16
    %v2165 = vpop.permute.xlu0 %2164
    %2166 = vrot.lane.b32.xlu0 %v2159, 16
    %v2167 = vpop.permute.xlu0 %2166
    %2170 = vst.msk [vmem:[#allocation2] sm:$0xff] %vm835, %v2165
    %2171 = vst.msk [vmem:[#allocation2 + $0x8] sm:$0xff] %vm835, %v2167
    %2172 = vrot.lane.b32.xlu0 %v1532, 104
    %v2173 = vpop.permute.xlu0 %2172
    %2174 = vrot.lane.b32.xlu0 %v1537, 104
    %v2175 = vpop.permute.xlu0 %2174
    %2176 = vrot.lane.b32.xlu0 %v1532, 72
    %v2177 = vpop.permute.xlu0 %2176
    %2178 = vrot.lane.b32.xlu0 %v1537, 72
    %v2179 = vpop.permute.xlu0 %2178
    %v2180 = vsel %vm208, %v2173, 0
    %v2182 = vsel %vm208, %v2175, 0
    %v2184 = vsel %vm208, %v2177, 0
    %v2186 = vsel %vm208, %v2179, 0
    %2188 = vmatprep.subr.mxu0 0.0
    %2189 = vmatpush1.xpose.msra.mxu0 %v2184
    %2190 = vmatprep.subr.mxu0 0.0
    %2191 = vmatpush1.xpose.msra.mxu0 %v2186
    %2192 = vmatprep.subr.mxu0 0.0
    %2193 = vmatpush1.xpose.msra.mxu0 0.0
    %2194 = vmatprep.subr.mxu0 0.0
    %2195 = vmatpush1.xpose.msra.mxu0 0.0
    %2196 = vmatprep.subr.mxu0 0.0
    %2197 = vmatpush1.xpose.msra.mxu0 0.0
    %2198 = vmatprep.subr.mxu0 0.0
    %2199 = vmatpush1.xpose.msra.mxu0 0.0
    %2200 = vmatprep.subr.mxu0 0.0
    %2201 = vmatpush1.xpose.msra.mxu0 0.0
    %2202 = vmatprep.subr.mxu0 0.0
    %2203 = vmatpush1.xpose.msra.mxu0 0.0
    %2204 = vmatprep.subr.mxu0 0.0
    %2205 = vmatpush1.xpose.msra.mxu0 0.0
    %2206 = vmatprep.subr.mxu0 0.0
    %2207 = vmatpush1.xpose.msra.mxu0 0.0
    %2208 = vmatprep.subr.mxu0 0.0
    %2209 = vmatpush1.xpose.msra.mxu0 0.0
    %2210 = vmatprep.subr.mxu0 0.0
    %2211 = vmatpush1.xpose.msra.mxu0 0.0
    %2212 = vmatprep.subr.mxu0 0.0
    %2213 = vmatpush1.xpose.msra.mxu0 0.0
    %2214 = vmatprep.subr.mxu0 0.0
    %2215 = vmatpush1.xpose.msra.mxu0 0.0
    %2216 = vmatprep.subr.mxu0 0.0
    %2217 = vmatpush1.xpose.msra.mxu0 0.0
    %2218 = vmatprep.subr.mxu0 0.0
    %2219 = vmatpush1.xpose.msra.mxu0 0.0
    %2220 = vmatprep.subr.mxu0 0.0
    %2221 = vmatpush1.xpose.msra.mxu0 0.0
    %2222 = vmatprep.subr.mxu0 0.0
    %2223 = vmatpush1.xpose.msra.mxu0 0.0
    %2224 = vmatprep.subr.mxu0 0.0
    %2225 = vmatpush1.xpose.msra.mxu0 0.0
    %2226 = vmatprep.subr.mxu0 0.0
    %2227 = vmatpush1.xpose.msra.mxu0 0.0
    %2228 = vmatprep.subr.mxu0 0.0
    %2229 = vmatpush1.xpose.msra.mxu0 0.0
    %2230 = vmatprep.subr.mxu0 0.0
    %2231 = vmatpush1.xpose.msra.mxu0 0.0
    %2232 = vmatprep.subr.mxu0 0.0
    %2233 = vmatpush1.xpose.msra.mxu0 0.0
    %2234 = vmatprep.subr.mxu0 0.0
    %2235 = vmatpush1.xpose.msra.mxu0 0.0
    %2236 = vmatprep.subr.mxu0 0.0
    %2237 = vmatpush1.xpose.msra.mxu0 0.0
    %2238 = vmatprep.subr.mxu0 0.0
    %2239 = vmatpush1.xpose.msra.mxu0 0.0
    %2240 = vmatprep.subr.mxu0 0.0
    %2241 = vmatpush1.xpose.msra.mxu0 0.0
    %2242 = vmatprep.subr.mxu0 0.0
    %2243 = vmatpush1.xpose.msra.mxu0 0.0
    %2244 = vmatprep.subr.mxu0 0.0
    %2245 = vmatpush1.xpose.msra.mxu0 0.0
    %2246 = vmatprep.subr.mxu0 0.0
    %2247 = vmatpush1.xpose.msra.mxu0 0.0
    %2248 = vmatprep.subr.mxu0 0.0
    %2249 = vmatpush1.xpose.msra.mxu0 0.0
    %2250 = vmatprep.subr.mxu0 0.0
    %2251 = vmatpush1.xpose.msra.mxu0 0.0
    %2252 = vmatprep.mubr.f32.mxu0 0.0
    %2253 = vmatmul.mubr.f32.gmra.mrb[0].mxu0 %v2180
    %v2254 = vpop.f32.mrb[0].mxu0
    %v2255 = vadd.f32 0.0, %v2254
    %v2256 = vpop.f32.mrb[0].mxu0
    %2257 = vmatprep.mubr.f32.mxu0 0.0
    %2258 = vmatmul.mubr.f32.gmra.mrb[0].mxu0 %v2182
    %v2259 = vpop.f32.mrb[0].mxu0
    %v2260 = vadd.f32 0.0, %v2259
    %v2261 = vpop.f32.mrb[0].mxu0
    %2262 = vdwg.mxu0
    %v2263 = vmul.f32 %v2255, 0.35355338
    %v2264 = vmul.f32 %v2260, 0.35355338
    %v2265 = vadd.f32 %v2263, %v60
    %v2266 = vadd.f32 %v2264, %v61
    %v2267 = vsel %vm296, %v2265, -inf
    %2268 = vmax.xlane.f32.xlu0 %v2267
    %v2269 = vpop.xlane.xlu0 %2268
    %v2270 = vsel %vm296, %v2266, -inf
    %2271 = vmax.xlane.f32.xlu0 %v2270
    %v2272 = vpop.xlane.xlu0 %2271
    %v2273 = vsub.f32 %v2265, %v2269
    %v2274 = vsub.f32 %v2266, %v2272
    %v2275 = vmul.f32 %v2273, 1.442695
    %v2276 = vpow.pop %v2275
    %v2277 = vmul.f32 %v2274, 1.442695
    %v2278 = vpow.pop %v2277
    %v2279 = vsel %vm296, %v2276, 0.0
    %2280 = vadd.xlane.f32.xlu0 %v2279
    %v2281 = vpop.xlane.xlu0 %2280
    %v2282 = vsel %vm296, %v2278, 0.0
    %2283 = vadd.xlane.f32.xlu0 %v2282
    %v2284 = vpop.xlane.xlu0 %2283
    %v2285 = vrcp.pop %v2281
    %v2286 = vrcp.pop %v2284
    %v2287 = vmul.f32 %v2276, %v2285
    %v2288 = vmul.f32 %v2278, %v2286
    %2289 = vrot.lane.b32.xlu0 %v1532, 40
    %v2290 = vpop.permute.xlu0 %2289
    %2291 = vrot.lane.b32.xlu0 %v1537, 40
    %v2292 = vpop.permute.xlu0 %2291
    %v2296 = vsel %vm296, %v2287, 0
    %v2299 = vsel %vm296, %v2288, 0
    %2301 = vmatprep.subr.mxu0 0.0
    %2302 = vmatpush1.msra.mxu0 %v2290
    %2303 = vmatprep.subr.mxu0 0.0
    %2304 = vmatpush1.msra.mxu0 %v2292
    %2305 = vmatprep.subr.mxu0 0.0
    %2306 = vmatpush1.msra.mxu0 0.0
    %2307 = vmatprep.subr.mxu0 0.0
    %2308 = vmatpush1.msra.mxu0 0.0
    %2309 = vmatprep.subr.mxu0 0.0
    %2310 = vmatpush1.msra.mxu0 0.0
    %2311 = vmatprep.subr.mxu0 0.0
    %2312 = vmatpush1.msra.mxu0 0.0
    %2313 = vmatprep.subr.mxu0 0.0
    %2314 = vmatpush1.msra.mxu0 0.0
    %2315 = vmatprep.subr.mxu0 0.0
    %2316 = vmatpush1.msra.mxu0 0.0
    %2317 = vmatprep.subr.mxu0 0.0
    %2318 = vmatpush1.msra.mxu0 0.0
    %2319 = vmatprep.subr.mxu0 0.0
    %2320 = vmatpush1.msra.mxu0 0.0
    %2321 = vmatprep.subr.mxu0 0.0
    %2322 = vmatpush1.msra.mxu0 0.0
    %2323 = vmatprep.subr.mxu0 0.0
    %2324 = vmatpush1.msra.mxu0 0.0
    %2325 = vmatprep.subr.mxu0 0.0
    %2326 = vmatpush1.msra.mxu0 0.0
    %2327 = vmatprep.subr.mxu0 0.0
    %2328 = vmatpush1.msra.mxu0 0.0
    %2329 = vmatprep.subr.mxu0 0.0
    %2330 = vmatpush1.msra.mxu0 0.0
    %2331 = vmatprep.subr.mxu0 0.0
    %2332 = vmatpush1.msra.mxu0 0.0
    %2333 = vmatprep.subr.mxu0 0.0
    %2334 = vmatpush1.msra.mxu0 0.0
    %2335 = vmatprep.subr.mxu0 0.0
    %2336 = vmatpush1.msra.mxu0 0.0
    %2337 = vmatprep.subr.mxu0 0.0
    %2338 = vmatpush1.msra.mxu0 0.0
    %2339 = vmatprep.subr.mxu0 0.0
    %2340 = vmatpush1.msra.mxu0 0.0
    %2341 = vmatprep.subr.mxu0 0.0
    %2342 = vmatpush1.msra.mxu0 0.0
    %2343 = vmatprep.subr.mxu0 0.0
    %2344 = vmatpush1.msra.mxu0 0.0
    %2345 = vmatprep.subr.mxu0 0.0
    %2346 = vmatpush1.msra.mxu0 0.0
    %2347 = vmatprep.subr.mxu0 0.0
    %2348 = vmatpush1.msra.mxu0 0.0
    %2349 = vmatprep.subr.mxu0 0.0
    %2350 = vmatpush1.msra.mxu0 0.0
    %2351 = vmatprep.subr.mxu0 0.0
    %2352 = vmatpush1.msra.mxu0 0.0
    %2353 = vmatprep.subr.mxu0 0.0
    %2354 = vmatpush1.msra.mxu0 0.0
    %2355 = vmatprep.subr.mxu0 0.0
    %2356 = vmatpush1.msra.mxu0 0.0
    %2357 = vmatprep.subr.mxu0 0.0
    %2358 = vmatpush1.msra.mxu0 0.0
    %2359 = vmatprep.subr.mxu0 0.0
    %2360 = vmatpush1.msra.mxu0 0.0
    %2361 = vmatprep.subr.mxu0 0.0
    %2362 = vmatpush1.msra.mxu0 0.0
    %2363 = vmatprep.subr.mxu0 0.0
    %2364 = vmatpush1.msra.mxu0 0.0
    %2365 = vmatprep.mubr.f32.mxu0 0.0
    %2366 = vmatmul.mubr.f32.gmra.mrb[0].mxu0 %v2296
    %v2367 = vpop.f32.mrb[0].mxu0
    %v2368 = vadd.f32 0.0, %v2367
    %v2369 = vpop.f32.mrb[0].mxu0
    %2370 = vmatprep.mubr.f32.mxu0 0.0
    %2371 = vmatmul.mubr.f32.gmra.mrb[0].mxu0 %v2299
    %v2372 = vpop.f32.mrb[0].mxu0
    %v2373 = vadd.f32 0.0, %v2372
    %v2374 = vpop.f32.mrb[0].mxu0
    %2375 = vdwg.mxu0
    %2378 = vrot.lane.b32.xlu0 %v2368, 24
    %v2379 = vpop.permute.xlu0 %2378
    %2380 = vrot.lane.b32.xlu0 %v2373, 24
    %v2381 = vpop.permute.xlu0 %2380
    %2384 = vst.msk [vmem:[#allocation2] sm:$0xff] %vm1050, %v2379
    %2385 = vst.msk [vmem:[#allocation2 + $0x8] sm:$0xff] %vm1050, %v2381
    %v2386 = vld [vmem:[#allocation2] sm:$0xff]
    %v2387 = vld [vmem:[#allocation2 + $0x8] sm:$0xff]
    %s2388 = scalar_lea.vmem %s6, 32
    %v2389 = vld [vmem:[%s2388] sm:$0xff]
    %v2390 = vld [vmem:[%s2388 + $0x8] sm:$0xff]
    %v2391 = vld [vmem:[%s2388 + $0x10] sm:$0xff]
    %v2392 = vld [vmem:[%s2388 + $0x18] sm:$0xff]
    %s2393 = scalar_lea.vmem %s7, 1
    %v2394 = vld [vmem:[%s2393] sm:$0x1]
    %v2396 = vlaneseq
    %v2397 = vshrl.u32 %v2396, 7
    %v2398 = vsub.s32 0, %v2397
    %v2399 = vrot.slane %v2394, %v2398
    %v2402 = vsel %vm66, %v2386, 0
    %v2405 = vsel %vm66, %v2387, 0
    %2407 = vmatprep.subr.mxu0 0.0
    %2408 = vmatpush1.msra.mxu0 %v2389
    %2409 = vmatprep.subr.mxu0 0.0
    %2410 = vmatpush1.msra.mxu0 %v2390
    %2411 = vmatprep.subr.mxu0 0.0
    %2412 = vmatpush1.msra.mxu0 %v2391
    %2413 = vmatprep.subr.mxu0 0.0
    %2414 = vmatpush1.msra.mxu0 %v2392
    %2415 = vmatprep.subr.mxu0 0.0
    %2416 = vmatpush1.msra.mxu0 0.0
    %2417 = vmatprep.subr.mxu0 0.0
    %2418 = vmatpush1.msra.mxu0 0.0
    %2419 = vmatprep.subr.mxu0 0.0
    %2420 = vmatpush1.msra.mxu0 0.0
    %2421 = vmatprep.subr.mxu0 0.0
    %2422 = vmatpush1.msra.mxu0 0.0
    %2423 = vmatprep.subr.mxu0 0.0
    %2424 = vmatpush1.msra.mxu0 0.0
    %2425 = vmatprep.subr.mxu0 0.0
    %2426 = vmatpush1.msra.mxu0 0.0
    %2427 = vmatprep.subr.mxu0 0.0
    %2428 = vmatpush1.msra.mxu0 0.0
    %2429 = vmatprep.subr.mxu0 0.0
    %2430 = vmatpush1.msra.mxu0 0.0
    %2431 = vmatprep.subr.mxu0 0.0
    %2432 = vmatpush1.msra.mxu0 0.0
    %2433 = vmatprep.subr.mxu0 0.0
    %2434 = vmatpush1.msra.mxu0 0.0
    %2435 = vmatprep.subr.mxu0 0.0
    %2436 = vmatpush1.msra.mxu0 0.0
    %2437 = vmatprep.subr.mxu0 0.0
    %2438 = vmatpush1.msra.mxu0 0.0
    %2439 = vmatprep.subr.mxu0 0.0
    %2440 = vmatpush1.msra.mxu0 0.0
    %2441 = vmatprep.subr.mxu0 0.0
    %2442 = vmatpush1.msra.mxu0 0.0
    %2443 = vmatprep.subr.mxu0 0.0
    %2444 = vmatpush1.msra.mxu0 0.0
    %2445 = vmatprep.subr.mxu0 0.0
    %2446 = vmatpush1.msra.mxu0 0.0
    %2447 = vmatprep.subr.mxu0 0.0
    %2448 = vmatpush1.msra.mxu0 0.0
    %2449 = vmatprep.subr.mxu0 0.0
    %2450 = vmatpush1.msra.mxu0 0.0
    %2451 = vmatprep.subr.mxu0 0.0
    %2452 = vmatpush1.msra.mxu0 0.0
    %2453 = vmatprep.subr.mxu0 0.0
    %2454 = vmatpush1.msra.mxu0 0.0
    %2455 = vmatprep.subr.mxu0 0.0
    %2456 = vmatpush1.msra.mxu0 0.0
    %2457 = vmatprep.subr.mxu0 0.0
    %2458 = vmatpush1.msra.mxu0 0.0
    %2459 = vmatprep.subr.mxu0 0.0
    %2460 = vmatpush1.msra.mxu0 0.0
    %2461 = vmatprep.subr.mxu0 0.0
    %2462 = vmatpush1.msra.mxu0 0.0
    %2463 = vmatprep.subr.mxu0 0.0
    %2464 = vmatpush1.msra.mxu0 0.0
    %2465 = vmatprep.subr.mxu0 0.0
    %2466 = vmatpush1.msra.mxu0 0.0
    %2467 = vmatprep.subr.mxu0 0.0
    %2468 = vmatpush1.msra.mxu0 0.0
    %2469 = vmatprep.subr.mxu0 0.0
    %2470 = vmatpush1.msra.mxu0 0.0
    %2471 = vmatprep.mubr.f32.mxu0 0.0
    %2472 = vmatmul.mubr.f32.gmra.mrb[0].mxu0 %v2402
    %v2473 = vpop.f32.mrb[0].mxu0
    %v2474 = vadd.f32 %v2399, %v2473
    %v2475 = vpop.f32.mrb[0].mxu0
    %2476 = vmatprep.mubr.f32.mxu0 0.0
    %2477 = vmatmul.mubr.f32.gmra.mrb[0].mxu0 %v2405
    %v2478 = vpop.f32.mrb[0].mxu0
    %v2479 = vadd.f32 %v2399, %v2478
    %v2480 = vpop.f32.mrb[0].mxu0
    %2481 = vdwg.mxu0
    %v2482 = vadd.f32 %v2474, %v1444
    %v2483 = vadd.f32 %v2479, %v1445
    %s2484 = scalar_lea.vmem %s8, 1
    %v2485 = vld [vmem:[%s2484] sm:$0x1]
    %s2486 = scalar_lea.vmem %s9, 1
    %v2487 = vld [vmem:[%s2486] sm:$0x1]
    %v2488 = vsel %vm66, %v2482, 0.0
    %2489 = vadd.xlane.f32.xlu0 %v2488
    %v2490 = vpop.xlane.xlu0 %2489
    %v2491 = vsel %vm66, %v2483, 0.0
    %2492 = vadd.xlane.f32.xlu0 %v2491
    %v2493 = vpop.xlane.xlu0 %2492
    %v2494 = vmul.f32 %v2490, %v73
    %v2495 = vmul.f32 %v2493, %v73
    %v2496 = vsub.f32 %v2482, %v2494
    %v2497 = vsub.f32 %v2483, %v2495
    %v2498 = vmul.f32 %v2496, %v2496
    %v2499 = vmul.f32 %v2497, %v2497
    %v2500 = vsel %vm66, %v2498, 0.0
    %2501 = vadd.xlane.f32.xlu0 %v2500
    %v2502 = vpop.xlane.xlu0 %2501
    %v2503 = vsel %vm66, %v2499, 0.0
    %2504 = vadd.xlane.f32.xlu0 %v2503
    %v2505 = vpop.xlane.xlu0 %2504
    %v2506 = vmul.f32 %v2502, %v73
    %v2507 = vmul.f32 %v2505, %v73
    %v2508 = vadd.f32 %v2506, 1e-12
    %v2509 = vadd.f32 %v2507, 1e-12
    %v2510 = vrsqrt.pop %v2508
    %v2511 = vrsqrt.pop %v2509
    %v2512 = vmul.f32 %v2496, %v2510
    %v2513 = vmul.f32 %v2497, %v2511
    %v2515 = vlaneseq
    %v2516 = vshrl.u32 %v2515, 7
    %v2517 = vsub.s32 0, %v2516
    %v2518 = vrot.slane %v2485, %v2517
    %v2520 = vmul.f32 %v2512, %v2518
    %v2521 = vmul.f32 %v2513, %v2518
    %v2523 = vlaneseq
    %v2524 = vshrl.u32 %v2523, 7
    %v2525 = vsub.s32 0, %v2524
    %v2526 = vrot.slane %v2487, %v2525
    %v2528 = vadd.f32 %v2520, %v2526
    %v2529 = vadd.f32 %v2521, %v2526
    %s2530 = scalar_lea.vmem %s10, 32
    %v2531 = vld [vmem:[%s2530] sm:$0xff]
    %v2532 = vld [vmem:[%s2530 + $0x8] sm:$0xff]
    %v2533 = vld [vmem:[%s2530 + $0x10] sm:$0xff]
    %v2534 = vld [vmem:[%s2530 + $0x18] sm:$0xff]
    %s2535 = scalar_lea.vmem %s11, 1
    %v2536 = vld [vmem:[%s2535] sm:$0x1]
    %v2538 = vlaneseq
    %v2539 = vshrl.u32 %v2538, 7
    %v2540 = vsub.s32 0, %v2539
    %v2541 = vrot.slane %v2536, %v2540
    %v2544 = vsel %vm66, %v2528, 0
    %v2547 = vsel %vm66, %v2529, 0
    %2549 = vmatprep.subr.mxu0 0.0
    %2550 = vmatpush1.msra.mxu0 %v2531
    %2551 = vmatprep.subr.mxu0 0.0
    %2552 = vmatpush1.msra.mxu0 %v2532
    %2553 = vmatprep.subr.mxu0 0.0
    %2554 = vmatpush1.msra.mxu0 %v2533
    %2555 = vmatprep.subr.mxu0 0.0
    %2556 = vmatpush1.msra.mxu0 %v2534
    %2557 = vmatprep.subr.mxu0 0.0
    %2558 = vmatpush1.msra.mxu0 0.0
    %2559 = vmatprep.subr.mxu0 0.0
    %2560 = vmatpush1.msra.mxu0 0.0
    %2561 = vmatprep.subr.mxu0 0.0
    %2562 = vmatpush1.msra.mxu0 0.0
    %2563 = vmatprep.subr.mxu0 0.0
    %2564 = vmatpush1.msra.mxu0 0.0
    %2565 = vmatprep.subr.mxu0 0.0
    %2566 = vmatpush1.msra.mxu0 0.0
    %2567 = vmatprep.subr.mxu0 0.0
    %2568 = vmatpush1.msra.mxu0 0.0
    %2569 = vmatprep.subr.mxu0 0.0
    %2570 = vmatpush1.msra.mxu0 0.0
    %2571 = vmatprep.subr.mxu0 0.0
    %2572 = vmatpush1.msra.mxu0 0.0
    %2573 = vmatprep.subr.mxu0 0.0
    %2574 = vmatpush1.msra.mxu0 0.0
    %2575 = vmatprep.subr.mxu0 0.0
    %2576 = vmatpush1.msra.mxu0 0.0
    %2577 = vmatprep.subr.mxu0 0.0
    %2578 = vmatpush1.msra.mxu0 0.0
    %2579 = vmatprep.subr.mxu0 0.0
    %2580 = vmatpush1.msra.mxu0 0.0
    %2581 = vmatprep.subr.mxu0 0.0
    %2582 = vmatpush1.msra.mxu0 0.0
    %2583 = vmatprep.subr.mxu0 0.0
    %2584 = vmatpush1.msra.mxu0 0.0
    %2585 = vmatprep.subr.mxu0 0.0
    %2586 = vmatpush1.msra.mxu0 0.0
    %2587 = vmatprep.subr.mxu0 0.0
    %2588 = vmatpush1.msra.mxu0 0.0
    %2589 = vmatprep.subr.mxu0 0.0
    %2590 = vmatpush1.msra.mxu0 0.0
    %2591 = vmatprep.subr.mxu0 0.0
    %2592 = vmatpush1.msra.mxu0 0.0
    %2593 = vmatprep.subr.mxu0 0.0
    %2594 = vmatpush1.msra.mxu0 0.0
    %2595 = vmatprep.subr.mxu0 0.0
    %2596 = vmatpush1.msra.mxu0 0.0
    %2597 = vmatprep.subr.mxu0 0.0
    %2598 = vmatpush1.msra.mxu0 0.0
    %2599 = vmatprep.subr.mxu0 0.0
    %2600 = vmatpush1.msra.mxu0 0.0
    %2601 = vmatprep.subr.mxu0 0.0
    %2602 = vmatpush1.msra.mxu0 0.0
    %2603 = vmatprep.subr.mxu0 0.0
    %2604 = vmatpush1.msra.mxu0 0.0
    %2605 = vmatprep.subr.mxu0 0.0
    %2606 = vmatpush1.msra.mxu0 0.0
    %2607 = vmatprep.subr.mxu0 0.0
    %2608 = vmatpush1.msra.mxu0 0.0
    %2609 = vmatprep.subr.mxu0 0.0
    %2610 = vmatpush1.msra.mxu0 0.0
    %2611 = vmatprep.subr.mxu0 0.0
    %2612 = vmatpush1.msra.mxu0 0.0
    %2613 = vmatprep.mubr.f32.mxu0 0.0
    %2614 = vmatmul.mubr.f32.gmra.mrb[0].mxu0 %v2544
    %v2615 = vpop.f32.mrb[0].mxu0
    %v2616 = vadd.f32 %v2541, %v2615
    %v2617 = vpop.f32.mrb[0].mxu0
    %2618 = vmatprep.mubr.f32.mxu0 0.0
    %2619 = vmatmul.mubr.f32.gmra.mrb[0].mxu0 %v2547
    %v2620 = vpop.f32.mrb[0].mxu0
    %v2621 = vadd.f32 %v2541, %v2620
    %v2622 = vpop.f32.mrb[0].mxu0
    %2623 = vdwg.mxu0
    %v2624 = vmul.f32 %v2616, 0.5
    %v2625 = vmul.f32 %v2621, 0.5
    %v2626 = vmul.f32 %v2616, 0.044715
    %v2627 = vmul.f32 %v2621, 0.044715
    %v2628 = vmul.f32 %v2626, %v2616
    %v2629 = vmul.f32 %v2627, %v2621
    %v2630 = vmul.f32 %v2628, %v2616
    %v2631 = vmul.f32 %v2629, %v2621
    %v2632 = vadd.f32 %v2616, %v2630
    %v2633 = vadd.f32 %v2621, %v2631
    %v2634 = vmul.f32 %v2632, 0.7978846
    %v2635 = vmul.f32 %v2633, 0.7978846
    %v2636 = vtanh.pop %v2634
    %v2637 = vtanh.pop %v2635
    %v2638 = vadd.f32 %v2636, 1.0
    %v2639 = vadd.f32 %v2637, 1.0
    %v2640 = vmul.f32 %v2624, %v2638
    %v2641 = vmul.f32 %v2625, %v2639
    %s2642 = scalar_lea.vmem %s12, 64
    %v2643 = vld [vmem:[%s2642] sm:$0xff]
    %v2644 = vld [vmem:[%s2642 + $0x8] sm:$0xff]
    %v2645 = vld [vmem:[%s2642 + $0x10] sm:$0xff]
    %v2646 = vld [vmem:[%s2642 + $0x18] sm:$0xff]
    %v2647 = vld [vmem:[%s2642 + $0x20] sm:$0xff]
    %v2648 = vld [vmem:[%s2642 + $0x28] sm:$0xff]
    %v2649 = vld [vmem:[%s2642 + $0x30] sm:$0xff]
    %v2650 = vld [vmem:[%s2642 + $0x38] sm:$0xff]
    %s2651 = scalar_lea.vmem %s13, 1
    %v2652 = vld [vmem:[%s2651] sm:$0x1]
    %v2654 = vlaneseq
    %v2655 = vshrl.u32 %v2654, 7
    %v2656 = vsub.s32 0, %v2655
    %v2657 = vrot.slane %v2652, %v2656
    %v2660 = vsel %vm1318, %v2640, 0
    %v2663 = vsel %vm1318, %v2641, 0
    %2665 = vmatprep.subr.mxu0 0.0
    %2666 = vmatpush1.msra.mxu0 %v2643
    %2667 = vmatprep.subr.mxu0 0.0
    %2668 = vmatpush1.msra.mxu0 %v2644
    %2669 = vmatprep.subr.mxu0 0.0
    %2670 = vmatpush1.msra.mxu0 %v2645
    %2671 = vmatprep.subr.mxu0 0.0
    %2672 = vmatpush1.msra.mxu0 %v2646
    %2673 = vmatprep.subr.mxu0 0.0
    %2674 = vmatpush1.msra.mxu0 %v2647
    %2675 = vmatprep.subr.mxu0 0.0
    %2676 = vmatpush1.msra.mxu0 %v2648
    %2677 = vmatprep.subr.mxu0 0.0
    %2678 = vmatpush1.msra.mxu0 %v2649
    %2679 = vmatprep.subr.mxu0 0.0
    %2680 = vmatpush1.msra.mxu0 %v2650
    %2681 = vmatprep.subr.mxu0 0.0
    %2682 = vmatpush1.msra.mxu0 0.0
    %2683 = vmatprep.subr.mxu0 0.0
    %2684 = vmatpush1.msra.mxu0 0.0
    %2685 = vmatprep.subr.mxu0 0.0
    %2686 = vmatpush1.msra.mxu0 0.0
    %2687 = vmatprep.subr.mxu0 0.0
    %2688 = vmatpush1.msra.mxu0 0.0
    %2689 = vmatprep.subr.mxu0 0.0
    %2690 = vmatpush1.msra.mxu0 0.0
    %2691 = vmatprep.subr.mxu0 0.0
    %2692 = vmatpush1.msra.mxu0 0.0
    %2693 = vmatprep.subr.mxu0 0.0
    %2694 = vmatpush1.msra.mxu0 0.0
    %2695 = vmatprep.subr.mxu0 0.0
    %2696 = vmatpush1.msra.mxu0 0.0
    %2697 = vmatprep.subr.mxu0 0.0
    %2698 = vmatpush1.msra.mxu0 0.0
    %2699 = vmatprep.subr.mxu0 0.0
    %2700 = vmatpush1.msra.mxu0 0.0
    %2701 = vmatprep.subr.mxu0 0.0
    %2702 = vmatpush1.msra.mxu0 0.0
    %2703 = vmatprep.subr.mxu0 0.0
    %2704 = vmatpush1.msra.mxu0 0.0
    %2705 = vmatprep.subr.mxu0 0.0
    %2706 = vmatpush1.msra.mxu0 0.0
    %2707 = vmatprep.subr.mxu0 0.0
    %2708 = vmatpush1.msra.mxu0 0.0
    %2709 = vmatprep.subr.mxu0 0.0
    %2710 = vmatpush1.msra.mxu0 0.0
    %2711 = vmatprep.subr.mxu0 0.0
    %2712 = vmatpush1.msra.mxu0 0.0
    %2713 = vmatprep.subr.mxu0 0.0
    %2714 = vmatpush1.msra.mxu0 0.0
    %2715 = vmatprep.subr.mxu0 0.0
    %2716 = vmatpush1.msra.mxu0 0.0
    %2717 = vmatprep.subr.mxu0 0.0
    %2718 = vmatpush1.msra.mxu0 0.0
    %2719 = vmatprep.subr.mxu0 0.0
    %2720 = vmatpush1.msra.mxu0 0.0
    %2721 = vmatprep.subr.mxu0 0.0
    %2722 = vmatpush1.msra.mxu0 0.0
    %2723 = vmatprep.subr.mxu0 0.0
    %2724 = vmatpush1.msra.mxu0 0.0
    %2725 = vmatprep.subr.mxu0 0.0
    %2726 = vmatpush1.msra.mxu0 0.0
    %2727 = vmatprep.subr.mxu0 0.0
    %2728 = vmatpush1.msra.mxu0 0.0
    %2729 = vmatprep.mubr.f32.mxu0 0.0
    %2730 = vmatmul.mubr.f32.gmra.mrb[0].mxu0 %v2660
    %v2731 = vpop.f32.mrb[0].mxu0
    %v2732 = vadd.f32 %v2657, %v2731
    %v2733 = vpop.f32.mrb[0].mxu0
    %2734 = vmatprep.mubr.f32.mxu0 0.0
    %2735 = vmatmul.mubr.f32.gmra.mrb[0].mxu0 %v2663
    %v2736 = vpop.f32.mrb[0].mxu0
    %v2737 = vadd.f32 %v2657, %v2736
    %v2738 = vpop.f32.mrb[0].mxu0
    %2739 = vdwg.mxu0
    %v2740 = vadd.f32 %v2732, %v2528
    %v2741 = vadd.f32 %v2737, %v2529
    %s2742 = scalar_lea.vmem %s14, 1
    %v2743 = vld [vmem:[%s2742] sm:$0x1]
    %s2744 = scalar_lea.vmem %s15, 1
    %v2745 = vld [vmem:[%s2744] sm:$0x1]
    %v2746 = vsel %vm66, %v2740, 0.0
    %2747 = vadd.xlane.f32.xlu0 %v2746
    %v2748 = vpop.xlane.xlu0 %2747
    %v2749 = vsel %vm66, %v2741, 0.0
    %2750 = vadd.xlane.f32.xlu0 %v2749
    %v2751 = vpop.xlane.xlu0 %2750
    %v2752 = vmul.f32 %v2748, %v73
    %v2753 = vmul.f32 %v2751, %v73
    %v2754 = vsub.f32 %v2740, %v2752
    %v2755 = vsub.f32 %v2741, %v2753
    %v2756 = vmul.f32 %v2754, %v2754
    %v2757 = vmul.f32 %v2755, %v2755
    %v2758 = vsel %vm66, %v2756, 0.0
    %2759 = vadd.xlane.f32.xlu0 %v2758
    %v2760 = vpop.xlane.xlu0 %2759
    %v2761 = vsel %vm66, %v2757, 0.0
    %2762 = vadd.xlane.f32.xlu0 %v2761
    %v2763 = vpop.xlane.xlu0 %2762
    %v2764 = vmul.f32 %v2760, %v73
    %v2765 = vmul.f32 %v2763, %v73
    %v2766 = vadd.f32 %v2764, 1e-12
    %v2767 = vadd.f32 %v2765, 1e-12
    %v2768 = vrsqrt.pop %v2766
    %v2769 = vrsqrt.pop %v2767
    %v2770 = vmul.f32 %v2754, %v2768
    %v2771 = vmul.f32 %v2755, %v2769
    %v2773 = vlaneseq
    %v2774 = vshrl.u32 %v2773, 7
    %v2775 = vsub.s32 0, %v2774
    %v2776 = vrot.slane %v2743, %v2775
    %v2778 = vmul.f32 %v2770, %v2776
    %v2779 = vmul.f32 %v2771, %v2776
    %v2781 = vlaneseq
    %v2782 = vshrl.u32 %v2781, 7
    %v2783 = vsub.s32 0, %v2782
    %v2784 = vrot.slane %v2745, %v2783
    %v2786 = vadd.f32 %v2778, %v2784
    %v2787 = vadd.f32 %v2779, %v2784
    %v2788 = vld [vmem:[%s16] sm:$0xff]
    %v2789 = vld [vmem:[%s16 + $0x8] sm:$0xff]
    %v2790 = vld [vmem:[%s16 + $0x10] sm:$0xff]
    %v2791 = vld [vmem:[%s16 + $0x18] sm:$0xff]
    %v2792 = vld [vmem:[%s17] sm:$0x1]
    %v2794 = vlaneseq
    %v2795 = vshrl.u32 %v2794, 7
    %v2796 = vsub.s32 0, %v2795
    %v2797 = vrot.slane %v2792, %v2796
    %v2800 = vsel %vm66, %v2786, 0
    %v2803 = vsel %vm66, %v2787, 0
    %2805 = vmatprep.subr.mxu0 0.0
    %2806 = vmatpush1.msra.mxu0 %v2788
    %2807 = vmatprep.subr.mxu0 0.0
    %2808 = vmatpush1.msra.mxu0 %v2789
    %2809 = vmatprep.subr.mxu0 0.0
    %2810 = vmatpush1.msra.mxu0 %v2790
    %2811 = vmatprep.subr.mxu0 0.0
    %2812 = vmatpush1.msra.mxu0 %v2791
    %2813 = vmatprep.subr.mxu0 0.0
    %2814 = vmatpush1.msra.mxu0 0.0
    %2815 = vmatprep.subr.mxu0 0.0
    %2816 = vmatpush1.msra.mxu0 0.0
    %2817 = vmatprep.subr.mxu0 0.0
    %2818 = vmatpush1.msra.mxu0 0.0
    %2819 = vmatprep.subr.mxu0 0.0
    %2820 = vmatpush1.msra.mxu0 0.0
    %2821 = vmatprep.subr.mxu0 0.0
    %2822 = vmatpush1.msra.mxu0 0.0
    %2823 = vmatprep.subr.mxu0 0.0
    %2824 = vmatpush1.msra.mxu0 0.0
    %2825 = vmatprep.subr.mxu0 0.0
    %2826 = vmatpush1.msra.mxu0 0.0
    %2827 = vmatprep.subr.mxu0 0.0
    %2828 = vmatpush1.msra.mxu0 0.0
    %2829 = vmatprep.subr.mxu0 0.0
    %2830 = vmatpush1.msra.mxu0 0.0
    %2831 = vmatprep.subr.mxu0 0.0
    %2832 = vmatpush1.msra.mxu0 0.0
    %2833 = vmatprep.subr.mxu0 0.0
    %2834 = vmatpush1.msra.mxu0 0.0
    %2835 = vmatprep.subr.mxu0 0.0
    %2836 = vmatpush1.msra.mxu0 0.0
    %2837 = vmatprep.subr.mxu0 0.0
    %2838 = vmatpush1.msra.mxu0 0.0
    %2839 = vmatprep.subr.mxu0 0.0
    %2840 = vmatpush1.msra.mxu0 0.0
    %2841 = vmatprep.subr.mxu0 0.0
    %2842 = vmatpush1.msra.mxu0 0.0
    %2843 = vmatprep.subr.mxu0 0.0
    %2844 = vmatpush1.msra.mxu0 0.0
    %2845 = vmatprep.subr.mxu0 0.0
    %2846 = vmatpush1.msra.mxu0 0.0
    %2847 = vmatprep.subr.mxu0 0.0
    %2848 = vmatpush1.msra.mxu0 0.0
    %2849 = vmatprep.subr.mxu0 0.0
    %2850 = vmatpush1.msra.mxu0 0.0
    %2851 = vmatprep.subr.mxu0 0.0
    %2852 = vmatpush1.msra.mxu0 0.0
    %2853 = vmatprep.subr.mxu0 0.0
    %2854 = vmatpush1.msra.mxu0 0.0
    %2855 = vmatprep.subr.mxu0 0.0
    %2856 = vmatpush1.msra.mxu0 0.0
    %2857 = vmatprep.subr.mxu0 0.0
    %2858 = vmatpush1.msra.mxu0 0.0
    %2859 = vmatprep.subr.mxu0 0.0
    %2860 = vmatpush1.msra.mxu0 0.0
    %2861 = vmatprep.subr.mxu0 0.0
    %2862 = vmatpush1.msra.mxu0 0.0
    %2863 = vmatprep.subr.mxu0 0.0
    %2864 = vmatpush1.msra.mxu0 0.0
    %2865 = vmatprep.subr.mxu0 0.0
    %2866 = vmatpush1.msra.mxu0 0.0
    %2867 = vmatprep.subr.mxu0 0.0
    %2868 = vmatpush1.msra.mxu0 0.0
    %2869 = vmatprep.mubr.f32.mxu0 0.0
    %2870 = vmatmul.mubr.f32.gmra.mrb[0].mxu0 %v2800
    %v2871 = vpop.f32.mrb[0].mxu0
    %v2872 = vadd.f32 %v2797, %v2871
    %v2873 = vpop.f32.mrb[0].mxu0
    %2874 = vmatprep.mubr.f32.mxu0 0.0
    %2875 = vmatmul.mubr.f32.gmra.mrb[0].mxu0 %v2803
    %v2876 = vpop.f32.mrb[0].mxu0
    %v2877 = vadd.f32 %v2797, %v2876
    %v2878 = vpop.f32.mrb[0].mxu0
    %2879 = vdwg.mxu0
    %v2880 = vtanh.pop %v2872
    %v2881 = vtanh.pop %v2877
    %vm2882 = vcmask 122880
    %2883 = vst.msk [vmem:[#allocation3] sm:$0x1] %vm2882, %v2880
    %2884 = vst.msk [vmem:[#allocation3 + $0x1] sm:$0x1] %vm2882, %v2881
    // Predicated region
    $region74: #{bert_text_net.1} parent=1 // pred_check
      _
    $region75: #{bert_text_net.1} parent=1 // pred_check_branch
      %2886 = sbr.rel (0) target = $region77
    $region76: #{bert_text_net.1} parent=1 // pred_region
      %s2888 = ssub.s32 32, 32
      %2889 = vsyncadd [#allocation4], %s2888
      %s2891 = sshll.u32 [#allocation3], 4
      %s2892 = int_to_ptr.vmem [resolvable:$true] %s2891
      %2894 = dma.vmem_to_hbm [thread:$0]  %s2892, 32, %s18, [#allocation4]
    $region77: #{bert_text_net.1} parent=1 // pred_fallthru
      _
    // Predicated region
    $region78: #{bert_text_net.1} parent=1 // pred_check
      _
    $region79: #{bert_text_net.1} parent=1 // pred_check_branch
      %2896 = sbr.rel (0) target = $region81
    $region80: #{bert_text_net.1} parent=1 // pred_region
      %2897 = dma.done [#allocation4], 32
    $region81: #{bert_text_net.1} parent=1 // pred_fallthru
      _
    %2898 = vsyncpa [#allocation4], 1

</llo_original>
